<compile_context>
chip_gen: v7x
topology: tpu7x:2x2x1
jax: 0.10.0
libtpu: 0.0.40
codegen_flags: <defaults>
</compile_context>

<pallas_src>
import functools
import math

import jax
import jax.numpy as jnp
from jax.experimental import pallas as pl
from jax.experimental.pallas import tpu as pltpu

_MIB = 1024 * 1024


def _vmem_limit(resident_bytes, pipelined_bytes):
    """Explicit scoped-VMEM limit: 2x double-buffered pipelined blocks + resident blocks."""
    need = 2 * pipelined_bytes + resident_bytes + 4 * _MIB
    # Floor above every generation's scoped default (16/32 MiB); cap safely below
    # v7x's 64 MiB physical VMEM.
    return int(min(max(need, 32 * _MIB), 48 * _MIB))


def _pick_s_tile(S):
    for t in (512, 256, 128):
        if S % t == 0:
            return t
    return S


def _pick_groups_per_chunk(n_groups, kd):
    # Smallest group count whose lane window is a multiple of 128 (unmasked stores,
    # MXU N >= 128 for the output projection) and that divides n_groups evenly.
    for g in range(1, n_groups + 1):
        if n_groups % g == 0 and (g * kd) % 128 == 0:
            return g
    return n_groups  # fall back to a single chunk covering all of S


# ---------------------------------------------------------------------------
# Kernel 1: fused Q/K/V 1x1 projection (single bf16 matmul, concatenated weights)
# ---------------------------------------------------------------------------
def _qkv_proj_kernel(x_ref, w_ref, q_ref, k_ref, v_ref, *, nhk, kd):
    # x_ref: (1, C, ts) f32     w_ref: (nhk + 2*kd, C) bf16 (scale folded into q rows)
    # q_ref: (1, nhk, ts) bf16  k_ref / v_ref: (1, kd, ts) bf16   (all lane-dense: S on lanes)
    x = x_ref[0].astype(jnp.bfloat16)
    slab = jnp.dot(w_ref[...], x, preferred_element_type=jnp.float32)  # (OC, ts) f32 acc
    q_ref[0] = slab[:nhk, :].astype(q_ref.dtype)
    k_ref[0] = slab[nhk:nhk + kd, :].astype(k_ref.dtype)
    v_ref[0] = slab[nhk + kd:nhk + 2 * kd, :].astype(v_ref.dtype)


def qkv_proj(x_flat, w_qkv_bf16, nhk, kd):
    bs, C, S = x_flat.shape
    OC = w_qkv_bf16.shape[0]
    ts = _pick_s_tile(S)
    kernel = functools.partial(_qkv_proj_kernel, nhk=nhk, kd=kd)
    pipelined = C * ts * 4 + (nhk + 2 * kd) * ts * 2      # x tile + q/k/v tiles
    resident = OC * C * 2 + OC * ts * 4                   # weights + f32 slab
    return pl.pallas_call(
        kernel,
        out_shape=(
            jax.ShapeDtypeStruct((bs, nhk, S), jnp.bfloat16),
            jax.ShapeDtypeStruct((bs, kd, S), jnp.bfloat16),
            jax.ShapeDtypeStruct((bs, kd, S), jnp.bfloat16),
        ),
        grid_spec=pltpu.PrefetchScalarGridSpec(
            num_scalar_prefetch=0,
            grid=(bs, S // ts),
            in_specs=[
                pl.BlockSpec((1, C, ts), lambda b, t: (b, 0, t)),
                pl.BlockSpec((OC, C), lambda b, t: (0, 0)),       # weights stay resident
            ],
            out_specs=[
                pl.BlockSpec((1, nhk, ts), lambda b, t: (b, 0, t)),
                pl.BlockSpec((1, kd, ts), lambda b, t: (b, 0, t)),
                pl.BlockSpec((1, kd, ts), lambda b, t: (b, 0, t)),
            ],
        ),
        compiler_params=pltpu.CompilerParams(
            dimension_semantics=("parallel", "parallel"),
            vmem_limit_bytes=_vmem_limit(resident, pipelined),
        ),
    )(x_flat, w_qkv_bf16)


# ---------------------------------------------------------------------------
# Kernel 2: fused multi-query attention + output 1x1 projection
# ---------------------------------------------------------------------------
def _attn_out_kernel(q_ref, k_ref, v_ref, wo_ref, o_ref, ctx_ref, *, kd, groups_per_chunk):
    # q_ref:  (1, nhk, CL) bf16  query, conv layout; CL = groups_per_chunk * kd lanes.
    # k_ref:  (1, kd, S)   bf16  key, conv layout (single KV head: multi-query).
    # v_ref:  (1, S, kd)   bf16  value after torch's C-order v.reshape(bs, 1, -1, kd).
    # wo_ref: (C, nhk)     bf16  output 1x1-conv weight.
    # o_ref:  (1, C, CL)   f32   final output, conv layout, lane-dense.
    # ctx_ref:(nhk, CL)    f32   VMEM scratch holding this chunk's context.
    #
    # Query row m of head h decomposes as m = d'*(S//kd) + a; its kd query features are
    # the contiguous lane window q_conv[h*kd + d', a*kd:(a+1)*kd].  Looping over lane
    # groups therefore folds all heads into the matmul M dimension and keeps q / out in
    # conv layout.  The chunk grid axis bounds live ranges; this inner loop is at most
    # 128 // kd iterations with static (compile-time) slice offsets.
    k = k_ref[0]                                              # (kd, S) bf16
    v = v_ref[0]                                              # (S, kd) bf16
    for g in range(groups_per_chunk):
        q_blk = q_ref[0, :, g * kd:(g + 1) * kd]              # (nhk, kd) bf16
        s = jnp.dot(q_blk, k, preferred_element_type=jnp.float32)        # (nhk, S) f32
        m = jnp.max(s, axis=-1, keepdims=True)
        p = jnp.exp(s - m)
        denom = jnp.sum(p, axis=-1, keepdims=True)
        ctx = jnp.dot(p.astype(jnp.bfloat16), v, preferred_element_type=jnp.float32)
        ctx_ref[:, g * kd:(g + 1) * kd] = ctx * pl.reciprocal(denom)     # exact recip
    # One wide output projection (MXU N = CL >= 128) and one unmasked full-width store.
    ctx_all = ctx_ref[...].astype(jnp.bfloat16)
    o_ref[0] = jnp.dot(wo_ref[...], ctx_all,
                       preferred_element_type=jnp.float32).astype(o_ref.dtype)


def attention_output(q_conv, k_conv, v2, wo_bf16, kd, out_dtype):
    bs, nhk, S = q_conv.shape
    C = wo_bf16.shape[0]
    n_groups = S // kd
    gpc = _pick_groups_per_chunk(n_groups, kd)
    CL = gpc * kd
    n_chunks = n_groups // gpc
    kernel = functools.partial(_attn_out_kernel, kd=kd, groups_per_chunk=gpc)
    pipelined = nhk * CL * 2 + C * CL * 4                          # q tile + out tile
    resident = kd * S * 2 + S * 128 * 2 + C * nhk * 2 + nhk * CL * 4   # k + v(padded) + wo + ctx
    return pl.pallas_call(
        kernel,
        out_shape=jax.ShapeDtypeStruct((bs, C, S), out_dtype),
        grid_spec=pltpu.PrefetchScalarGridSpec(
            num_scalar_prefetch=0,
            grid=(bs, n_chunks),
            in_specs=[
                pl.BlockSpec((1, nhk, CL), lambda b, c: (b, 0, c)),
                pl.BlockSpec((1, kd, S), lambda b, c: (b, 0, 0)),   # resident across chunks
                pl.BlockSpec((1, S, kd), lambda b, c: (b, 0, 0)),   # resident across chunks
                pl.BlockSpec((C, nhk), lambda b, c: (0, 0)),        # resident
            ],
            out_specs=pl.BlockSpec((1, C, CL), lambda b, c: (b, 0, c)),
            scratch_shapes=[pltpu.VMEM((nhk, CL), jnp.float32)],
        ),
        compiler_params=pltpu.CompilerParams(
            dimension_semantics=("parallel", "parallel"),
            vmem_limit_bytes=_vmem_limit(resident, pipelined),
        ),
    )(q_conv, k_conv, v2, wo_bf16)


# ---------------------------------------------------------------------------
# Parameter preparation (done ONCE, outside the jitted forward)
# ---------------------------------------------------------------------------
def prepare_params(params, num_heads, key_dim):
    head_dim = key_dim // num_heads
    scale = 1.0 / math.sqrt(head_dim)
    # Fold the attention scale into the query projection and concatenate q/k/v weights
    # so one matmul produces all three projections; pre-cast weights to bf16 (MXU-native).
    w_qkv = jnp.concatenate(
        [params["wq"] * scale, params["wk"], params["wv"]], axis=0)   # (nhk + 2kd, C)
    return {
        "w_qkv": w_qkv.astype(jnp.bfloat16),
        "wo": params["wo"].astype(jnp.bfloat16),
    }


# ---------------------------------------------------------------------------
# Forward pass (all heavy work in the two fused kernels; glue is free bitcasts)
# ---------------------------------------------------------------------------
def mqa_forward(x, prepared, num_heads, key_dim):
    bs, C, H, W = x.shape
    assert H == W, "module's ctx.view(bs, nh*kd, px, px) assumes square spatial"
    S = H * W
    kd = key_dim
    nhk = num_heads * kd
    if S % kd != 0:
        # TODO(synk): general (H*W) % key_dim != 0 case needs a different tiling.
        raise NotImplementedError("fused kernel assumes (H*W) % key_dim == 0")

    x_flat = x.reshape(bs, C, S)
    q_conv, k_conv, v_conv = qkv_proj(x_flat, prepared["w_qkv"], nhk, kd)

    # Free row-major bitcast: exactly torch's v.reshape(bs, 1, -1, key_dim).
    v2 = v_conv.reshape(bs, S, kd)

    out = attention_output(q_conv, k_conv, v2, prepared["wo"], kd, x.dtype)   # (bs, C, S)
    return out.reshape(bs, C, H, W)


# Pure-JAX f32 reference mirroring the PyTorch forward, for correctness checking.
def mqa_reference(x, params, num_heads, key_dim):
    bs, C, H, W = x.shape
    head_dim = key_dim // num_heads
    xf = x.reshape(bs, C, H * W)
    q = jnp.einsum("oc,bcn->bon", params["wq"], xf)
    k = jnp.einsum("oc,bcn->bon", params["wk"], xf)
    v = jnp.einsum("oc,bcn->bon", params["wv"], xf)
    q = q.reshape(bs, num_heads, -1, key_dim)
    k = k.reshape(bs, 1, key_dim, -1)
    v = v.reshape(bs, 1, -1, key_dim)
    s = jnp.matmul(q, k) / math.sqrt(head_dim)
    p = jax.nn.softmax(s, axis=-1)
    ctx = jnp.matmul(p, v)
    ctx = ctx.reshape(bs, num_heads * key_dim, H * W)
    out = jnp.einsum("oc,bcn->bon", params["wo"], ctx)
    return out.reshape(bs, C, H, W)


if __name__ == "__main__":
    # Small, module-consistent shapes.
    bs, in_channels, H, W = 2, 16, 16, 16
    num_heads, key_dim, value_dim = 4, 16, 16
    query_h_strides = query_w_strides = 1
    kv_strides = 1

    key = jax.random.PRNGKey(0)
    kx, kq, kk, kv, ko = jax.random.split(key, 5)
    x = jax.random.normal(kx, (bs, in_channels, H, W), jnp.float32)

    # Deterministic parameter init (1x1 conv weights, bias=False).
    params = {
        "wq": 0.1 * jax.random.normal(kq, (num_heads * key_dim, in_channels), jnp.float32),
        "wk": 0.1 * jax.random.normal(kk, (key_dim, in_channels), jnp.float32),
        # NOTE: the module's _value_proj outputs key_dim channels (as written upstream).
        "wv": 0.1 * jax.random.normal(kv, (key_dim, in_channels), jnp.float32),
        "wo": 0.1 * jax.random.normal(ko, (in_channels, num_heads * key_dim), jnp.float32),
    }
    prepared = prepare_params(params, num_heads, key_dim)

    fwd = jax.jit(lambda inp: mqa_forward(inp, prepared, num_heads, key_dim))
    out = jax.block_until_ready(fwd(x))

    ref = mqa_reference(x, params, num_heads, key_dim)
    assert out.shape == (bs, in_channels, H, W)
    # Tolerance accounts for bf16 MXU operands (f32 accumulation) along the whole chain.
    assert jnp.allclose(out, ref, atol=1e-2, rtol=1e-2), "mismatch vs JAX reference"
    print("KERNEL_OK")
</pallas_src>

<mosaic_0001>
module attributes {stable_mosaic.version = 11 : i64} {
  func.func @_qkv_proj_kernel(%arg0: i32, %arg1: i32, %arg2: memref<1x16x256xf32, #tpu.memory_space<vmem>>, %arg3: memref<96x16xbf16, #tpu.memory_space<vmem>>, %arg4: memref<1x64x256xbf16, #tpu.memory_space<vmem>>, %arg5: memref<1x16x256xbf16, #tpu.memory_space<vmem>>, %arg6: memref<1x16x256xbf16, #tpu.memory_space<vmem>>) attributes {dimension_semantics = [#tpu.dimension_semantics<parallel>, #tpu.dimension_semantics<parallel>], iteration_bounds = array<i64: 2, 1>, scalar_prefetch = 0 : i64, scratch_operands = 0 : i64, tpu.core_type = #tpu.core_type<tc>, window_params = [{transform_indices = @transform_0, window_bounds = array<i64: 1, 16, 256>}, {pipeline_mode = #tpu.pipeline_mode<synchronous>, transform_indices = @transform_1, window_bounds = array<i64: 96, 16>}, {transform_indices = @transform_2, window_bounds = array<i64: 1, 64, 256>}, {transform_indices = @transform_3, window_bounds = array<i64: 1, 16, 256>}, {transform_indices = @transform_4, window_bounds = array<i64: 1, 16, 256>}]} {
    %c0 = arith.constant 0 : index
    %c0_0 = arith.constant 0 : index
    %c0_1 = arith.constant 0 : index
    %0 = vector.load %arg2[%c0, %c0_0, %c0_1] : memref<1x16x256xf32, #tpu.memory_space<vmem>>, vector<1x16x256xf32>
    %1 = vector.shape_cast %0 : vector<1x16x256xf32> to vector<16x256xf32>
    %2 = arith.truncf %1 : vector<16x256xf32> to vector<16x256xbf16>
    %c0_2 = arith.constant 0 : index
    %c0_3 = arith.constant 0 : index
    %3 = vector.load %arg3[%c0_2, %c0_3] : memref<96x16xbf16, #tpu.memory_space<vmem>>, vector<96x16xbf16>
    %cst = arith.constant dense<0.000000e+00> : vector<96x256xf32>
    %4 = tpu.matmul %3, %2, %cst {dimension_numbers = #tpu.dot_dimension_numbers<[1], [0], [0], [1], [0, 0, 1, 1], [], []>} : vector<96x16xbf16>, vector<16x256xbf16>, vector<96x256xf32> -> vector<96x256xf32>
    %5 = vector.extract_strided_slice %4 {offsets = [0, 0], sizes = [64, 256], strides = [1, 1]} : vector<96x256xf32> to vector<64x256xf32>
    %6 = arith.truncf %5 : vector<64x256xf32> to vector<64x256xbf16>
    %c0_4 = arith.constant 0 : index
    %c0_5 = arith.constant 0 : index
    %c0_6 = arith.constant 0 : index
    %7 = vector.load %arg4[%c0_4, %c0_5, %c0_6] : memref<1x64x256xbf16, #tpu.memory_space<vmem>>, vector<1x64x256xbf16>
    %8 = vector.shape_cast %7 : vector<1x64x256xbf16> to vector<64x256xbf16>
    %9 = vector.shape_cast %6 : vector<64x256xbf16> to vector<1x64x256xbf16>
    tpu.vector_store %arg4[%c0_4, %c0_5, %c0_6], %9 {strides = array<i32>} : memref<1x64x256xbf16, #tpu.memory_space<vmem>>, vector<1x64x256xbf16>,
    %10 = vector.extract_strided_slice %4 {offsets = [64, 0], sizes = [16, 256], strides = [1, 1]} : vector<96x256xf32> to vector<16x256xf32>
    %11 = arith.truncf %10 : vector<16x256xf32> to vector<16x256xbf16>
    %c0_7 = arith.constant 0 : index
    %c0_8 = arith.constant 0 : index
    %c0_9 = arith.constant 0 : index
    %12 = vector.load %arg5[%c0_7, %c0_8, %c0_9] : memref<1x16x256xbf16, #tpu.memory_space<vmem>>, vector<1x16x256xbf16>
    %13 = vector.shape_cast %12 : vector<1x16x256xbf16> to vector<16x256xbf16>
    %14 = vector.shape_cast %11 : vector<16x256xbf16> to vector<1x16x256xbf16>
    tpu.vector_store %arg5[%c0_7, %c0_8, %c0_9], %14 {strides = array<i32>} : memref<1x16x256xbf16, #tpu.memory_space<vmem>>, vector<1x16x256xbf16>,
    %15 = vector.extract_strided_slice %4 {offsets = [80, 0], sizes = [16, 256], strides = [1, 1]} : vector<96x256xf32> to vector<16x256xf32>
    %16 = arith.truncf %15 : vector<16x256xf32> to vector<16x256xbf16>
    %c0_10 = arith.constant 0 : index
    %c0_11 = arith.constant 0 : index
    %c0_12 = arith.constant 0 : index
    %17 = vector.load %arg6[%c0_10, %c0_11, %c0_12] : memref<1x16x256xbf16, #tpu.memory_space<vmem>>, vector<1x16x256xbf16>
    %18 = vector.shape_cast %17 : vector<1x16x256xbf16> to vector<16x256xbf16>
    %19 = vector.shape_cast %16 : vector<16x256xbf16> to vector<1x16x256xbf16>
    tpu.vector_store %arg6[%c0_10, %c0_11, %c0_12], %19 {strides = array<i32>} : memref<1x16x256xbf16, #tpu.memory_space<vmem>>, vector<1x16x256xbf16>,
    return
  }
  func.func @transform_0(%arg0: i32, %arg1: i32) -> (i32, i32, i32) {
    %c0_i32 = arith.constant 0 : i32
    %c0_i32_0 = arith.constant 0 : i32
    return %arg0, %c0_i32, %arg1 : i32, i32, i32
  }
  func.func @transform_1(%arg0: i32, %arg1: i32) -> (i32, i32) {
    %c0_i32 = arith.constant 0 : i32
    %c0_i32_0 = arith.constant 0 : i32
    %c0_i32_1 = arith.constant 0 : i32
    return %c0_i32, %c0_i32_0 : i32, i32
  }
  func.func @transform_2(%arg0: i32, %arg1: i32) -> (i32, i32, i32) {
    %c0_i32 = arith.constant 0 : i32
    %c0_i32_0 = arith.constant 0 : i32
    return %arg0, %c0_i32, %arg1 : i32, i32, i32
  }
  func.func @transform_3(%arg0: i32, %arg1: i32) -> (i32, i32, i32) {
    %c0_i32 = arith.constant 0 : i32
    %c0_i32_0 = arith.constant 0 : i32
    return %arg0, %c0_i32, %arg1 : i32, i32, i32
  }
  func.func @transform_4(%arg0: i32, %arg1: i32) -> (i32, i32, i32) {
    %c0_i32 = arith.constant 0 : i32
    %c0_i32_0 = arith.constant 0 : i32
    return %arg0, %c0_i32, %arg1 : i32, i32, i32
  }
}

module attributes {stable_mosaic.version = 11 : i64} {
  func.func @_attn_out_kernel(%arg0: i32, %arg1: i32, %arg2: memref<1x64x128xbf16, #tpu.memory_space<vmem>>, %arg3: memref<1x16x256xbf16, #tpu.memory_space<vmem>>, %arg4: memref<1x256x16xbf16, #tpu.memory_space<vmem>>, %arg5: memref<16x64xbf16, #tpu.memory_space<vmem>>, %arg6: memref<1x16x128xf32, #tpu.memory_space<vmem>>, %arg7: memref<64x128xf32, #tpu.memory_space<vmem>>) attributes {dimension_semantics = [#tpu.dimension_semantics<parallel>, #tpu.dimension_semantics<parallel>], iteration_bounds = array<i64: 2, 2>, scalar_prefetch = 0 : i64, scratch_operands = 1 : i64, tpu.core_type = #tpu.core_type<tc>, window_params = [{transform_indices = @transform_0, window_bounds = array<i64: 1, 64, 128>}, {transform_indices = @transform_1, window_bounds = array<i64: 1, 16, 256>}, {transform_indices = @transform_2, window_bounds = array<i64: 1, 256, 16>}, {pipeline_mode = #tpu.pipeline_mode<synchronous>, transform_indices = @transform_3, window_bounds = array<i64: 16, 64>}, {transform_indices = @transform_4, window_bounds = array<i64: 1, 16, 128>}]} {
    %c0 = arith.constant 0 : index
    %c0_0 = arith.constant 0 : index
    %c0_1 = arith.constant 0 : index
    %0 = vector.load %arg3[%c0, %c0_0, %c0_1] : memref<1x16x256xbf16, #tpu.memory_space<vmem>>, vector<1x16x256xbf16>
    %1 = vector.shape_cast %0 : vector<1x16x256xbf16> to vector<16x256xbf16>
    %c0_2 = arith.constant 0 : index
    %c0_3 = arith.constant 0 : index
    %c0_4 = arith.constant 0 : index
    %2 = vector.load %arg4[%c0_2, %c0_3, %c0_4] : memref<1x256x16xbf16, #tpu.memory_space<vmem>>, vector<1x256x16xbf16>
    %3 = vector.shape_cast %2 : vector<1x256x16xbf16> to vector<256x16xbf16>
    %c0_5 = arith.constant 0 : index
    %c0_6 = arith.constant 0 : index
    %c0_7 = arith.constant 0 : index
    %4 = vector.load %arg2[%c0_5, %c0_6, %c0_7] : memref<1x64x128xbf16, #tpu.memory_space<vmem>>, vector<1x64x16xbf16>
    %5 = vector.shape_cast %4 : vector<1x64x16xbf16> to vector<64x16xbf16>
    %cst = arith.constant dense<0.000000e+00> : vector<64x256xf32>
    %6 = tpu.matmul %5, %1, %cst {dimension_numbers = #tpu.dot_dimension_numbers<[1], [0], [0], [1], [0, 0, 1, 1], [], []>} : vector<64x16xbf16>, vector<16x256xbf16>, vector<64x256xf32> -> vector<64x256xf32>
    %cst_8 = arith.constant dense<0xFF800000> : vector<64xf32>
    %7 = vector.multi_reduction <maximumf>, %6, %cst_8 [1] : vector<64x256xf32> to vector<64xf32>
    %8 = vector.shape_cast %7 : vector<64xf32> to vector<64x1xf32>
    %9 = vector.broadcast %8 : vector<64x1xf32> to vector<64x256xf32>
    %10 = arith.subf %6, %9 : vector<64x256xf32>
    %11 = math.exp %10 : vector<64x256xf32>
    %cst_9 = arith.constant dense<0.000000e+00> : vector<64xf32>
    %12 = vector.multi_reduction <add>, %11, %cst_9 [1] : vector<64x256xf32> to vector<64xf32>
    %13 = vector.shape_cast %12 : vector<64xf32> to vector<64x1xf32>
    %14 = arith.truncf %11 : vector<64x256xf32> to vector<64x256xbf16>
    %cst_10 = arith.constant dense<0.000000e+00> : vector<64x16xf32>
    %15 = tpu.matmul %14, %3, %cst_10 {dimension_numbers = #tpu.dot_dimension_numbers<[1], [0], [0], [1], [0, 0, 1, 1], [], []>} : vector<64x256xbf16>, vector<256x16xbf16>, vector<64x16xf32> -> vector<64x16xf32>
    %16 = tpu.reciprocal %13 : vector<64x1xf32> -> vector<64x1xf32>
    %17 = vector.broadcast %16 : vector<64x1xf32> to vector<64x16xf32>
    %18 = arith.mulf %15, %17 : vector<64x16xf32>
    %c0_11 = arith.constant 0 : index
    %c0_12 = arith.constant 0 : index
    %19 = vector.load %arg7[%c0_11, %c0_12] : memref<64x128xf32, #tpu.memory_space<vmem>>, vector<64x16xf32>
    tpu.vector_store %arg7[%c0_11, %c0_12], %18 {strides = array<i32>} : memref<64x128xf32, #tpu.memory_space<vmem>>, vector<64x16xf32>,
    %c0_13 = arith.constant 0 : index
    %c0_14 = arith.constant 0 : index
    %c16 = arith.constant 16 : index
    %20 = vector.load %arg2[%c0_13, %c0_14, %c16] : memref<1x64x128xbf16, #tpu.memory_space<vmem>>, vector<1x64x16xbf16>
    %21 = vector.shape_cast %20 : vector<1x64x16xbf16> to vector<64x16xbf16>
    %cst_15 = arith.constant dense<0.000000e+00> : vector<64x256xf32>
    %22 = tpu.matmul %21, %1, %cst_15 {dimension_numbers = #tpu.dot_dimension_numbers<[1], [0], [0], [1], [0, 0, 1, 1], [], []>} : vector<64x16xbf16>, vector<16x256xbf16>, vector<64x256xf32> -> vector<64x256xf32>
    %cst_16 = arith.constant dense<0xFF800000> : vector<64xf32>
    %23 = vector.multi_reduction <maximumf>, %22, %cst_16 [1] : vector<64x256xf32> to vector<64xf32>
    %24 = vector.shape_cast %23 : vector<64xf32> to vector<64x1xf32>
    %25 = vector.broadcast %24 : vector<64x1xf32> to vector<64x256xf32>
    %26 = arith.subf %22, %25 : vector<64x256xf32>
    %27 = math.exp %26 : vector<64x256xf32>
    %cst_17 = arith.constant dense<0.000000e+00> : vector<64xf32>
    %28 = vector.multi_reduction <add>, %27, %cst_17 [1] : vector<64x256xf32> to vector<64xf32>
    %29 = vector.shape_cast %28 : vector<64xf32> to vector<64x1xf32>
    %30 = arith.truncf %27 : vector<64x256xf32> to vector<64x256xbf16>
    %cst_18 = arith.constant dense<0.000000e+00> : vector<64x16xf32>
    %31 = tpu.matmul %30, %3, %cst_18 {dimension_numbers = #tpu.dot_dimension_numbers<[1], [0], [0], [1], [0, 0, 1, 1], [], []>} : vector<64x256xbf16>, vector<256x16xbf16>, vector<64x16xf32> -> vector<64x16xf32>
    %32 = tpu.reciprocal %29 : vector<64x1xf32> -> vector<64x1xf32>
    %33 = vector.broadcast %32 : vector<64x1xf32> to vector<64x16xf32>
    %34 = arith.mulf %31, %33 : vector<64x16xf32>
    %c0_19 = arith.constant 0 : index
    %c16_20 = arith.constant 16 : index
    %35 = vector.load %arg7[%c0_19, %c16_20] : memref<64x128xf32, #tpu.memory_space<vmem>>, vector<64x16xf32>
    tpu.vector_store %arg7[%c0_19, %c16_20], %34 {strides = array<i32>} : memref<64x128xf32, #tpu.memory_space<vmem>>, vector<64x16xf32>,
    %c0_21 = arith.constant 0 : index
    %c0_22 = arith.constant 0 : index
    %c32 = arith.constant 32 : index
    %36 = vector.load %arg2[%c0_21, %c0_22, %c32] : memref<1x64x128xbf16, #tpu.memory_space<vmem>>, vector<1x64x16xbf16>
    %37 = vector.shape_cast %36 : vector<1x64x16xbf16> to vector<64x16xbf16>
    %cst_23 = arith.constant dense<0.000000e+00> : vector<64x256xf32>
    %38 = tpu.matmul %37, %1, %cst_23 {dimension_numbers = #tpu.dot_dimension_numbers<[1], [0], [0], [1], [0, 0, 1, 1], [], []>} : vector<64x16xbf16>, vector<16x256xbf16>, vector<64x256xf32> -> vector<64x256xf32>
    %cst_24 = arith.constant dense<0xFF800000> : vector<64xf32>
    %39 = vector.multi_reduction <maximumf>, %38, %cst_24 [1] : vector<64x256xf32> to vector<64xf32>
    %40 = vector.shape_cast %39 : vector<64xf32> to vector<64x1xf32>
    %41 = vector.broadcast %40 : vector<64x1xf32> to vector<64x256xf32>
    %42 = arith.subf %38, %41 : vector<64x256xf32>
    %43 = math.exp %42 : vector<64x256xf32>
    %cst_25 = arith.constant dense<0.000000e+00> : vector<64xf32>
    %44 = vector.multi_reduction <add>, %43, %cst_25 [1] : vector<64x256xf32> to vector<64xf32>
    %45 = vector.shape_cast %44 : vector<64xf32> to vector<64x1xf32>
    %46 = arith.truncf %43 : vector<64x256xf32> to vector<64x256xbf16>
    %cst_26 = arith.constant dense<0.000000e+00> : vector<64x16xf32>
    %47 = tpu.matmul %46, %3, %cst_26 {dimension_numbers = #tpu.dot_dimension_numbers<[1], [0], [0], [1], [0, 0, 1, 1], [], []>} : vector<64x256xbf16>, vector<256x16xbf16>, vector<64x16xf32> -> vector<64x16xf32>
    %48 = tpu.reciprocal %45 : vector<64x1xf32> -> vector<64x1xf32>
    %49 = vector.broadcast %48 : vector<64x1xf32> to vector<64x16xf32>
    %50 = arith.mulf %47, %49 : vector<64x16xf32>
    %c0_27 = arith.constant 0 : index
    %c32_28 = arith.constant 32 : index
    %51 = vector.load %arg7[%c0_27, %c32_28] : memref<64x128xf32, #tpu.memory_space<vmem>>, vector<64x16xf32>
    tpu.vector_store %arg7[%c0_27, %c32_28], %50 {strides = array<i32>} : memref<64x128xf32, #tpu.memory_space<vmem>>, vector<64x16xf32>,
    %c0_29 = arith.constant 0 : index
    %c0_30 = arith.constant 0 : index
    %c48 = arith.constant 48 : index
    %52 = vector.load %arg2[%c0_29, %c0_30, %c48] : memref<1x64x128xbf16, #tpu.memory_space<vmem>>, vector<1x64x16xbf16>
    %53 = vector.shape_cast %52 : vector<1x64x16xbf16> to vector<64x16xbf16>
    %cst_31 = arith.constant dense<0.000000e+00> : vector<64x256xf32>
    %54 = tpu.matmul %53, %1, %cst_31 {dimension_numbers = #tpu.dot_dimension_numbers<[1], [0], [0], [1], [0, 0, 1, 1], [], []>} : vector<64x16xbf16>, vector<16x256xbf16>, vector<64x256xf32> -> vector<64x256xf32>
    %cst_32 = arith.constant dense<0xFF800000> : vector<64xf32>
    %55 = vector.multi_reduction <maximumf>, %54, %cst_32 [1] : vector<64x256xf32> to vector<64xf32>
    %56 = vector.shape_cast %55 : vector<64xf32> to vector<64x1xf32>
    %57 = vector.broadcast %56 : vector<64x1xf32> to vector<64x256xf32>
    %58 = arith.subf %54, %57 : vector<64x256xf32>
    %59 = math.exp %58 : vector<64x256xf32>
    %cst_33 = arith.constant dense<0.000000e+00> : vector<64xf32>
    %60 = vector.multi_reduction <add>, %59, %cst_33 [1] : vector<64x256xf32> to vector<64xf32>
    %61 = vector.shape_cast %60 : vector<64xf32> to vector<64x1xf32>
    %62 = arith.truncf %59 : vector<64x256xf32> to vector<64x256xbf16>
    %cst_34 = arith.constant dense<0.000000e+00> : vector<64x16xf32>
    %63 = tpu.matmul %62, %3, %cst_34 {dimension_numbers = #tpu.dot_dimension_numbers<[1], [0], [0], [1], [0, 0, 1, 1], [], []>} : vector<64x256xbf16>, vector<256x16xbf16>, vector<64x16xf32> -> vector<64x16xf32>
    %64 = tpu.reciprocal %61 : vector<64x1xf32> -> vector<64x1xf32>
    %65 = vector.broadcast %64 : vector<64x1xf32> to vector<64x16xf32>
    %66 = arith.mulf %63, %65 : vector<64x16xf32>
    %c0_35 = arith.constant 0 : index
    %c48_36 = arith.constant 48 : index
    %67 = vector.load %arg7[%c0_35, %c48_36] : memref<64x128xf32, #tpu.memory_space<vmem>>, vector<64x16xf32>
    tpu.vector_store %arg7[%c0_35, %c48_36], %66 {strides = array<i32>} : memref<64x128xf32, #tpu.memory_space<vmem>>, vector<64x16xf32>,
    %c0_37 = arith.constant 0 : index
    %c0_38 = arith.constant 0 : index
    %c64 = arith.constant 64 : index
    %68 = vector.load %arg2[%c0_37, %c0_38, %c64] : memref<1x64x128xbf16, #tpu.memory_space<vmem>>, vector<1x64x16xbf16>
    %69 = vector.shape_cast %68 : vector<1x64x16xbf16> to vector<64x16xbf16>
    %cst_39 = arith.constant dense<0.000000e+00> : vector<64x256xf32>
    %70 = tpu.matmul %69, %1, %cst_39 {dimension_numbers = #tpu.dot_dimension_numbers<[1], [0], [0], [1], [0, 0, 1, 1], [], []>} : vector<64x16xbf16>, vector<16x256xbf16>, vector<64x256xf32> -> vector<64x256xf32>
    %cst_40 = arith.constant dense<0xFF800000> : vector<64xf32>
    %71 = vector.multi_reduction <maximumf>, %70, %cst_40 [1] : vector<64x256xf32> to vector<64xf32>
    %72 = vector.shape_cast %71 : vector<64xf32> to vector<64x1xf32>
    %73 = vector.broadcast %72 : vector<64x1xf32> to vector<64x256xf32>
    %74 = arith.subf %70, %73 : vector<64x256xf32>
    %75 = math.exp %74 : vector<64x256xf32>
    %cst_41 = arith.constant dense<0.000000e+00> : vector<64xf32>
    %76 = vector.multi_reduction <add>, %75, %cst_41 [1] : vector<64x256xf32> to vector<64xf32>
    %77 = vector.shape_cast %76 : vector<64xf32> to vector<64x1xf32>
    %78 = arith.truncf %75 : vector<64x256xf32> to vector<64x256xbf16>
    %cst_42 = arith.constant dense<0.000000e+00> : vector<64x16xf32>
    %79 = tpu.matmul %78, %3, %cst_42 {dimension_numbers = #tpu.dot_dimension_numbers<[1], [0], [0], [1], [0, 0, 1, 1], [], []>} : vector<64x256xbf16>, vector<256x16xbf16>, vector<64x16xf32> -> vector<64x16xf32>
    %80 = tpu.reciprocal %77 : vector<64x1xf32> -> vector<64x1xf32>
    %81 = vector.broadcast %80 : vector<64x1xf32> to vector<64x16xf32>
    %82 = arith.mulf %79, %81 : vector<64x16xf32>
    %c0_43 = arith.constant 0 : index
    %c64_44 = arith.constant 64 : index
    %83 = vector.load %arg7[%c0_43, %c64_44] : memref<64x128xf32, #tpu.memory_space<vmem>>, vector<64x16xf32>
    tpu.vector_store %arg7[%c0_43, %c64_44], %82 {strides = array<i32>} : memref<64x128xf32, #tpu.memory_space<vmem>>, vector<64x16xf32>,
    %c0_45 = arith.constant 0 : index
    %c0_46 = arith.constant 0 : index
    %c80 = arith.constant 80 : index
    %84 = vector.load %arg2[%c0_45, %c0_46, %c80] : memref<1x64x128xbf16, #tpu.memory_space<vmem>>, vector<1x64x16xbf16>
    %85 = vector.shape_cast %84 : vector<1x64x16xbf16> to vector<64x16xbf16>
    %cst_47 = arith.constant dense<0.000000e+00> : vector<64x256xf32>
    %86 = tpu.matmul %85, %1, %cst_47 {dimension_numbers = #tpu.dot_dimension_numbers<[1], [0], [0], [1], [0, 0, 1, 1], [], []>} : vector<64x16xbf16>, vector<16x256xbf16>, vector<64x256xf32> -> vector<64x256xf32>
    %cst_48 = arith.constant dense<0xFF800000> : vector<64xf32>
    %87 = vector.multi_reduction <maximumf>, %86, %cst_48 [1] : vector<64x256xf32> to vector<64xf32>
    %88 = vector.shape_cast %87 : vector<64xf32> to vector<64x1xf32>
    %89 = vector.broadcast %88 : vector<64x1xf32> to vector<64x256xf32>
    %90 = arith.subf %86, %89 : vector<64x256xf32>
    %91 = math.exp %90 : vector<64x256xf32>
    %cst_49 = arith.constant dense<0.000000e+00> : vector<64xf32>
    %92 = vector.multi_reduction <add>, %91, %cst_49 [1] : vector<64x256xf32> to vector<64xf32>
    %93 = vector.shape_cast %92 : vector<64xf32> to vector<64x1xf32>
    %94 = arith.truncf %91 : vector<64x256xf32> to vector<64x256xbf16>
    %cst_50 = arith.constant dense<0.000000e+00> : vector<64x16xf32>
    %95 = tpu.matmul %94, %3, %cst_50 {dimension_numbers = #tpu.dot_dimension_numbers<[1], [0], [0], [1], [0, 0, 1, 1], [], []>} : vector<64x256xbf16>, vector<256x16xbf16>, vector<64x16xf32> -> vector<64x16xf32>
    %96 = tpu.reciprocal %93 : vector<64x1xf32> -> vector<64x1xf32>
    %97 = vector.broadcast %96 : vector<64x1xf32> to vector<64x16xf32>
    %98 = arith.mulf %95, %97 : vector<64x16xf32>
    %c0_51 = arith.constant 0 : index
    %c80_52 = arith.constant 80 : index
    %99 = vector.load %arg7[%c0_51, %c80_52] : memref<64x128xf32, #tpu.memory_space<vmem>>, vector<64x16xf32>
    tpu.vector_store %arg7[%c0_51, %c80_52], %98 {strides = array<i32>} : memref<64x128xf32, #tpu.memory_space<vmem>>, vector<64x16xf32>,
    %c0_53 = arith.constant 0 : index
    %c0_54 = arith.constant 0 : index
    %c96 = arith.constant 96 : index
    %100 = vector.load %arg2[%c0_53, %c0_54, %c96] : memref<1x64x128xbf16, #tpu.memory_space<vmem>>, vector<1x64x16xbf16>
    %101 = vector.shape_cast %100 : vector<1x64x16xbf16> to vector<64x16xbf16>
    %cst_55 = arith.constant dense<0.000000e+00> : vector<64x256xf32>
    %102 = tpu.matmul %101, %1, %cst_55 {dimension_numbers = #tpu.dot_dimension_numbers<[1], [0], [0], [1], [0, 0, 1, 1], [], []>} : vector<64x16xbf16>, vector<16x256xbf16>, vector<64x256xf32> -> vector<64x256xf32>
    %cst_56 = arith.constant dense<0xFF800000> : vector<64xf32>
    %103 = vector.multi_reduction <maximumf>, %102, %cst_56 [1] : vector<64x256xf32> to vector<64xf32>
    %104 = vector.shape_cast %103 : vector<64xf32> to vector<64x1xf32>
    %105 = vector.broadcast %104 : vector<64x1xf32> to vector<64x256xf32>
    %106 = arith.subf %102, %105 : vector<64x256xf32>
    %107 = math.exp %106 : vector<64x256xf32>
    %cst_57 = arith.constant dense<0.000000e+00> : vector<64xf32>
    %108 = vector.multi_reduction <add>, %107, %cst_57 [1] : vector<64x256xf32> to vector<64xf32>
    %109 = vector.shape_cast %108 : vector<64xf32> to vector<64x1xf32>
    %110 = arith.truncf %107 : vector<64x256xf32> to vector<64x256xbf16>
    %cst_58 = arith.constant dense<0.000000e+00> : vector<64x16xf32>
    %111 = tpu.matmul %110, %3, %cst_58 {dimension_numbers = #tpu.dot_dimension_numbers<[1], [0], [0], [1], [0, 0, 1, 1], [], []>} : vector<64x256xbf16>, vector<256x16xbf16>, vector<64x16xf32> -> vector<64x16xf32>
    %112 = tpu.reciprocal %109 : vector<64x1xf32> -> vector<64x1xf32>
    %113 = vector.broadcast %112 : vector<64x1xf32> to vector<64x16xf32>
    %114 = arith.mulf %111, %113 : vector<64x16xf32>
    %c0_59 = arith.constant 0 : index
    %c96_60 = arith.constant 96 : index
    %115 = vector.load %arg7[%c0_59, %c96_60] : memref<64x128xf32, #tpu.memory_space<vmem>>, vector<64x16xf32>
    tpu.vector_store %arg7[%c0_59, %c96_60], %114 {strides = array<i32>} : memref<64x128xf32, #tpu.memory_space<vmem>>, vector<64x16xf32>,
    %c0_61 = arith.constant 0 : index
    %c0_62 = arith.constant 0 : index
    %c112 = arith.constant 112 : index
    %116 = vector.load %arg2[%c0_61, %c0_62, %c112] : memref<1x64x128xbf16, #tpu.memory_space<vmem>>, vector<1x64x16xbf16>
    %117 = vector.shape_cast %116 : vector<1x64x16xbf16> to vector<64x16xbf16>
    %cst_63 = arith.constant dense<0.000000e+00> : vector<64x256xf32>
    %118 = tpu.matmul %117, %1, %cst_63 {dimension_numbers = #tpu.dot_dimension_numbers<[1], [0], [0], [1], [0, 0, 1, 1], [], []>} : vector<64x16xbf16>, vector<16x256xbf16>, vector<64x256xf32> -> vector<64x256xf32>
    %cst_64 = arith.constant dense<0xFF800000> : vector<64xf32>
    %119 = vector.multi_reduction <maximumf>, %118, %cst_64 [1] : vector<64x256xf32> to vector<64xf32>
    %120 = vector.shape_cast %119 : vector<64xf32> to vector<64x1xf32>
    %121 = vector.broadcast %120 : vector<64x1xf32> to vector<64x256xf32>
    %122 = arith.subf %118, %121 : vector<64x256xf32>
    %123 = math.exp %122 : vector<64x256xf32>
    %cst_65 = arith.constant dense<0.000000e+00> : vector<64xf32>
    %124 = vector.multi_reduction <add>, %123, %cst_65 [1] : vector<64x256xf32> to vector<64xf32>
    %125 = vector.shape_cast %124 : vector<64xf32> to vector<64x1xf32>
    %126 = arith.truncf %123 : vector<64x256xf32> to vector<64x256xbf16>
    %cst_66 = arith.constant dense<0.000000e+00> : vector<64x16xf32>
    %127 = tpu.matmul %126, %3, %cst_66 {dimension_numbers = #tpu.dot_dimension_numbers<[1], [0], [0], [1], [0, 0, 1, 1], [], []>} : vector<64x256xbf16>, vector<256x16xbf16>, vector<64x16xf32> -> vector<64x16xf32>
    %128 = tpu.reciprocal %125 : vector<64x1xf32> -> vector<64x1xf32>
    %129 = vector.broadcast %128 : vector<64x1xf32> to vector<64x16xf32>
    %130 = arith.mulf %127, %129 : vector<64x16xf32>
    %c0_67 = arith.constant 0 : index
    %c112_68 = arith.constant 112 : index
    %131 = vector.load %arg7[%c0_67, %c112_68] : memref<64x128xf32, #tpu.memory_space<vmem>>, vector<64x16xf32>
    tpu.vector_store %arg7[%c0_67, %c112_68], %130 {strides = array<i32>} : memref<64x128xf32, #tpu.memory_space<vmem>>, vector<64x16xf32>,
    %c0_69 = arith.constant 0 : index
    %c0_70 = arith.constant 0 : index
    %132 = vector.load %arg7[%c0_69, %c0_70] : memref<64x128xf32, #tpu.memory_space<vmem>>, vector<64x128xf32>
    %133 = arith.truncf %132 : vector<64x128xf32> to vector<64x128xbf16>
    %c0_71 = arith.constant 0 : index
    %c0_72 = arith.constant 0 : index
    %134 = vector.load %arg5[%c0_71, %c0_72] : memref<16x64xbf16, #tpu.memory_space<vmem>>, vector<16x64xbf16>
    %cst_73 = arith.constant dense<0.000000e+00> : vector<16x128xf32>
    %135 = tpu.matmul %134, %133, %cst_73 {dimension_numbers = #tpu.dot_dimension_numbers<[1], [0], [0], [1], [0, 0, 1, 1], [], []>} : vector<16x64xbf16>, vector<64x128xbf16>, vector<16x128xf32> -> vector<16x128xf32>
    %c0_74 = arith.constant 0 : index
    %c0_75 = arith.constant 0 : index
    %c0_76 = arith.constant 0 : index
    %136 = vector.load %arg6[%c0_74, %c0_75, %c0_76] : memref<1x16x128xf32, #tpu.memory_space<vmem>>, vector<1x16x128xf32>
    %137 = vector.shape_cast %136 : vector<1x16x128xf32> to vector<16x128xf32>
    %138 = vector.shape_cast %135 : vector<16x128xf32> to vector<1x16x128xf32>
    tpu.vector_store %arg6[%c0_74, %c0_75, %c0_76], %138 {strides = array<i32>} : memref<1x16x128xf32, #tpu.memory_space<vmem>>, vector<1x16x128xf32>,
    return
  }
  func.func @transform_0(%arg0: i32, %arg1: i32) -> (i32, i32, i32) {
    %c0_i32 = arith.constant 0 : i32
    %c0_i32_0 = arith.constant 0 : i32
    return %arg0, %c0_i32, %arg1 : i32, i32, i32
  }
  func.func @transform_1(%arg0: i32, %arg1: i32) -> (i32, i32, i32) {
    %c0_i32 = arith.constant 0 : i32
    %c0_i32_0 = arith.constant 0 : i32
    %c0_i32_1 = arith.constant 0 : i32
    return %arg0, %c0_i32, %c0_i32_0 : i32, i32, i32
  }
  func.func @transform_2(%arg0: i32, %arg1: i32) -> (i32, i32, i32) {
    %c0_i32 = arith.constant 0 : i32
    %c0_i32_0 = arith.constant 0 : i32
    %c0_i32_1 = arith.constant 0 : i32
    return %arg0, %c0_i32, %c0_i32_0 : i32, i32, i32
  }
  func.func @transform_3(%arg0: i32, %arg1: i32) -> (i32, i32) {
    %c0_i32 = arith.constant 0 : i32
    %c0_i32_0 = arith.constant 0 : i32
    %c0_i32_1 = arith.constant 0 : i32
    return %c0_i32, %c0_i32_0 : i32, i32
  }
  func.func @transform_4(%arg0: i32, %arg1: i32) -> (i32, i32, i32) {
    %c0_i32 = arith.constant 0 : i32
    %c0_i32_0 = arith.constant 0 : i32
    return %arg0, %c0_i32, %arg1 : i32, i32, i32
  }
}

</mosaic_0001>

<llo_original>
// kernel: _lambda_.2
$region0: #{_lambda_.2}
  #allocation0 [shape = 'u32[]', space=smem, size = 0x4, offset = 0x4, fixed_abs, tag = 'smem constant byte address 0x4 - core index']
  #allocation1 [shape = 'u32[144,128]{1,0:T(1,128)}', space=vmem, size = 0x12000, scoped, tag = 'internal scratch']
  %s0 = inlined_call_operand.vmem [shape: f32[2,16,256], index: 0, kind: input, shape index: {}]
  %s1 = inlined_call_operand.vmem [shape: bf16[96,16], index: 1, kind: input, shape index: {}]
  %s2 = inlined_call_operand.vmem [shape: bf16[2,64,256], index: 2, kind: output, shape index: {0}]
  %s3 = inlined_call_operand.vmem [shape: bf16[2,16,256], index: 3, kind: output, shape index: {1}]
  %s4 = inlined_call_operand.vmem [shape: bf16[2,16,256], index: 4, kind: output, shape index: {2}]
  %5 = xla_tuple %s2, %s3, %s4
  %s6 = sld [smem:[#allocation0]]
  $region57: #{_lambda_.2} parent=0
    _
  %s8 = ssub.s32 1, %s6
  %s9 = scalar_select 0, %s8, %s6
  loop: start=0, step=1, limit=4
  $region2: #{_lambda_.2} parent=0 // loop_pre_header
    _
  $region3: #{_lambda_.2} parent=0 // loop_header
    %s11 = sphi 0, %s15
    %p12 = scmp.ge.s32.totalorder %s11, 4
    %s18 = sphi 0, %s30
    %s19 = sphi 0, %s26
    %s20 = sphi 0, %s18
    %s21 = sphi 0, %s19
    %s22 = sphi 0, %s20
    %s23 = sphi 0, %s21
    %s35 = sphi 0, %s37
    %s38 = sphi 0, %s35
    %s39 = sphi 0, %s38
    %s55 = sphi 0, %s39
    %s59 = sphi 0, %s59
    %s61 = sphi 0, %s59
    %s62 = sphi 0, %s61
    %s76 = sphi 0, %s62
    %s84 = sphi 0, %s86
    %s87 = sphi 0, %s84
    %s88 = sphi 0, %s87
    %s104 = sphi 0, %s88
    %s112 = sphi 0, %s114
    %s115 = sphi 0, %s112
    %s116 = sphi 0, %s115
    %s132 = sphi 0, %s116
    %s140 = sphi 0, %s142
    %s143 = sphi 0, %s140
    %s144 = sphi 0, %s143
    %s160 = sphi 0, %s144
  $region4: #{_lambda_.2} parent=0 // loop_header_branch
    %14 = sbr.rel (%p12) target = $region8
  $region5: #{_lambda_.2} parent=0 // loop_body
    %s16 = ssub.s32 %s11, 1
    %s17 = ssub.s32 %s11, 2
    %s24 = sadd.s32 1, %s19
    %p25 = scmp.ge.s32.totalorder %s24, 1
    %s26 = scalar_select %p25, 0, %s24
    %s27 = sadd.s32 1, %s18
    %s28 = scalar_select %p25, %s27, %s18
    %p29 = scmp.ge.s32.totalorder %s28, 2
    %s30 = scalar_select %p29, 0, %s28
    %s31 = ssub.s32 %s18, %s30
    %s32 = ssub.s32 %s19, %s26
    %s33 = sor.u32 %s31, %s32
    %p34 = scmp.eq.s32.totalorder %s33, 0
    %s36 = sadd.s32 %s35, 1
    %s37 = scalar_select %p34, %s35, %s36
    %p40 = pneg %p34
    %p41 = scmp.eq.s32.totalorder %s11, 1
    %p42 = por %p40, %p41
    %p43 = scmp.ne.s32.totalorder %s35, %s38
    %p44 = scmp.eq.s32.totalorder %s11, 0
    %p45 = por %p43, %p44
    %p46 = scmp.ne.s32.totalorder %s35, %s38
    %p47 = scmp.eq.s32.totalorder %s16, 1
    %p48 = por %p46, %p47
    %p49 = scmp.ne.s32.totalorder %s38, %s39
    %p50 = scmp.eq.s32.totalorder %s16, 0
    %p51 = por %p49, %p50
    %p52 = scmp.ne.s32.totalorder %s38, %s39
    %p53 = scmp.eq.s32.totalorder %s17, 1
    %p54 = por %p52, %p53
    %p56 = scmp.ne.s32.totalorder %s39, %s55
    %p57 = scmp.eq.s32.totalorder %s17, 0
    %p58 = por %p56, %p57
    %s60 = sadd.s32 %s59, 1
    %p63 = scmp.eq.s32.totalorder %s11, 1
    %p64 = scmp.ne.s32.totalorder %s59, %s61
    %p65 = scmp.eq.s32.totalorder %s11, 0
    %p66 = por %p64, %p65
    %p67 = scmp.ne.s32.totalorder %s59, %s61
    %p68 = scmp.eq.s32.totalorder %s16, 1
    %p69 = por %p67, %p68
    %p70 = scmp.ne.s32.totalorder %s61, %s62
    %p71 = scmp.eq.s32.totalorder %s16, 0
    %p72 = por %p70, %p71
    %p73 = scmp.ne.s32.totalorder %s61, %s62
    %p74 = scmp.eq.s32.totalorder %s17, 1
    %p75 = por %p73, %p74
    %p77 = scmp.ne.s32.totalorder %s62, %s76
    %p78 = scmp.eq.s32.totalorder %s17, 0
    %p79 = por %p77, %p78
    %s80 = ssub.s32 %s18, %s30
    %s81 = ssub.s32 %s19, %s26
    %s82 = sor.u32 %s80, %s81
    %p83 = scmp.eq.s32.totalorder %s82, 0
    %s85 = sadd.s32 %s84, 1
    %s86 = scalar_select %p83, %s84, %s85
    %p89 = pneg %p83
    %p90 = scmp.eq.s32.totalorder %s11, 1
    %p91 = por %p89, %p90
    %p92 = scmp.ne.s32.totalorder %s84, %s87
    %p93 = scmp.eq.s32.totalorder %s11, 0
    %p94 = por %p92, %p93
    %p95 = scmp.ne.s32.totalorder %s84, %s87
    %p96 = scmp.eq.s32.totalorder %s16, 1
    %p97 = por %p95, %p96
    %p98 = scmp.ne.s32.totalorder %s87, %s88
    %p99 = scmp.eq.s32.totalorder %s16, 0
    %p100 = por %p98, %p99
    %p101 = scmp.ne.s32.totalorder %s87, %s88
    %p102 = scmp.eq.s32.totalorder %s17, 1
    %p103 = por %p101, %p102
    %p105 = scmp.ne.s32.totalorder %s88, %s104
    %p106 = scmp.eq.s32.totalorder %s17, 0
    %p107 = por %p105, %p106
    %s108 = ssub.s32 %s18, %s30
    %s109 = ssub.s32 %s19, %s26
    %s110 = sor.u32 %s108, %s109
    %p111 = scmp.eq.s32.totalorder %s110, 0
    %s113 = sadd.s32 %s112, 1
    %s114 = scalar_select %p111, %s112, %s113
    %p117 = pneg %p111
    %p118 = scmp.eq.s32.totalorder %s11, 1
    %p119 = por %p117, %p118
    %p120 = scmp.ne.s32.totalorder %s112, %s115
    %p121 = scmp.eq.s32.totalorder %s11, 0
    %p122 = por %p120, %p121
    %p123 = scmp.ne.s32.totalorder %s112, %s115
    %p124 = scmp.eq.s32.totalorder %s16, 1
    %p125 = por %p123, %p124
    %p126 = scmp.ne.s32.totalorder %s115, %s116
    %p127 = scmp.eq.s32.totalorder %s16, 0
    %p128 = por %p126, %p127
    %p129 = scmp.ne.s32.totalorder %s115, %s116
    %p130 = scmp.eq.s32.totalorder %s17, 1
    %p131 = por %p129, %p130
    %p133 = scmp.ne.s32.totalorder %s116, %s132
    %p134 = scmp.eq.s32.totalorder %s17, 0
    %p135 = por %p133, %p134
    %s136 = ssub.s32 %s18, %s30
    %s137 = ssub.s32 %s19, %s26
    %s138 = sor.u32 %s136, %s137
    %p139 = scmp.eq.s32.totalorder %s138, 0
    %s141 = sadd.s32 %s140, 1
    %s142 = scalar_select %p139, %s140, %s141
    %p145 = pneg %p139
    %p146 = scmp.eq.s32.totalorder %s11, 1
    %p147 = por %p145, %p146
    %p148 = scmp.ne.s32.totalorder %s140, %s143
    %p149 = scmp.eq.s32.totalorder %s11, 0
    %p150 = por %p148, %p149
    %p151 = scmp.ne.s32.totalorder %s140, %s143
    %p152 = scmp.eq.s32.totalorder %s16, 1
    %p153 = por %p151, %p152
    %p154 = scmp.ne.s32.totalorder %s143, %s144
    %p155 = scmp.eq.s32.totalorder %s16, 0
    %p156 = por %p154, %p155
    %p157 = scmp.ne.s32.totalorder %s143, %s144
    %p158 = scmp.eq.s32.totalorder %s17, 1
    %p159 = por %p157, %p158
    %p161 = scmp.ne.s32.totalorder %s144, %s160
    %p162 = scmp.eq.s32.totalorder %s17, 0
    %p163 = por %p161, %p162
    %p164 = scmp.le.s32.totalorder 1, %s11
    %p165 = scmp.lt.s32.totalorder %s11, 3
    %p166 = pnand %p164, %p165
    %p167 = pneg %p166
    // Predicated region
    $region9: #{_lambda_.2} parent=5 // pred_check
      _
    $region10: #{_lambda_.2} parent=5 // pred_check_branch
      %169 = sbr.rel (%p166) target = $region12
    $region11: #{_lambda_.2} parent=5 // pred_region
      %s170 = ssub.s32 %s11, 1
      // Predicated region
      $region13: #{_lambda_.2} parent=11 // pred_check
        %p171 = pneg %p72
      $region14: #{_lambda_.2} parent=11 // pred_check_branch
        %173 = sbr.rel (%p171) target = $region16
      $region15: #{_lambda_.2} parent=11 // pred_region
        _
      $region16: #{_lambda_.2} parent=11 // pred_fallthru
        _
    $region12: #{_lambda_.2} parent=5 // pred_fallthru
      _
    %p174 = scmp.lt.s32.totalorder %s11, 2
    // Predicated region
    $region17: #{_lambda_.2} parent=5 // pred_check
      %p175 = pneg %p174
    $region18: #{_lambda_.2} parent=5 // pred_check_branch
      %177 = sbr.rel (%p175) target = $region20
    $region19: #{_lambda_.2} parent=5 // pred_region
      // Predicated region
      $region21: #{_lambda_.2} parent=19 // pred_check
        %p178 = pneg %p45
      $region22: #{_lambda_.2} parent=19 // pred_check_branch
        %180 = sbr.rel (%p178) target = $region24
      $region23: #{_lambda_.2} parent=19 // pred_region
        %s181 = smul.u32 2, %s19
        %p182 = scmp.lt.s32.totalorder %s18, 1
        %s183 = scalar_select %p182, %s18, 1
        %p184 = scmp.lt.s32.totalorder %s181, 1
        %s185 = scalar_select %p184, %s181, 1
        %s186 = smul.addr %s183, 4
        %s187 = sadd.s32 %s185, %s186
        %s188 = smul.addr %s187, 8
        %s189 = scalar_lea.vmem %s0, %s188
        %s190 = smul.u32 2, %s19
      $region24: #{_lambda_.2} parent=19 // pred_fallthru
        _
    $region20: #{_lambda_.2} parent=5 // pred_fallthru
      _
    %p191 = scmp.le.s32.totalorder 1, %s11
    %p192 = scmp.lt.s32.totalorder %s11, 3
    %p193 = pnand %p191, %p192
    %p194 = pneg %p193
    // Predicated region
    $region25: #{_lambda_.2} parent=5 // pred_check
      _
    $region26: #{_lambda_.2} parent=5 // pred_check_branch
      %196 = sbr.rel (%p193) target = $region28
    $region27: #{_lambda_.2} parent=5 // pred_region
      %s197 = ssub.s32 %s11, 1
      %s198 = smul.u32 2, %s21
      %p199 = scmp.lt.s32.totalorder %s20, 1
      %s200 = scalar_select %p199, %s20, 1
      %p201 = scmp.lt.s32.totalorder %s198, 1
      %s202 = scalar_select %p201, %s198, 1
      %s203 = smul.addr %s200, 4
      %s204 = sadd.s32 %s202, %s203
      %s205 = smul.addr %s204, 8
      %s206 = scalar_lea.vmem %s0, %s205
      %p207 = pneg %p51
      %p208 = pneg %p48
      %p209 = pneg %p72
      %p210 = pneg %p69
      %p211 = pneg %p100
      %p212 = pneg %p97
      %s213 = smul.u32 2, %s21
      %p214 = scmp.lt.s32.totalorder %s20, 1
      %s215 = scalar_select %p214, %s20, 1
      %p216 = scmp.lt.s32.totalorder %s213, 1
      %s217 = scalar_select %p216, %s213, 1
      %s218 = smul.addr %s215, 16
      %s219 = sadd.s32 %s217, %s218
      %s220 = smul.addr %s219, 4
      %s221 = scalar_lea.vmem %s2, %s220
      %p222 = pneg %p128
      %p223 = pneg %p125
      %s224 = smul.u32 2, %s21
      %p225 = scmp.lt.s32.totalorder %s20, 1
      %s226 = scalar_select %p225, %s20, 1
      %p227 = scmp.lt.s32.totalorder %s224, 1
      %s228 = scalar_select %p227, %s224, 1
      %s229 = smul.addr %s226, 4
      %s230 = sadd.s32 %s228, %s229
      %s231 = smul.addr %s230, 4
      %s232 = scalar_lea.vmem %s3, %s231
      %p233 = pneg %p156
      %p234 = pneg %p153
      %s235 = smul.u32 2, %s21
      %p236 = scmp.lt.s32.totalorder %s20, 1
      %s237 = scalar_select %p236, %s20, 1
      %p238 = scmp.lt.s32.totalorder %s235, 1
      %s239 = scalar_select %p238, %s235, 1
      %s240 = smul.addr %s237, 4
      %s241 = sadd.s32 %s239, %s240
      %s242 = smul.addr %s241, 4
      %s243 = scalar_lea.vmem %s4, %s242
      %s244 = smul.u32 2, %s21
      %p245 = scmp.lt.s32.totalorder %s20, 1
      %s246 = scalar_select %p245, %s20, 1
      %p247 = scmp.lt.s32.totalorder %s244, 1
      %s248 = scalar_select %p247, %s244, 1
      %s249 = smul.addr %s246, 4
      %s250 = sadd.s32 %s248, %s249
      %s251 = smul.addr %s250, 8
      %s252 = scalar_lea.vmem %s0, %s251
      %s253 = smul.u32 2, %s21
      %s254 = smul.u32 2, %s21
      %p255 = scmp.lt.s32.totalorder %s20, 1
      %s256 = scalar_select %p255, %s20, 1
      %p257 = scmp.lt.s32.totalorder %s254, 1
      %s258 = scalar_select %p257, %s254, 1
      %s259 = smul.addr %s256, 16
      %s260 = sadd.s32 %s258, %s259
      %s261 = smul.addr %s260, 4
      %s262 = scalar_lea.vmem %s2, %s261
      %s263 = smul.u32 2, %s21
      %s264 = smul.u32 2, %s21
      %p265 = scmp.lt.s32.totalorder %s20, 1
      %s266 = scalar_select %p265, %s20, 1
      %p267 = scmp.lt.s32.totalorder %s264, 1
      %s268 = scalar_select %p267, %s264, 1
      %s269 = smul.addr %s266, 4
      %s270 = sadd.s32 %s268, %s269
      %s271 = smul.addr %s270, 4
      %s272 = scalar_lea.vmem %s3, %s271
      %s273 = smul.u32 2, %s21
      %s274 = smul.u32 2, %s21
      %p275 = scmp.lt.s32.totalorder %s20, 1
      %s276 = scalar_select %p275, %s20, 1
      %p277 = scmp.lt.s32.totalorder %s274, 1
      %s278 = scalar_select %p277, %s274, 1
      %s279 = smul.addr %s276, 4
      %s280 = sadd.s32 %s278, %s279
      %s281 = smul.addr %s280, 4
      %s282 = scalar_lea.vmem %s4, %s281
      %s283 = smul.u32 2, %s21
      %v285 = vld [vmem:[%s252] sm:$0xff]
      %v286 = vld [vmem:[%s252 + $0x8] sm:$0xff]
      %v287 = vld [vmem:[%s252 + $0x10] sm:$0xff]
      %v288 = vld [vmem:[%s252 + $0x18] sm:$0xff]
      %v289 = vpack.c.bf16 %v287, %v285
      %v290 = vpack.c.bf16 %v288, %v286
      %v291 = vld [vmem:[%s1] sm:$0xf]
      %v292 = vld [vmem:[%s1 + $0x4] sm:$0xf]
      %v293 = vld [vmem:[%s1 + $0x8] sm:$0xf]
      %v294 = vld [vmem:[%s1 + $0xc] sm:$0xf]
      %v295 = vld [vmem:[%s1 + $0x10] sm:$0xf]
      %v296 = vld [vmem:[%s1 + $0x14] sm:$0xf]
      %v297 = vld [vmem:[%s1 + $0x18] sm:$0xf]
      %v298 = vld [vmem:[%s1 + $0x1c] sm:$0xf]
      %v299 = vld [vmem:[%s1 + $0x20] sm:$0xf]
      %v300 = vld [vmem:[%s1 + $0x24] sm:$0xf]
      %v301 = vld [vmem:[%s1 + $0x28] sm:$0xf]
      %v302 = vld [vmem:[%s1 + $0x2c] sm:$0xf]
      %v315 = vunpack.c.l.b16 %v291
      %v316 = vunpack.c.l.b16 %v292
      %v317 = vunpack.c.l.b16 %v293
      %v318 = vunpack.c.l.b16 %v294
      %v319 = vunpack.c.l.b16 %v295
      %v320 = vunpack.c.l.b16 %v296
      %v321 = vunpack.c.l.b16 %v297
      %v322 = vunpack.c.l.b16 %v298
      %v323 = vunpack.c.l.b16 %v299
      %v324 = vunpack.c.l.b16 %v300
      %v325 = vunpack.c.l.b16 %v301
      %v326 = vunpack.c.l.b16 %v302
      %v327 = vpack.c.b16 %v316, %v315
      %v328 = vpack.c.b16 %v318, %v317
      %v329 = vpack.c.b16 %v320, %v319
      %v330 = vpack.c.b16 %v322, %v321
      %v331 = vpack.c.b16 %v324, %v323
      %v332 = vpack.c.b16 %v326, %v325
      %vm333 = vcmask 130048
      %v335 = vsel %vm333, %v327, 0
      %v338 = vsel %vm333, %v328, 0
      %v341 = vsel %vm333, %v329, 0
      %v344 = vsel %vm333, %v330, 0
      %v347 = vsel %vm333, %v331, 0
      %v350 = vsel %vm333, %v332, 0
      %352 = vmatprep.subr.bf16.mxu0 %v290
      %353 = vmatpush1.bf16.msra.mxu0 %v289
      %354 = vmatprep.subr.bf16.mxu0 0
      %355 = vmatpush1.bf16.msra.mxu0 0
      %356 = vmatprep.subr.bf16.mxu0 0
      %357 = vmatpush1.bf16.msra.mxu0 0
      %358 = vmatprep.subr.bf16.mxu0 0
      %359 = vmatpush1.bf16.msra.mxu0 0
      %360 = vmatprep.subr.bf16.mxu0 0
      %361 = vmatpush1.bf16.msra.mxu0 0
      %362 = vmatprep.subr.bf16.mxu0 0
      %363 = vmatpush1.bf16.msra.mxu0 0
      %364 = vmatprep.subr.bf16.mxu0 0
      %365 = vmatpush1.bf16.msra.mxu0 0
      %366 = vmatprep.subr.bf16.mxu0 0
      %367 = vmatpush1.bf16.msra.mxu0 0
      %368 = vmatprep.subr.bf16.mxu0 0
      %369 = vmatpush1.bf16.msra.mxu0 0
      %370 = vmatprep.subr.bf16.mxu0 0
      %371 = vmatpush1.bf16.msra.mxu0 0
      %372 = vmatprep.subr.bf16.mxu0 0
      %373 = vmatpush1.bf16.msra.mxu0 0
      %374 = vmatprep.subr.bf16.mxu0 0
      %375 = vmatpush1.bf16.msra.mxu0 0
      %376 = vmatprep.subr.bf16.mxu0 0
      %377 = vmatpush1.bf16.msra.mxu0 0
      %378 = vmatprep.subr.bf16.mxu0 0
      %379 = vmatpush1.bf16.msra.mxu0 0
      %380 = vmatprep.subr.bf16.mxu0 0
      %381 = vmatpush1.bf16.msra.mxu0 0
      %382 = vmatprep.subr.bf16.mxu0 0
      %383 = vmatpush1.bf16.msra.mxu0 0
      %384 = vmatprep.mubr.bf16.mxu0 0
      %385 = vmatmul.mubr.bf16.gmra.mrb[0].mxu0 %v335
      %v386 = vpop.f32.mrb[0].mxu0
      %v387 = vadd.f32 0.0, %v386
      %v388 = vpop.f32.mrb[0].mxu0
      %v389 = vadd.f32 0.0, %v388
      %v390 = vpop.f32.mrb[0].mxu0
      %v391 = vadd.f32 0.0, %v390
      %v392 = vpop.f32.mrb[0].mxu0
      %v393 = vadd.f32 0.0, %v392
      %394 = vmatprep.mubr.bf16.mxu0 0
      %395 = vmatmul.mubr.bf16.gmra.mrb[0].mxu0 %v338
      %v396 = vpop.f32.mrb[0].mxu0
      %v397 = vadd.f32 0.0, %v396
      %v398 = vpop.f32.mrb[0].mxu0
      %v399 = vadd.f32 0.0, %v398
      %v400 = vpop.f32.mrb[0].mxu0
      %v401 = vadd.f32 0.0, %v400
      %v402 = vpop.f32.mrb[0].mxu0
      %v403 = vadd.f32 0.0, %v402
      %404 = vmatprep.mubr.bf16.mxu0 0
      %405 = vmatmul.mubr.bf16.gmra.mrb[0].mxu0 %v341
      %v406 = vpop.f32.mrb[0].mxu0
      %v407 = vadd.f32 0.0, %v406
      %v408 = vpop.f32.mrb[0].mxu0
      %v409 = vadd.f32 0.0, %v408
      %v410 = vpop.f32.mrb[0].mxu0
      %v411 = vadd.f32 0.0, %v410
      %v412 = vpop.f32.mrb[0].mxu0
      %v413 = vadd.f32 0.0, %v412
      %414 = vmatprep.mubr.bf16.mxu0 0
      %415 = vmatmul.mubr.bf16.gmra.mrb[0].mxu0 %v344
      %v416 = vpop.f32.mrb[0].mxu0
      %v417 = vadd.f32 0.0, %v416
      %v418 = vpop.f32.mrb[0].mxu0
      %v419 = vadd.f32 0.0, %v418
      %v420 = vpop.f32.mrb[0].mxu0
      %v421 = vadd.f32 0.0, %v420
      %v422 = vpop.f32.mrb[0].mxu0
      %v423 = vadd.f32 0.0, %v422
      %424 = vmatprep.mubr.bf16.mxu0 0
      %425 = vmatmul.mubr.bf16.gmra.mrb[0].mxu0 %v347
      %v426 = vpop.f32.mrb[0].mxu0
      %v427 = vadd.f32 0.0, %v426
      %v428 = vpop.f32.mrb[0].mxu0
      %v429 = vadd.f32 0.0, %v428
      %v430 = vpop.f32.mrb[0].mxu0
      %v431 = vadd.f32 0.0, %v430
      %v432 = vpop.f32.mrb[0].mxu0
      %v433 = vadd.f32 0.0, %v432
      %434 = vmatprep.mubr.bf16.mxu0 0
      %435 = vmatmul.mubr.bf16.gmra.mrb[0].mxu0 %v350
      %v436 = vpop.f32.mrb[0].mxu0
      %v437 = vadd.f32 0.0, %v436
      %v438 = vpop.f32.mrb[0].mxu0
      %v439 = vadd.f32 0.0, %v438
      %v440 = vpop.f32.mrb[0].mxu0
      %v441 = vadd.f32 0.0, %v440
      %v442 = vpop.f32.mrb[0].mxu0
      %v443 = vadd.f32 0.0, %v442
      %444 = vdwg.mxu0
      %v445 = vpack.c.bf16 %v391, %v387
      %v446 = vpack.c.bf16 %v393, %v389
      %v447 = vpack.c.bf16 %v401, %v397
      %v448 = vpack.c.bf16 %v403, %v399
      %v449 = vpack.c.bf16 %v411, %v407
      %v450 = vpack.c.bf16 %v413, %v409
      %v451 = vpack.c.bf16 %v421, %v417
      %v452 = vpack.c.bf16 %v423, %v419
      %v461 = vunpack.c.l.b16 %v445
      %v462 = vunpack.c.l.b16 %v446
      %v463 = vunpack.c.h.b16 %v445
      %v464 = vunpack.c.h.b16 %v446
      %v465 = vunpack.c.l.b16 %v447
      %v466 = vunpack.c.l.b16 %v448
      %v467 = vunpack.c.h.b16 %v447
      %v468 = vunpack.c.h.b16 %v448
      %v469 = vunpack.c.l.b16 %v449
      %v470 = vunpack.c.l.b16 %v450
      %v471 = vunpack.c.h.b16 %v449
      %v472 = vunpack.c.h.b16 %v450
      %v473 = vunpack.c.l.b16 %v451
      %v474 = vunpack.c.l.b16 %v452
      %v475 = vunpack.c.h.b16 %v451
      %v476 = vunpack.c.h.b16 %v452
      %v477 = vpack.c.b16 %v462, %v461
      %v478 = vpack.c.b16 %v464, %v463
      %v479 = vpack.c.b16 %v466, %v465
      %v480 = vpack.c.b16 %v468, %v467
      %v481 = vpack.c.b16 %v470, %v469
      %v482 = vpack.c.b16 %v472, %v471
      %v483 = vpack.c.b16 %v474, %v473
      %v484 = vpack.c.b16 %v476, %v475
      %493 = vst [vmem:[%s262] sm:$0xff] %v477
      %494 = vst [vmem:[%s262 + $0x8] sm:$0xff] %v478
      %495 = vst [vmem:[%s262 + $0x10] sm:$0xff] %v479
      %496 = vst [vmem:[%s262 + $0x18] sm:$0xff] %v480
      %497 = vst [vmem:[%s262 + $0x20] sm:$0xff] %v481
      %498 = vst [vmem:[%s262 + $0x28] sm:$0xff] %v482
      %499 = vst [vmem:[%s262 + $0x30] sm:$0xff] %v483
      %500 = vst [vmem:[%s262 + $0x38] sm:$0xff] %v484
      %v501 = vpack.c.bf16 %v431, %v427
      %v502 = vpack.c.bf16 %v433, %v429
      %v505 = vunpack.c.l.b16 %v501
      %v506 = vunpack.c.l.b16 %v502
      %v507 = vunpack.c.h.b16 %v501
      %v508 = vunpack.c.h.b16 %v502
      %v509 = vpack.c.b16 %v506, %v505
      %v510 = vpack.c.b16 %v508, %v507
      %513 = vst [vmem:[%s272] sm:$0xff] %v509
      %514 = vst [vmem:[%s272 + $0x8] sm:$0xff] %v510
      %v515 = vpack.c.bf16 %v441, %v437
      %v516 = vpack.c.bf16 %v443, %v439
      %v519 = vunpack.c.l.b16 %v515
      %v520 = vunpack.c.l.b16 %v516
      %v521 = vunpack.c.h.b16 %v515
      %v522 = vunpack.c.h.b16 %v516
      %v523 = vpack.c.b16 %v520, %v519
      %v524 = vpack.c.b16 %v522, %v521
      %527 = vst [vmem:[%s282] sm:$0xff] %v523
      %528 = vst [vmem:[%s282 + $0x8] sm:$0xff] %v524
      %s529 = smul.u32 2, %s21
      %p530 = scmp.lt.s32.totalorder %s20, 1
      %s531 = scalar_select %p530, %s20, 1
      %p532 = scmp.lt.s32.totalorder %s529, 1
      %s533 = scalar_select %p532, %s529, 1
      %s534 = smul.addr %s531, 16
      %s535 = sadd.s32 %s533, %s534
      %s536 = smul.addr %s535, 4
      %s537 = scalar_lea.vmem %s2, %s536
      %s538 = smul.u32 2, %s21
      %p539 = scmp.lt.s32.totalorder %s20, 1
      %s540 = scalar_select %p539, %s20, 1
      %p541 = scmp.lt.s32.totalorder %s538, 1
      %s542 = scalar_select %p541, %s538, 1
      %s543 = smul.addr %s540, 4
      %s544 = sadd.s32 %s542, %s543
      %s545 = smul.addr %s544, 4
      %s546 = scalar_lea.vmem %s3, %s545
      %s547 = smul.u32 2, %s21
      %p548 = scmp.lt.s32.totalorder %s20, 1
      %s549 = scalar_select %p548, %s20, 1
      %p550 = scmp.lt.s32.totalorder %s547, 1
      %s551 = scalar_select %p550, %s547, 1
      %s552 = smul.addr %s549, 4
      %s553 = sadd.s32 %s551, %s552
      %s554 = smul.addr %s553, 4
      %s555 = scalar_lea.vmem %s4, %s554
      // Predicated region
      $region29: #{_lambda_.2} parent=27 // pred_check
        %p556 = pneg %p97
      $region30: #{_lambda_.2} parent=27 // pred_check_branch
        %558 = sbr.rel (%p556) target = $region32
      $region31: #{_lambda_.2} parent=27 // pred_region
        %s559 = smul.u32 2, %s21
      $region32: #{_lambda_.2} parent=27 // pred_fallthru
        _
      // Predicated region
      $region33: #{_lambda_.2} parent=27 // pred_check
        %p560 = pneg %p125
      $region34: #{_lambda_.2} parent=27 // pred_check_branch
        %562 = sbr.rel (%p560) target = $region36
      $region35: #{_lambda_.2} parent=27 // pred_region
        %s563 = smul.u32 2, %s21
      $region36: #{_lambda_.2} parent=27 // pred_fallthru
        _
      // Predicated region
      $region37: #{_lambda_.2} parent=27 // pred_check
        %p564 = pneg %p153
      $region38: #{_lambda_.2} parent=27 // pred_check_branch
        %566 = sbr.rel (%p564) target = $region40
      $region39: #{_lambda_.2} parent=27 // pred_region
        %s567 = smul.u32 2, %s21
      $region40: #{_lambda_.2} parent=27 // pred_fallthru
        _
    $region28: #{_lambda_.2} parent=5 // pred_fallthru
      _
    %p568 = scmp.le.s32.totalorder 2, %s11
    // Predicated region
    $region41: #{_lambda_.2} parent=5 // pred_check
      %p569 = pneg %p568
    $region42: #{_lambda_.2} parent=5 // pred_check_branch
      %571 = sbr.rel (%p569) target = $region44
    $region43: #{_lambda_.2} parent=5 // pred_region
      %s572 = ssub.s32 %s11, 2
      // Predicated region
      $region45: #{_lambda_.2} parent=43 // pred_check
        %p573 = pneg %p103
      $region46: #{_lambda_.2} parent=43 // pred_check_branch
        %575 = sbr.rel (%p573) target = $region48
      $region47: #{_lambda_.2} parent=43 // pred_region
        %s576 = smul.u32 2, %s23
        %p577 = scmp.lt.s32.totalorder %s22, 1
        %s578 = scalar_select %p577, %s22, 1
        %p579 = scmp.lt.s32.totalorder %s576, 1
        %s580 = scalar_select %p579, %s576, 1
        %s581 = smul.addr %s578, 16
        %s582 = sadd.s32 %s580, %s581
        %s583 = smul.addr %s582, 4
        %s584 = scalar_lea.vmem %s2, %s583
      $region48: #{_lambda_.2} parent=43 // pred_fallthru
        _
      // Predicated region
      $region49: #{_lambda_.2} parent=43 // pred_check
        %p585 = pneg %p131
      $region50: #{_lambda_.2} parent=43 // pred_check_branch
        %587 = sbr.rel (%p585) target = $region52
      $region51: #{_lambda_.2} parent=43 // pred_region
        %s588 = smul.u32 2, %s23
        %p589 = scmp.lt.s32.totalorder %s22, 1
        %s590 = scalar_select %p589, %s22, 1
        %p591 = scmp.lt.s32.totalorder %s588, 1
        %s592 = scalar_select %p591, %s588, 1
        %s593 = smul.addr %s590, 4
        %s594 = sadd.s32 %s592, %s593
        %s595 = smul.addr %s594, 4
        %s596 = scalar_lea.vmem %s3, %s595
      $region52: #{_lambda_.2} parent=43 // pred_fallthru
        _
      // Predicated region
      $region53: #{_lambda_.2} parent=43 // pred_check
        %p597 = pneg %p159
      $region54: #{_lambda_.2} parent=43 // pred_check_branch
        %599 = sbr.rel (%p597) target = $region56
      $region55: #{_lambda_.2} parent=43 // pred_region
        %s600 = smul.u32 2, %s23
        %p601 = scmp.lt.s32.totalorder %s22, 1
        %s602 = scalar_select %p601, %s22, 1
        %p603 = scmp.lt.s32.totalorder %s600, 1
        %s604 = scalar_select %p603, %s600, 1
        %s605 = smul.addr %s602, 4
        %s606 = sadd.s32 %s604, %s605
        %s607 = smul.addr %s606, 4
        %s608 = scalar_lea.vmem %s4, %s607
      $region56: #{_lambda_.2} parent=43 // pred_fallthru
        _
    $region44: #{_lambda_.2} parent=5 // pred_fallthru
      _
  $region6: #{_lambda_.2} parent=0 // loop_footer
    %s15 = sadd.s32 1, %s11
  $region7: #{_lambda_.2} parent=0 // loop_footer_branch
    %10 = sbr.rel target = $region3
  $region8: #{_lambda_.2} parent=0 // loop_exit
    _

// kernel: _lambda_.3
$region0: #{_lambda_.3}
  #allocation0 [shape = 'u32[]', space=smem, size = 0x4, offset = 0x4, fixed_abs, tag = 'smem constant byte address 0x4 - core index']
  #allocation1 [shape = 'u32[144,128]{1,0:T(1,128)}', space=vmem, size = 0x12000, scoped, tag = 'internal scratch']
  #allocation2 [shape = 'f32[64,128]{1,0:T(8,128)}', space=vmem, size = 0x8000, scoped, tag = 'scratch operand']
  %s0 = inlined_call_operand.vmem [shape: bf16[2,64,256], index: 0, kind: input, shape index: {}]
  %s1 = inlined_call_operand.vmem [shape: bf16[2,16,256], index: 1, kind: input, shape index: {}]
  %s2 = inlined_call_operand.vmem [shape: bf16[2,256,16], index: 2, kind: input, shape index: {}]
  %s3 = inlined_call_operand.vmem [shape: bf16[16,64], index: 3, kind: input, shape index: {}]
  %s4 = inlined_call_operand.vmem [shape: f32[2,16,256], index: 4, kind: output, shape index: {}]
  %s5 = sld [smem:[#allocation0]]
  $region124: #{_lambda_.3} parent=0
    _
  %s7 = ssub.s32 1, %s5
  %s8 = scalar_select 0, %s7, %s5
  $region1: #{_lambda_.3} parent=0
    #allocation3 [shape = 'u8[32768]{0}', space=vmem, size = 0x8000, scoped, tag = 'input window, operand 0']
    #allocation4 [shape = 'u8[16384]{0}', space=vmem, size = 0x4000, scoped, tag = 'output window, operand 0']
    loop: start=0, step=1, limit=6
    $region2: #{_lambda_.3} parent=1 // loop_pre_header
      _
    $region3: #{_lambda_.3} parent=1 // loop_header
      %s10 = sphi 0, %s14
      %p11 = scmp.ge.s32.totalorder %s10, 6
      %s17 = sphi 0, %s29
      %s18 = sphi 0, %s25
      %s19 = sphi 0, %s17
      %s20 = sphi 0, %s18
      %s21 = sphi 0, %s19
      %s22 = sphi 0, %s20
      %s34 = sphi 0, %s36
      %s37 = sphi 0, %s34
      %s38 = sphi 0, %s37
      %s54 = sphi 0, %s38
      %s60 = sphi 0, %s62
      %s63 = sphi 0, %s60
      %s64 = sphi 0, %s63
      %s80 = sphi 0, %s64
      %s86 = sphi 0, %s88
      %s89 = sphi 0, %s86
      %s90 = sphi 0, %s89
      %s106 = sphi 0, %s90
      %s110 = sphi 0, %s110
      %s112 = sphi 0, %s110
      %s113 = sphi 0, %s112
      %s127 = sphi 0, %s113
      %s135 = sphi 0, %s137
      %s138 = sphi 0, %s135
      %s139 = sphi 0, %s138
      %s155 = sphi 0, %s139
    $region4: #{_lambda_.3} parent=1 // loop_header_branch
      %13 = sbr.rel (%p11) target = $region8
    $region5: #{_lambda_.3} parent=1 // loop_body
      %s15 = ssub.s32 %s10, 1
      %s16 = ssub.s32 %s10, 2
      %s23 = sadd.s32 1, %s18
      %p24 = scmp.ge.s32.totalorder %s23, 2
      %s25 = scalar_select %p24, 0, %s23
      %s26 = sadd.s32 1, %s17
      %s27 = scalar_select %p24, %s26, %s17
      %p28 = scmp.ge.s32.totalorder %s27, 2
      %s29 = scalar_select %p28, 0, %s27
      %s30 = ssub.s32 %s17, %s29
      %s31 = ssub.s32 %s18, %s25
      %s32 = sor.u32 %s30, %s31
      %p33 = scmp.eq.s32.totalorder %s32, 0
      %s35 = sadd.s32 %s34, 1
      %s36 = scalar_select %p33, %s34, %s35
      %p39 = pneg %p33
      %p40 = scmp.eq.s32.totalorder %s10, 3
      %p41 = por %p39, %p40
      %p42 = scmp.ne.s32.totalorder %s34, %s37
      %p43 = scmp.eq.s32.totalorder %s10, 0
      %p44 = por %p42, %p43
      %p45 = scmp.ne.s32.totalorder %s34, %s37
      %p46 = scmp.eq.s32.totalorder %s15, 3
      %p47 = por %p45, %p46
      %p48 = scmp.ne.s32.totalorder %s37, %s38
      %p49 = scmp.eq.s32.totalorder %s15, 0
      %p50 = por %p48, %p49
      %p51 = scmp.ne.s32.totalorder %s37, %s38
      %p52 = scmp.eq.s32.totalorder %s16, 3
      %p53 = por %p51, %p52
      %p55 = scmp.ne.s32.totalorder %s38, %s54
      %p56 = scmp.eq.s32.totalorder %s16, 0
      %p57 = por %p55, %p56
      %s58 = ssub.s32 %s17, %s29
      %p59 = scmp.eq.s32.totalorder %s58, 0
      %s61 = sadd.s32 %s60, 1
      %s62 = scalar_select %p59, %s60, %s61
      %p65 = pneg %p59
      %p66 = scmp.eq.s32.totalorder %s10, 3
      %p67 = por %p65, %p66
      %p68 = scmp.ne.s32.totalorder %s60, %s63
      %p69 = scmp.eq.s32.totalorder %s10, 0
      %p70 = por %p68, %p69
      %p71 = scmp.ne.s32.totalorder %s60, %s63
      %p72 = scmp.eq.s32.totalorder %s15, 3
      %p73 = por %p71, %p72
      %p74 = scmp.ne.s32.totalorder %s63, %s64
      %p75 = scmp.eq.s32.totalorder %s15, 0
      %p76 = por %p74, %p75
      %p77 = scmp.ne.s32.totalorder %s63, %s64
      %p78 = scmp.eq.s32.totalorder %s16, 3
      %p79 = por %p77, %p78
      %p81 = scmp.ne.s32.totalorder %s64, %s80
      %p82 = scmp.eq.s32.totalorder %s16, 0
      %p83 = por %p81, %p82
      %s84 = ssub.s32 %s17, %s29
      %p85 = scmp.eq.s32.totalorder %s84, 0
      %s87 = sadd.s32 %s86, 1
      %s88 = scalar_select %p85, %s86, %s87
      %p91 = pneg %p85
      %p92 = scmp.eq.s32.totalorder %s10, 3
      %p93 = por %p91, %p92
      %p94 = scmp.ne.s32.totalorder %s86, %s89
      %p95 = scmp.eq.s32.totalorder %s10, 0
      %p96 = por %p94, %p95
      %p97 = scmp.ne.s32.totalorder %s86, %s89
      %p98 = scmp.eq.s32.totalorder %s15, 3
      %p99 = por %p97, %p98
      %p100 = scmp.ne.s32.totalorder %s89, %s90
      %p101 = scmp.eq.s32.totalorder %s15, 0
      %p102 = por %p100, %p101
      %p103 = scmp.ne.s32.totalorder %s89, %s90
      %p104 = scmp.eq.s32.totalorder %s16, 3
      %p105 = por %p103, %p104
      %p107 = scmp.ne.s32.totalorder %s90, %s106
      %p108 = scmp.eq.s32.totalorder %s16, 0
      %p109 = por %p107, %p108
      %s111 = sadd.s32 %s110, 1
      %p114 = scmp.eq.s32.totalorder %s10, 3
      %p115 = scmp.ne.s32.totalorder %s110, %s112
      %p116 = scmp.eq.s32.totalorder %s10, 0
      %p117 = por %p115, %p116
      %p118 = scmp.ne.s32.totalorder %s110, %s112
      %p119 = scmp.eq.s32.totalorder %s15, 3
      %p120 = por %p118, %p119
      %p121 = scmp.ne.s32.totalorder %s112, %s113
      %p122 = scmp.eq.s32.totalorder %s15, 0
      %p123 = por %p121, %p122
      %p124 = scmp.ne.s32.totalorder %s112, %s113
      %p125 = scmp.eq.s32.totalorder %s16, 3
      %p126 = por %p124, %p125
      %p128 = scmp.ne.s32.totalorder %s113, %s127
      %p129 = scmp.eq.s32.totalorder %s16, 0
      %p130 = por %p128, %p129
      %s131 = ssub.s32 %s17, %s29
      %s132 = ssub.s32 %s18, %s25
      %s133 = sor.u32 %s131, %s132
      %p134 = scmp.eq.s32.totalorder %s133, 0
      %s136 = sadd.s32 %s135, 1
      %s137 = scalar_select %p134, %s135, %s136
      %p140 = pneg %p134
      %p141 = scmp.eq.s32.totalorder %s10, 3
      %p142 = por %p140, %p141
      %p143 = scmp.ne.s32.totalorder %s135, %s138
      %p144 = scmp.eq.s32.totalorder %s10, 0
      %p145 = por %p143, %p144
      %p146 = scmp.ne.s32.totalorder %s135, %s138
      %p147 = scmp.eq.s32.totalorder %s15, 3
      %p148 = por %p146, %p147
      %p149 = scmp.ne.s32.totalorder %s138, %s139
      %p150 = scmp.eq.s32.totalorder %s15, 0
      %p151 = por %p149, %p150
      %p152 = scmp.ne.s32.totalorder %s138, %s139
      %p153 = scmp.eq.s32.totalorder %s16, 3
      %p154 = por %p152, %p153
      %p156 = scmp.ne.s32.totalorder %s139, %s155
      %p157 = scmp.eq.s32.totalorder %s16, 0
      %p158 = por %p156, %p157
      %p159 = scmp.le.s32.totalorder 1, %s10
      %p160 = scmp.lt.s32.totalorder %s10, 5
      %p161 = pnand %p159, %p160
      %p162 = pneg %p161
      // Predicated region
      $region9: #{_lambda_.3} parent=5 // pred_check
        _
      $region10: #{_lambda_.3} parent=5 // pred_check_branch
        %164 = sbr.rel (%p161) target = $region12
      $region11: #{_lambda_.3} parent=5 // pred_region
        %s165 = ssub.s32 %s10, 1
        // Predicated region
        $region13: #{_lambda_.3} parent=11 // pred_check
          %p166 = pneg %p123
        $region14: #{_lambda_.3} parent=11 // pred_check_branch
          %168 = sbr.rel (%p166) target = $region16
        $region15: #{_lambda_.3} parent=11 // pred_region
          _
        $region16: #{_lambda_.3} parent=11 // pred_fallthru
          _
      $region12: #{_lambda_.3} parent=5 // pred_fallthru
        _
      %p169 = scmp.lt.s32.totalorder %s10, 4
      // Predicated region
      $region17: #{_lambda_.3} parent=5 // pred_check
        %p170 = pneg %p169
      $region18: #{_lambda_.3} parent=5 // pred_check_branch
        %172 = sbr.rel (%p170) target = $region20
      $region19: #{_lambda_.3} parent=5 // pred_region
        // Predicated region
        $region21: #{_lambda_.3} parent=19 // pred_check
          %p173 = pneg %p44
        $region22: #{_lambda_.3} parent=19 // pred_check_branch
          %175 = sbr.rel (%p173) target = $region24
        $region23: #{_lambda_.3} parent=19 // pred_region
          %s176 = sand.u32 %s34, 1
          %s177 = sand.u32 %s34, 1
          %s178 = smul.addr %s177, 32
          %s179 = scalar_lea.vmem [#allocation3], %s178
          %s180 = smul.addr %s17, 16
          %s181 = sadd.s32 %s18, %s180
          %s182 = smul.addr %s181, 4
          %s183 = scalar_lea.vmem %s0, %s182
          // Predicated region
          $region25: #{_lambda_.3} parent=23 // pred_check
            _
          $region26: #{_lambda_.3} parent=23 // pred_check_branch
            %185 = sbr.rel (0) target = $region28
          $region27: #{_lambda_.3} parent=23 // pred_region
            // Predicated region
            $region29: #{_lambda_.3} parent=27 // pred_check
              _
            $region30: #{_lambda_.3} parent=27 // pred_check_branch
              %187 = sbr.rel target = $region32
            $region31: #{_lambda_.3} parent=27 // pred_region
              // Predicated region
              $region44: #{_lambda_.3} parent=31 // pred_check
                _
              $region45: #{_lambda_.3} parent=31 // pred_check_branch
                %216 = sbr.rel (0) target = $region47
              $region46: #{_lambda_.3} parent=31 // pred_region
                loop: start=0, step=1, limit=1
                $region48: #{_lambda_.3} parent=46 // loop_pre_header
                  _
                $region49: #{_lambda_.3} parent=46 // loop_header
                  %s218 = sphi 0, %s222
                  %p219 = scmp.ge.s32.totalorder %s218, 1
                  %s223 = sphi %s183, %s183
                  %s224 = sphi %s179, %s179
                $region50: #{_lambda_.3} parent=46 // loop_header_branch
                  %221 = sbr.rel (%p219) target = $region54
                $region51: #{_lambda_.3} parent=46 // loop_body
                  _
                $region52: #{_lambda_.3} parent=46 // loop_footer
                  %s222 = sadd.s32 1, %s218
                $region53: #{_lambda_.3} parent=46 // loop_footer_branch
                  %217 = sbr.rel target = $region49
                $region54: #{_lambda_.3} parent=46 // loop_exit
                  _
                loop: start=0, step=1, limit=1
                $region55: #{_lambda_.3} parent=46 // loop_pre_header
                  _
                $region56: #{_lambda_.3} parent=46 // loop_header
                  %s227 = sphi 0, %s231
                  %p228 = scmp.ge.s32.totalorder %s227, 1
                  %s232 = sphi %s183, %s183
                  %s233 = sphi %s179, %s179
                $region57: #{_lambda_.3} parent=46 // loop_header_branch
                  %230 = sbr.rel (%p228) target = $region61
                $region58: #{_lambda_.3} parent=46 // loop_body
                  %v234 = vld [vmem:[%s232] sm:$0xf]
                  %235 = vst [vmem:[%s233] sm:$0xf] %v234
                  %v236 = vld [vmem:[%s232 + $0x8] sm:$0xf]
                  %237 = vst [vmem:[%s233 + $0x4] sm:$0xf] %v236
                  %v238 = vld [vmem:[%s232 + $0x10] sm:$0xf]
                  %239 = vst [vmem:[%s233 + $0x8] sm:$0xf] %v238
                  %v240 = vld [vmem:[%s232 + $0x18] sm:$0xf]
                  %241 = vst [vmem:[%s233 + $0xc] sm:$0xf] %v240
                  %v242 = vld [vmem:[%s232 + $0x20] sm:$0xf]
                  %243 = vst [vmem:[%s233 + $0x10] sm:$0xf] %v242
                  %v244 = vld [vmem:[%s232 + $0x28] sm:$0xf]
                  %245 = vst [vmem:[%s233 + $0x14] sm:$0xf] %v244
                  %v246 = vld [vmem:[%s232 + $0x30] sm:$0xf]
                  %247 = vst [vmem:[%s233 + $0x18] sm:$0xf] %v246
                  %v248 = vld [vmem:[%s232 + $0x38] sm:$0xf]
                  %249 = vst [vmem:[%s233 + $0x1c] sm:$0xf] %v248
                $region59: #{_lambda_.3} parent=46 // loop_footer
                  %s231 = sadd.s32 1, %s227
                $region60: #{_lambda_.3} parent=46 // loop_footer_branch
                  %226 = sbr.rel target = $region56
                $region61: #{_lambda_.3} parent=46 // loop_exit
                  _
              $region47: #{_lambda_.3} parent=31 // pred_fallthru
                _
            $region32: #{_lambda_.3} parent=27 // pred_fallthru
              _
            // Predicated region
            $region33: #{_lambda_.3} parent=27 // pred_check
              _
            $region34: #{_lambda_.3} parent=27 // pred_check_branch
              %189 = sbr.rel (0) target = $region36
            $region35: #{_lambda_.3} parent=27 // pred_region
              loop: start=0, step=1, limit=1
              $region37: #{_lambda_.3} parent=35 // loop_pre_header
                _
              $region38: #{_lambda_.3} parent=35 // loop_header
                %s192 = sphi 0, %s196
                %p193 = scmp.ge.s32.totalorder %s192, 1
                %s197 = sphi %s183, %s183
                %s198 = sphi %s179, %s179
              $region39: #{_lambda_.3} parent=35 // loop_header_branch
                %195 = sbr.rel (%p193) target = $region43
              $region40: #{_lambda_.3} parent=35 // loop_body
                %v199 = vld [vmem:[%s197] sm:$0xf]
                %200 = vst [vmem:[%s198] sm:$0xf] %v199
                %v201 = vld [vmem:[%s197 + $0x8] sm:$0xf]
                %202 = vst [vmem:[%s198 + $0x4] sm:$0xf] %v201
                %v203 = vld [vmem:[%s197 + $0x10] sm:$0xf]
                %204 = vst [vmem:[%s198 + $0x8] sm:$0xf] %v203
                %v205 = vld [vmem:[%s197 + $0x18] sm:$0xf]
                %206 = vst [vmem:[%s198 + $0xc] sm:$0xf] %v205
                %v207 = vld [vmem:[%s197 + $0x20] sm:$0xf]
                %208 = vst [vmem:[%s198 + $0x10] sm:$0xf] %v207
                %v209 = vld [vmem:[%s197 + $0x28] sm:$0xf]
                %210 = vst [vmem:[%s198 + $0x14] sm:$0xf] %v209
                %v211 = vld [vmem:[%s197 + $0x30] sm:$0xf]
                %212 = vst [vmem:[%s198 + $0x18] sm:$0xf] %v211
                %v213 = vld [vmem:[%s197 + $0x38] sm:$0xf]
                %214 = vst [vmem:[%s198 + $0x1c] sm:$0xf] %v213
              $region41: #{_lambda_.3} parent=35 // loop_footer
                %s196 = sadd.s32 1, %s192
              $region42: #{_lambda_.3} parent=35 // loop_footer_branch
                %191 = sbr.rel target = $region38
              $region43: #{_lambda_.3} parent=35 // loop_exit
                _
            $region36: #{_lambda_.3} parent=27 // pred_fallthru
              _
          $region28: #{_lambda_.3} parent=23 // pred_fallthru
            _
          %250 = vnop
        $region24: #{_lambda_.3} parent=19 // pred_fallthru
          _
        // Predicated region
        $region62: #{_lambda_.3} parent=19 // pred_check
          %p251 = pneg %p70
        $region63: #{_lambda_.3} parent=19 // pred_check_branch
          %253 = sbr.rel (%p251) target = $region65
        $region64: #{_lambda_.3} parent=19 // pred_region
          %p254 = scmp.lt.s32.totalorder %s17, 1
          %s255 = scalar_select %p254, %s17, 1
          %s256 = smul.addr %s255, 4
          %s257 = smul.addr %s256, 4
          %s258 = scalar_lea.vmem %s1, %s257
        $region65: #{_lambda_.3} parent=19 // pred_fallthru
          _
        // Predicated region
        $region66: #{_lambda_.3} parent=19 // pred_check
          %p259 = pneg %p96
        $region67: #{_lambda_.3} parent=19 // pred_check_branch
          %261 = sbr.rel (%p259) target = $region69
        $region68: #{_lambda_.3} parent=19 // pred_region
          %p262 = scmp.lt.s32.totalorder %s17, 1
          %s263 = scalar_select %p262, %s17, 1
          %s264 = smul.addr %s263, 32
          %s265 = smul.addr %s264, 4
          %s266 = scalar_lea.vmem %s2, %s265
        $region69: #{_lambda_.3} parent=19 // pred_fallthru
          _
      $region20: #{_lambda_.3} parent=5 // pred_fallthru
        _
      %p267 = scmp.le.s32.totalorder 1, %s10
      %p268 = scmp.lt.s32.totalorder %s10, 5
      %p269 = pnand %p267, %p268
      %p270 = pneg %p269
      // Predicated region
      $region70: #{_lambda_.3} parent=5 // pred_check
        _
      $region71: #{_lambda_.3} parent=5 // pred_check_branch
        %272 = sbr.rel (%p269) target = $region73
      $region72: #{_lambda_.3} parent=5 // pred_region
        %s273 = ssub.s32 %s10, 1
        %s274 = sand.u32 %s37, 1
        %s275 = sand.u32 %s37, 1
        %s276 = smul.addr %s275, 32
        %s277 = scalar_lea.vmem [#allocation3], %s276
        // Predicated region
        $region74: #{_lambda_.3} parent=72 // pred_check
          %p278 = pneg %p50
        $region75: #{_lambda_.3} parent=72 // pred_check_branch
          %280 = sbr.rel (%p278) target = $region77
        $region76: #{_lambda_.3} parent=72 // pred_region
          _
        $region77: #{_lambda_.3} parent=72 // pred_fallthru
          _
        %s281 = sand.u32 %s37, 1
        %s282 = sand.u32 %s37, 1
        %s283 = smul.addr %s282, 32
        %s284 = scalar_lea.vmem [#allocation3], %s283
        %p285 = pneg %p50
        %p286 = pneg %p47
        %p287 = scmp.lt.s32.totalorder %s19, 1
        %s288 = scalar_select %p287, %s19, 1
        %s289 = smul.addr %s288, 4
        %s290 = smul.addr %s289, 4
        %s291 = scalar_lea.vmem %s1, %s290
        %p292 = pneg %p76
        %p293 = pneg %p73
        %p294 = scmp.lt.s32.totalorder %s19, 1
        %s295 = scalar_select %p294, %s19, 1
        %s296 = smul.addr %s295, 32
        %s297 = smul.addr %s296, 4
        %s298 = scalar_lea.vmem %s2, %s297
        %p299 = pneg %p102
        %p300 = pneg %p99
        %p301 = pneg %p123
        %p302 = pneg %p120
        %p303 = pneg %p151
        %p304 = pneg %p148
        %s305 = sand.u32 %s138, 1
        %s306 = sand.u32 %s138, 1
        %s307 = smul.addr %s306, 16
        %s308 = scalar_lea.vmem [#allocation4], %s307
        %p309 = scmp.lt.s32.totalorder %s19, 1
        %s310 = scalar_select %p309, %s19, 1
        %s311 = smul.addr %s310, 4
        %s312 = smul.addr %s311, 4
        %s313 = scalar_lea.vmem %s1, %s312
        %p314 = scmp.lt.s32.totalorder %s19, 1
        %s315 = scalar_select %p314, %s19, 1
        %s316 = smul.addr %s315, 32
        %s317 = smul.addr %s316, 4
        %s318 = scalar_lea.vmem %s2, %s317
        %v320 = vld [vmem:[%s313] sm:$0xff]
        %v321 = vld [vmem:[%s313 + $0x8] sm:$0xff]
        %v322 = vld [vmem:[%s318] sm:$0xf]
        %v323 = vld [vmem:[%s318 + $0x4] sm:$0xf]
        %v324 = vld [vmem:[%s318 + $0x8] sm:$0xf]
        %v325 = vld [vmem:[%s318 + $0xc] sm:$0xf]
        %v326 = vld [vmem:[%s318 + $0x10] sm:$0xf]
        %v327 = vld [vmem:[%s318 + $0x14] sm:$0xf]
        %v328 = vld [vmem:[%s318 + $0x18] sm:$0xf]
        %v329 = vld [vmem:[%s318 + $0x1c] sm:$0xf]
        %v330 = vld [vmem:[%s318 + $0x20] sm:$0xf]
        %v331 = vld [vmem:[%s318 + $0x24] sm:$0xf]
        %v332 = vld [vmem:[%s318 + $0x28] sm:$0xf]
        %v333 = vld [vmem:[%s318 + $0x2c] sm:$0xf]
        %v334 = vld [vmem:[%s318 + $0x30] sm:$0xf]
        %v335 = vld [vmem:[%s318 + $0x34] sm:$0xf]
        %v336 = vld [vmem:[%s318 + $0x38] sm:$0xf]
        %v337 = vld [vmem:[%s318 + $0x3c] sm:$0xf]
        %v338 = vld [vmem:[%s318 + $0x40] sm:$0xf]
        %v339 = vld [vmem:[%s318 + $0x44] sm:$0xf]
        %v340 = vld [vmem:[%s318 + $0x48] sm:$0xf]
        %v341 = vld [vmem:[%s318 + $0x4c] sm:$0xf]
        %v342 = vld [vmem:[%s318 + $0x50] sm:$0xf]
        %v343 = vld [vmem:[%s318 + $0x54] sm:$0xf]
        %v344 = vld [vmem:[%s318 + $0x58] sm:$0xf]
        %v345 = vld [vmem:[%s318 + $0x5c] sm:$0xf]
        %v346 = vld [vmem:[%s318 + $0x60] sm:$0xf]
        %v347 = vld [vmem:[%s318 + $0x64] sm:$0xf]
        %v348 = vld [vmem:[%s318 + $0x68] sm:$0xf]
        %v349 = vld [vmem:[%s318 + $0x6c] sm:$0xf]
        %v350 = vld [vmem:[%s318 + $0x70] sm:$0xf]
        %v351 = vld [vmem:[%s318 + $0x74] sm:$0xf]
        %v352 = vld [vmem:[%s318 + $0x78] sm:$0xf]
        %v353 = vld [vmem:[%s318 + $0x7c] sm:$0xf]
        %v354 = vld [vmem:[%s277] sm:$0xf]
        %v355 = vld [vmem:[%s277 + $0x4] sm:$0xf]
        %v356 = vld [vmem:[%s277 + $0x8] sm:$0xf]
        %v357 = vld [vmem:[%s277 + $0xc] sm:$0xf]
        %v358 = vld [vmem:[%s277 + $0x10] sm:$0xf]
        %v359 = vld [vmem:[%s277 + $0x14] sm:$0xf]
        %v360 = vld [vmem:[%s277 + $0x18] sm:$0xf]
        %v361 = vld [vmem:[%s277 + $0x1c] sm:$0xf]
        %v370 = vunpack.c.l.b16 %v354
        %v371 = vunpack.c.l.b16 %v355
        %v372 = vunpack.c.l.b16 %v356
        %v373 = vunpack.c.l.b16 %v357
        %v374 = vunpack.c.l.b16 %v358
        %v375 = vunpack.c.l.b16 %v359
        %v376 = vunpack.c.l.b16 %v360
        %v377 = vunpack.c.l.b16 %v361
        %v378 = vpack.c.b16 %v371, %v370
        %v379 = vpack.c.b16 %v373, %v372
        %v380 = vpack.c.b16 %v375, %v374
        %v381 = vpack.c.b16 %v377, %v376
        %v384 = vunpack.c.l.b16 %v320
        %v385 = vunpack.c.h.b16 %v320
        %v386 = vunpack.c.l.b16 %v321
        %v387 = vunpack.c.h.b16 %v321
        %v388 = vpack.c.b16 %v386, %v384
        %v389 = vpack.c.b16 %v387, %v385
        %vm392 = vcmask 130048
        %v394 = vsel %vm392, %v378, 0
        %v397 = vsel %vm392, %v379, 0
        %v400 = vsel %vm392, %v380, 0
        %v403 = vsel %vm392, %v381, 0
        %405 = vmatprep.subr.bf16.mxu0 %v389
        %406 = vmatpush1.bf16.msra.mxu0 %v388
        %407 = vmatprep.subr.bf16.mxu0 0
        %408 = vmatpush1.bf16.msra.mxu0 0
        %409 = vmatprep.subr.bf16.mxu0 0
        %410 = vmatpush1.bf16.msra.mxu0 0
        %411 = vmatprep.subr.bf16.mxu0 0
        %412 = vmatpush1.bf16.msra.mxu0 0
        %413 = vmatprep.subr.bf16.mxu0 0
        %414 = vmatpush1.bf16.msra.mxu0 0
        %415 = vmatprep.subr.bf16.mxu0 0
        %416 = vmatpush1.bf16.msra.mxu0 0
        %417 = vmatprep.subr.bf16.mxu0 0
        %418 = vmatpush1.bf16.msra.mxu0 0
        %419 = vmatprep.subr.bf16.mxu0 0
        %420 = vmatpush1.bf16.msra.mxu0 0
        %421 = vmatprep.subr.bf16.mxu0 0
        %422 = vmatpush1.bf16.msra.mxu0 0
        %423 = vmatprep.subr.bf16.mxu0 0
        %424 = vmatpush1.bf16.msra.mxu0 0
        %425 = vmatprep.subr.bf16.mxu0 0
        %426 = vmatpush1.bf16.msra.mxu0 0
        %427 = vmatprep.subr.bf16.mxu0 0
        %428 = vmatpush1.bf16.msra.mxu0 0
        %429 = vmatprep.subr.bf16.mxu0 0
        %430 = vmatpush1.bf16.msra.mxu0 0
        %431 = vmatprep.subr.bf16.mxu0 0
        %432 = vmatpush1.bf16.msra.mxu0 0
        %433 = vmatprep.subr.bf16.mxu0 0
        %434 = vmatpush1.bf16.msra.mxu0 0
        %435 = vmatprep.subr.bf16.mxu0 0
        %436 = vmatpush1.bf16.msra.mxu0 0
        %437 = vmatprep.mubr.bf16.mxu0 0
        %438 = vmatmul.mubr.bf16.gmra.mrb[0].mxu0 %v394
        %v439 = vpop.f32.mrb[0].mxu0
        %v440 = vadd.f32 0.0, %v439
        %v441 = vpop.f32.mrb[0].mxu0
        %v442 = vadd.f32 0.0, %v441
        %v443 = vpop.f32.mrb[0].mxu0
        %v444 = vadd.f32 0.0, %v443
        %v445 = vpop.f32.mrb[0].mxu0
        %v446 = vadd.f32 0.0, %v445
        %447 = vmatprep.mubr.bf16.mxu0 0
        %448 = vmatmul.mubr.bf16.gmra.mrb[0].mxu0 %v397
        %v449 = vpop.f32.mrb[0].mxu0
        %v450 = vadd.f32 0.0, %v449
        %v451 = vpop.f32.mrb[0].mxu0
        %v452 = vadd.f32 0.0, %v451
        %v453 = vpop.f32.mrb[0].mxu0
        %v454 = vadd.f32 0.0, %v453
        %v455 = vpop.f32.mrb[0].mxu0
        %v456 = vadd.f32 0.0, %v455
        %457 = vmatprep.mubr.bf16.mxu0 0
        %458 = vmatmul.mubr.bf16.gmra.mrb[0].mxu0 %v400
        %v459 = vpop.f32.mrb[0].mxu0
        %v460 = vadd.f32 0.0, %v459
        %v461 = vpop.f32.mrb[0].mxu0
        %v462 = vadd.f32 0.0, %v461
        %v463 = vpop.f32.mrb[0].mxu0
        %v464 = vadd.f32 0.0, %v463
        %v465 = vpop.f32.mrb[0].mxu0
        %v466 = vadd.f32 0.0, %v465
        %467 = vmatprep.mubr.bf16.mxu0 0
        %468 = vmatmul.mubr.bf16.gmra.mrb[0].mxu0 %v403
        %v469 = vpop.f32.mrb[0].mxu0
        %v470 = vadd.f32 0.0, %v469
        %v471 = vpop.f32.mrb[0].mxu0
        %v472 = vadd.f32 0.0, %v471
        %v473 = vpop.f32.mrb[0].mxu0
        %v474 = vadd.f32 0.0, %v473
        %v475 = vpop.f32.mrb[0].mxu0
        %v476 = vadd.f32 0.0, %v475
        %477 = vdwg.mxu0
        %v478 = vmax.f32 %v440, %v442
        %479 = vmax.xlane.f32.xlu0 %v478
        %v480 = vpop.xlane.xlu0 %479
        %v481 = vmax.f32 %v444, %v446
        %482 = vmax.xlane.f32.xlu0 %v481
        %v483 = vpop.xlane.xlu0 %482
        %v484 = vmax.f32 %v450, %v452
        %485 = vmax.xlane.f32.xlu0 %v484
        %v486 = vpop.xlane.xlu0 %485
        %v487 = vmax.f32 %v454, %v456
        %488 = vmax.xlane.f32.xlu0 %v487
        %v489 = vpop.xlane.xlu0 %488
        %v490 = vmax.f32 %v460, %v462
        %491 = vmax.xlane.f32.xlu0 %v490
        %v492 = vpop.xlane.xlu0 %491
        %v493 = vmax.f32 %v464, %v466
        %494 = vmax.xlane.f32.xlu0 %v493
        %v495 = vpop.xlane.xlu0 %494
        %v496 = vmax.f32 %v470, %v472
        %497 = vmax.xlane.f32.xlu0 %v496
        %v498 = vpop.xlane.xlu0 %497
        %v499 = vmax.f32 %v474, %v476
        %500 = vmax.xlane.f32.xlu0 %v499
        %v501 = vpop.xlane.xlu0 %500
        %v502 = vsub.f32 %v440, %v480
        %v503 = vsub.f32 %v442, %v480
        %v504 = vsub.f32 %v444, %v483
        %v505 = vsub.f32 %v446, %v483
        %v506 = vsub.f32 %v450, %v486
        %v507 = vsub.f32 %v452, %v486
        %v508 = vsub.f32 %v454, %v489
        %v509 = vsub.f32 %v456, %v489
        %v510 = vsub.f32 %v460, %v492
        %v511 = vsub.f32 %v462, %v492
        %v512 = vsub.f32 %v464, %v495
        %v513 = vsub.f32 %v466, %v495
        %v514 = vsub.f32 %v470, %v498
        %v515 = vsub.f32 %v472, %v498
        %v516 = vsub.f32 %v474, %v501
        %v517 = vsub.f32 %v476, %v501
        %v518 = vmul.f32 %v502, 1.442695
        %v519 = vpow.pop %v518
        %v520 = vmul.f32 %v503, 1.442695
        %v521 = vpow.pop %v520
        %v522 = vmul.f32 %v504, 1.442695
        %v523 = vpow.pop %v522
        %v524 = vmul.f32 %v505, 1.442695
        %v525 = vpow.pop %v524
        %v526 = vmul.f32 %v506, 1.442695
        %v527 = vpow.pop %v526
        %v528 = vmul.f32 %v507, 1.442695
        %v529 = vpow.pop %v528
        %v530 = vmul.f32 %v508, 1.442695
        %v531 = vpow.pop %v530
        %v532 = vmul.f32 %v509, 1.442695
        %v533 = vpow.pop %v532
        %v534 = vmul.f32 %v510, 1.442695
        %v535 = vpow.pop %v534
        %v536 = vmul.f32 %v511, 1.442695
        %v537 = vpow.pop %v536
        %v538 = vmul.f32 %v512, 1.442695
        %v539 = vpow.pop %v538
        %v540 = vmul.f32 %v513, 1.442695
        %v541 = vpow.pop %v540
        %v542 = vmul.f32 %v514, 1.442695
        %v543 = vpow.pop %v542
        %v544 = vmul.f32 %v515, 1.442695
        %v545 = vpow.pop %v544
        %v546 = vmul.f32 %v516, 1.442695
        %v547 = vpow.pop %v546
        %v548 = vmul.f32 %v517, 1.442695
        %v549 = vpow.pop %v548
        %v550 = vadd.f32 %v519, %v521
        %551 = vadd.xlane.f32.xlu0 %v550
        %v552 = vpop.xlane.xlu0 %551
        %v553 = vadd.f32 %v523, %v525
        %554 = vadd.xlane.f32.xlu0 %v553
        %v555 = vpop.xlane.xlu0 %554
        %v556 = vadd.f32 %v527, %v529
        %557 = vadd.xlane.f32.xlu0 %v556
        %v558 = vpop.xlane.xlu0 %557
        %v559 = vadd.f32 %v531, %v533
        %560 = vadd.xlane.f32.xlu0 %v559
        %v561 = vpop.xlane.xlu0 %560
        %v562 = vadd.f32 %v535, %v537
        %563 = vadd.xlane.f32.xlu0 %v562
        %v564 = vpop.xlane.xlu0 %563
        %v565 = vadd.f32 %v539, %v541
        %566 = vadd.xlane.f32.xlu0 %v565
        %v567 = vpop.xlane.xlu0 %566
        %v568 = vadd.f32 %v543, %v545
        %569 = vadd.xlane.f32.xlu0 %v568
        %v570 = vpop.xlane.xlu0 %569
        %v571 = vadd.f32 %v547, %v549
        %572 = vadd.xlane.f32.xlu0 %v571
        %v573 = vpop.xlane.xlu0 %572
        %v574 = vpack.c.bf16 %v523, %v519
        %v575 = vpack.c.bf16 %v525, %v521
        %v576 = vpack.c.bf16 %v531, %v527
        %v577 = vpack.c.bf16 %v533, %v529
        %v578 = vpack.c.bf16 %v539, %v535
        %v579 = vpack.c.bf16 %v541, %v537
        %v580 = vpack.c.bf16 %v547, %v543
        %v581 = vpack.c.bf16 %v549, %v545
        %v614 = vunpack.c.l.b16 %v322
        %v615 = vunpack.c.l.b16 %v323
        %v616 = vunpack.c.l.b16 %v324
        %v617 = vunpack.c.l.b16 %v325
        %v618 = vunpack.c.l.b16 %v326
        %v619 = vunpack.c.l.b16 %v327
        %v620 = vunpack.c.l.b16 %v328
        %v621 = vunpack.c.l.b16 %v329
        %v622 = vunpack.c.l.b16 %v330
        %v623 = vunpack.c.l.b16 %v331
        %v624 = vunpack.c.l.b16 %v332
        %v625 = vunpack.c.l.b16 %v333
        %v626 = vunpack.c.l.b16 %v334
        %v627 = vunpack.c.l.b16 %v335
        %v628 = vunpack.c.l.b16 %v336
        %v629 = vunpack.c.l.b16 %v337
        %v630 = vunpack.c.l.b16 %v338
        %v631 = vunpack.c.l.b16 %v339
        %v632 = vunpack.c.l.b16 %v340
        %v633 = vunpack.c.l.b16 %v341
        %v634 = vunpack.c.l.b16 %v342
        %v635 = vunpack.c.l.b16 %v343
        %v636 = vunpack.c.l.b16 %v344
        %v637 = vunpack.c.l.b16 %v345
        %v638 = vunpack.c.l.b16 %v346
        %v639 = vunpack.c.l.b16 %v347
        %v640 = vunpack.c.l.b16 %v348
        %v641 = vunpack.c.l.b16 %v349
        %v642 = vunpack.c.l.b16 %v350
        %v643 = vunpack.c.l.b16 %v351
        %v644 = vunpack.c.l.b16 %v352
        %v645 = vunpack.c.l.b16 %v353
        %v646 = vpack.c.b16 %v615, %v614
        %v647 = vpack.c.b16 %v617, %v616
        %v648 = vpack.c.b16 %v619, %v618
        %v649 = vpack.c.b16 %v621, %v620
        %v650 = vpack.c.b16 %v623, %v622
        %v651 = vpack.c.b16 %v625, %v624
        %v652 = vpack.c.b16 %v627, %v626
        %v653 = vpack.c.b16 %v629, %v628
        %v654 = vpack.c.b16 %v631, %v630
        %v655 = vpack.c.b16 %v633, %v632
        %v656 = vpack.c.b16 %v635, %v634
        %v657 = vpack.c.b16 %v637, %v636
        %v658 = vpack.c.b16 %v639, %v638
        %v659 = vpack.c.b16 %v641, %v640
        %v660 = vpack.c.b16 %v643, %v642
        %v661 = vpack.c.b16 %v645, %v644
        %678 = vmatprep.subr.bf16.mxu0 0
        %679 = vmatpush1.bf16.msra.mxu0 %v646
        %680 = vmatprep.subr.bf16.mxu0 0
        %681 = vmatpush1.bf16.msra.mxu0 %v647
        %682 = vmatprep.subr.bf16.mxu0 0
        %683 = vmatpush1.bf16.msra.mxu0 %v648
        %684 = vmatprep.subr.bf16.mxu0 0
        %685 = vmatpush1.bf16.msra.mxu0 %v649
        %686 = vmatprep.subr.bf16.mxu0 0
        %687 = vmatpush1.bf16.msra.mxu0 %v650
        %688 = vmatprep.subr.bf16.mxu0 0
        %689 = vmatpush1.bf16.msra.mxu0 %v651
        %690 = vmatprep.subr.bf16.mxu0 0
        %691 = vmatpush1.bf16.msra.mxu0 %v652
        %692 = vmatprep.subr.bf16.mxu0 0
        %693 = vmatpush1.bf16.msra.mxu0 %v653
        %694 = vmatprep.subr.bf16.mxu0 0
        %695 = vmatpush1.bf16.msra.mxu0 %v654
        %696 = vmatprep.subr.bf16.mxu0 0
        %697 = vmatpush1.bf16.msra.mxu0 %v655
        %698 = vmatprep.subr.bf16.mxu0 0
        %699 = vmatpush1.bf16.msra.mxu0 %v656
        %700 = vmatprep.subr.bf16.mxu0 0
        %701 = vmatpush1.bf16.msra.mxu0 %v657
        %702 = vmatprep.subr.bf16.mxu0 0
        %703 = vmatpush1.bf16.msra.mxu0 %v658
        %704 = vmatprep.subr.bf16.mxu0 0
        %705 = vmatpush1.bf16.msra.mxu0 %v659
        %706 = vmatprep.subr.bf16.mxu0 0
        %707 = vmatpush1.bf16.msra.mxu0 %v660
        %708 = vmatprep.subr.bf16.mxu0 0
        %709 = vmatpush1.bf16.msra.mxu0 %v661
        %710 = vmatprep.mubr.bf16.mxu0 %v575
        %711 = vmatmul.mubr.bf16.gmra.mrb[0].mxu0 %v574
        %v712 = vpop.f32.mrb[0].mxu0
        %v713 = vadd.f32 0.0, %v712
        %v714 = vpop.f32.mrb[0].mxu0
        %v715 = vpop.f32.mrb[0].mxu0
        %v716 = vadd.f32 0.0, %v715
        %v717 = vpop.f32.mrb[0].mxu0
        %718 = vmatprep.mubr.bf16.mxu0 %v577
        %719 = vmatmul.mubr.bf16.gmra.mrb[0].mxu0 %v576
        %v720 = vpop.f32.mrb[0].mxu0
        %v721 = vadd.f32 0.0, %v720
        %v722 = vpop.f32.mrb[0].mxu0
        %v723 = vpop.f32.mrb[0].mxu0
        %v724 = vadd.f32 0.0, %v723
        %v725 = vpop.f32.mrb[0].mxu0
        %726 = vmatprep.mubr.bf16.mxu0 %v579
        %727 = vmatmul.mubr.bf16.gmra.mrb[0].mxu0 %v578
        %v728 = vpop.f32.mrb[0].mxu0
        %v729 = vadd.f32 0.0, %v728
        %v730 = vpop.f32.mrb[0].mxu0
        %v731 = vpop.f32.mrb[0].mxu0
        %v732 = vadd.f32 0.0, %v731
        %v733 = vpop.f32.mrb[0].mxu0
        %734 = vmatprep.mubr.bf16.mxu0 %v581
        %735 = vmatmul.mubr.bf16.gmra.mrb[0].mxu0 %v580
        %v736 = vpop.f32.mrb[0].mxu0
        %v737 = vadd.f32 0.0, %v736
        %v738 = vpop.f32.mrb[0].mxu0
        %v739 = vpop.f32.mrb[0].mxu0
        %v740 = vadd.f32 0.0, %v739
        %v741 = vpop.f32.mrb[0].mxu0
        %742 = vdwg.mxu0
        %v743 = vrcp.pop %v552
        %v744 = vrcp.pop %v555
        %v745 = vrcp.pop %v558
        %v746 = vrcp.pop %v561
        %v747 = vrcp.pop %v564
        %v748 = vrcp.pop %v567
        %v749 = vrcp.pop %v570
        %v750 = vrcp.pop %v573
        %v751 = vmul.f32 %v713, %v743
        %v752 = vmul.f32 %v716, %v744
        %v753 = vmul.f32 %v721, %v745
        %v754 = vmul.f32 %v724, %v746
        %v755 = vmul.f32 %v729, %v747
        %v756 = vmul.f32 %v732, %v748
        %v757 = vmul.f32 %v737, %v749
        %v758 = vmul.f32 %v740, %v750
        %759 = vst.msk [vmem:[#allocation2] sm:$0xff] %vm392, %v751
        %760 = vst.msk [vmem:[#allocation2 + $0x8] sm:$0xff] %vm392, %v752
        %761 = vst.msk [vmem:[#allocation2 + $0x10] sm:$0xff] %vm392, %v753
        %762 = vst.msk [vmem:[#allocation2 + $0x18] sm:$0xff] %vm392, %v754
        %763 = vst.msk [vmem:[#allocation2 + $0x20] sm:$0xff] %vm392, %v755
        %764 = vst.msk [vmem:[#allocation2 + $0x28] sm:$0xff] %vm392, %v756
        %765 = vst.msk [vmem:[#allocation2 + $0x30] sm:$0xff] %vm392, %v757
        %766 = vst.msk [vmem:[#allocation2 + $0x38] sm:$0xff] %vm392, %v758
        %v767 = vld [vmem:[%s277] sm:$0xf]
        %v768 = vld [vmem:[%s277 + $0x4] sm:$0xf]
        %v769 = vld [vmem:[%s277 + $0x8] sm:$0xf]
        %v770 = vld [vmem:[%s277 + $0xc] sm:$0xf]
        %v771 = vld [vmem:[%s277 + $0x10] sm:$0xf]
        %v772 = vld [vmem:[%s277 + $0x14] sm:$0xf]
        %v773 = vld [vmem:[%s277 + $0x18] sm:$0xf]
        %v774 = vld [vmem:[%s277 + $0x1c] sm:$0xf]
        %v783 = vunpack.c.l.b16 %v767
        %v784 = vunpack.c.l.b16 %v768
        %v785 = vunpack.c.l.b16 %v769
        %v786 = vunpack.c.l.b16 %v770
        %v787 = vunpack.c.l.b16 %v771
        %v788 = vunpack.c.l.b16 %v772
        %v789 = vunpack.c.l.b16 %v773
        %v790 = vunpack.c.l.b16 %v774
        %v791 = vpack.c.b16 %v784, %v783
        %v792 = vpack.c.b16 %v786, %v785
        %v793 = vpack.c.b16 %v788, %v787
        %v794 = vpack.c.b16 %v790, %v789
        %795 = vrot.lane.b32.xlu0 %v791, 112
        %v796 = vpop.permute.xlu0 %795
        %797 = vrot.lane.b32.xlu0 %v792, 112
        %v798 = vpop.permute.xlu0 %797
        %799 = vrot.lane.b32.xlu0 %v793, 112
        %v800 = vpop.permute.xlu0 %799
        %801 = vrot.lane.b32.xlu0 %v794, 112
        %v802 = vpop.permute.xlu0 %801
        %v804 = vsel %vm392, %v796, 0
        %v807 = vsel %vm392, %v798, 0
        %v810 = vsel %vm392, %v800, 0
        %v813 = vsel %vm392, %v802, 0
        %815 = vmatprep.subr.bf16.mxu0 %v389
        %816 = vmatpush1.bf16.msra.mxu0 %v388
        %817 = vmatprep.subr.bf16.mxu0 0
        %818 = vmatpush1.bf16.msra.mxu0 0
        %819 = vmatprep.subr.bf16.mxu0 0
        %820 = vmatpush1.bf16.msra.mxu0 0
        %821 = vmatprep.subr.bf16.mxu0 0
        %822 = vmatpush1.bf16.msra.mxu0 0
        %823 = vmatprep.subr.bf16.mxu0 0
        %824 = vmatpush1.bf16.msra.mxu0 0
        %825 = vmatprep.subr.bf16.mxu0 0
        %826 = vmatpush1.bf16.msra.mxu0 0
        %827 = vmatprep.subr.bf16.mxu0 0
        %828 = vmatpush1.bf16.msra.mxu0 0
        %829 = vmatprep.subr.bf16.mxu0 0
        %830 = vmatpush1.bf16.msra.mxu0 0
        %831 = vmatprep.subr.bf16.mxu0 0
        %832 = vmatpush1.bf16.msra.mxu0 0
        %833 = vmatprep.subr.bf16.mxu0 0
        %834 = vmatpush1.bf16.msra.mxu0 0
        %835 = vmatprep.subr.bf16.mxu0 0
        %836 = vmatpush1.bf16.msra.mxu0 0
        %837 = vmatprep.subr.bf16.mxu0 0
        %838 = vmatpush1.bf16.msra.mxu0 0
        %839 = vmatprep.subr.bf16.mxu0 0
        %840 = vmatpush1.bf16.msra.mxu0 0
        %841 = vmatprep.subr.bf16.mxu0 0
        %842 = vmatpush1.bf16.msra.mxu0 0
        %843 = vmatprep.subr.bf16.mxu0 0
        %844 = vmatpush1.bf16.msra.mxu0 0
        %845 = vmatprep.subr.bf16.mxu0 0
        %846 = vmatpush1.bf16.msra.mxu0 0
        %847 = vmatprep.mubr.bf16.mxu0 0
        %848 = vmatmul.mubr.bf16.gmra.mrb[0].mxu0 %v804
        %v849 = vpop.f32.mrb[0].mxu0
        %v850 = vadd.f32 0.0, %v849
        %v851 = vpop.f32.mrb[0].mxu0
        %v852 = vadd.f32 0.0, %v851
        %v853 = vpop.f32.mrb[0].mxu0
        %v854 = vadd.f32 0.0, %v853
        %v855 = vpop.f32.mrb[0].mxu0
        %v856 = vadd.f32 0.0, %v855
        %857 = vmatprep.mubr.bf16.mxu0 0
        %858 = vmatmul.mubr.bf16.gmra.mrb[0].mxu0 %v807
        %v859 = vpop.f32.mrb[0].mxu0
        %v860 = vadd.f32 0.0, %v859
        %v861 = vpop.f32.mrb[0].mxu0
        %v862 = vadd.f32 0.0, %v861
        %v863 = vpop.f32.mrb[0].mxu0
        %v864 = vadd.f32 0.0, %v863
        %v865 = vpop.f32.mrb[0].mxu0
        %v866 = vadd.f32 0.0, %v865
        %867 = vmatprep.mubr.bf16.mxu0 0
        %868 = vmatmul.mubr.bf16.gmra.mrb[0].mxu0 %v810
        %v869 = vpop.f32.mrb[0].mxu0
        %v870 = vadd.f32 0.0, %v869
        %v871 = vpop.f32.mrb[0].mxu0
        %v872 = vadd.f32 0.0, %v871
        %v873 = vpop.f32.mrb[0].mxu0
        %v874 = vadd.f32 0.0, %v873
        %v875 = vpop.f32.mrb[0].mxu0
        %v876 = vadd.f32 0.0, %v875
        %877 = vmatprep.mubr.bf16.mxu0 0
        %878 = vmatmul.mubr.bf16.gmra.mrb[0].mxu0 %v813
        %v879 = vpop.f32.mrb[0].mxu0
        %v880 = vadd.f32 0.0, %v879
        %v881 = vpop.f32.mrb[0].mxu0
        %v882 = vadd.f32 0.0, %v881
        %v883 = vpop.f32.mrb[0].mxu0
        %v884 = vadd.f32 0.0, %v883
        %v885 = vpop.f32.mrb[0].mxu0
        %v886 = vadd.f32 0.0, %v885
        %887 = vdwg.mxu0
        %v888 = vmax.f32 %v850, %v852
        %889 = vmax.xlane.f32.xlu0 %v888
        %v890 = vpop.xlane.xlu0 %889
        %v891 = vmax.f32 %v854, %v856
        %892 = vmax.xlane.f32.xlu0 %v891
        %v893 = vpop.xlane.xlu0 %892
        %v894 = vmax.f32 %v860, %v862
        %895 = vmax.xlane.f32.xlu0 %v894
        %v896 = vpop.xlane.xlu0 %895
        %v897 = vmax.f32 %v864, %v866
        %898 = vmax.xlane.f32.xlu0 %v897
        %v899 = vpop.xlane.xlu0 %898
        %v900 = vmax.f32 %v870, %v872
        %901 = vmax.xlane.f32.xlu0 %v900
        %v902 = vpop.xlane.xlu0 %901
        %v903 = vmax.f32 %v874, %v876
        %904 = vmax.xlane.f32.xlu0 %v903
        %v905 = vpop.xlane.xlu0 %904
        %v906 = vmax.f32 %v880, %v882
        %907 = vmax.xlane.f32.xlu0 %v906
        %v908 = vpop.xlane.xlu0 %907
        %v909 = vmax.f32 %v884, %v886
        %910 = vmax.xlane.f32.xlu0 %v909
        %v911 = vpop.xlane.xlu0 %910
        %v912 = vsub.f32 %v850, %v890
        %v913 = vsub.f32 %v852, %v890
        %v914 = vsub.f32 %v854, %v893
        %v915 = vsub.f32 %v856, %v893
        %v916 = vsub.f32 %v860, %v896
        %v917 = vsub.f32 %v862, %v896
        %v918 = vsub.f32 %v864, %v899
        %v919 = vsub.f32 %v866, %v899
        %v920 = vsub.f32 %v870, %v902
        %v921 = vsub.f32 %v872, %v902
        %v922 = vsub.f32 %v874, %v905
        %v923 = vsub.f32 %v876, %v905
        %v924 = vsub.f32 %v880, %v908
        %v925 = vsub.f32 %v882, %v908
        %v926 = vsub.f32 %v884, %v911
        %v927 = vsub.f32 %v886, %v911
        %v928 = vmul.f32 %v912, 1.442695
        %v929 = vpow.pop %v928
        %v930 = vmul.f32 %v913, 1.442695
        %v931 = vpow.pop %v930
        %v932 = vmul.f32 %v914, 1.442695
        %v933 = vpow.pop %v932
        %v934 = vmul.f32 %v915, 1.442695
        %v935 = vpow.pop %v934
        %v936 = vmul.f32 %v916, 1.442695
        %v937 = vpow.pop %v936
        %v938 = vmul.f32 %v917, 1.442695
        %v939 = vpow.pop %v938
        %v940 = vmul.f32 %v918, 1.442695
        %v941 = vpow.pop %v940
        %v942 = vmul.f32 %v919, 1.442695
        %v943 = vpow.pop %v942
        %v944 = vmul.f32 %v920, 1.442695
        %v945 = vpow.pop %v944
        %v946 = vmul.f32 %v921, 1.442695
        %v947 = vpow.pop %v946
        %v948 = vmul.f32 %v922, 1.442695
        %v949 = vpow.pop %v948
        %v950 = vmul.f32 %v923, 1.442695
        %v951 = vpow.pop %v950
        %v952 = vmul.f32 %v924, 1.442695
        %v953 = vpow.pop %v952
        %v954 = vmul.f32 %v925, 1.442695
        %v955 = vpow.pop %v954
        %v956 = vmul.f32 %v926, 1.442695
        %v957 = vpow.pop %v956
        %v958 = vmul.f32 %v927, 1.442695
        %v959 = vpow.pop %v958
        %v960 = vadd.f32 %v929, %v931
        %961 = vadd.xlane.f32.xlu0 %v960
        %v962 = vpop.xlane.xlu0 %961
        %v963 = vadd.f32 %v933, %v935
        %964 = vadd.xlane.f32.xlu0 %v963
        %v965 = vpop.xlane.xlu0 %964
        %v966 = vadd.f32 %v937, %v939
        %967 = vadd.xlane.f32.xlu0 %v966
        %v968 = vpop.xlane.xlu0 %967
        %v969 = vadd.f32 %v941, %v943
        %970 = vadd.xlane.f32.xlu0 %v969
        %v971 = vpop.xlane.xlu0 %970
        %v972 = vadd.f32 %v945, %v947
        %973 = vadd.xlane.f32.xlu0 %v972
        %v974 = vpop.xlane.xlu0 %973
        %v975 = vadd.f32 %v949, %v951
        %976 = vadd.xlane.f32.xlu0 %v975
        %v977 = vpop.xlane.xlu0 %976
        %v978 = vadd.f32 %v953, %v955
        %979 = vadd.xlane.f32.xlu0 %v978
        %v980 = vpop.xlane.xlu0 %979
        %v981 = vadd.f32 %v957, %v959
        %982 = vadd.xlane.f32.xlu0 %v981
        %v983 = vpop.xlane.xlu0 %982
        %v984 = vpack.c.bf16 %v933, %v929
        %v985 = vpack.c.bf16 %v935, %v931
        %v986 = vpack.c.bf16 %v941, %v937
        %v987 = vpack.c.bf16 %v943, %v939
        %v988 = vpack.c.bf16 %v949, %v945
        %v989 = vpack.c.bf16 %v951, %v947
        %v990 = vpack.c.bf16 %v957, %v953
        %v991 = vpack.c.bf16 %v959, %v955
        %992 = vmatprep.subr.bf16.mxu0 0
        %993 = vmatpush1.bf16.msra.mxu0 %v646
        %994 = vmatprep.subr.bf16.mxu0 0
        %995 = vmatpush1.bf16.msra.mxu0 %v647
        %996 = vmatprep.subr.bf16.mxu0 0
        %997 = vmatpush1.bf16.msra.mxu0 %v648
        %998 = vmatprep.subr.bf16.mxu0 0
        %999 = vmatpush1.bf16.msra.mxu0 %v649
        %1000 = vmatprep.subr.bf16.mxu0 0
        %1001 = vmatpush1.bf16.msra.mxu0 %v650
        %1002 = vmatprep.subr.bf16.mxu0 0
        %1003 = vmatpush1.bf16.msra.mxu0 %v651
        %1004 = vmatprep.subr.bf16.mxu0 0
        %1005 = vmatpush1.bf16.msra.mxu0 %v652
        %1006 = vmatprep.subr.bf16.mxu0 0
        %1007 = vmatpush1.bf16.msra.mxu0 %v653
        %1008 = vmatprep.subr.bf16.mxu0 0
        %1009 = vmatpush1.bf16.msra.mxu0 %v654
        %1010 = vmatprep.subr.bf16.mxu0 0
        %1011 = vmatpush1.bf16.msra.mxu0 %v655
        %1012 = vmatprep.subr.bf16.mxu0 0
        %1013 = vmatpush1.bf16.msra.mxu0 %v656
        %1014 = vmatprep.subr.bf16.mxu0 0
        %1015 = vmatpush1.bf16.msra.mxu0 %v657
        %1016 = vmatprep.subr.bf16.mxu0 0
        %1017 = vmatpush1.bf16.msra.mxu0 %v658
        %1018 = vmatprep.subr.bf16.mxu0 0
        %1019 = vmatpush1.bf16.msra.mxu0 %v659
        %1020 = vmatprep.subr.bf16.mxu0 0
        %1021 = vmatpush1.bf16.msra.mxu0 %v660
        %1022 = vmatprep.subr.bf16.mxu0 0
        %1023 = vmatpush1.bf16.msra.mxu0 %v661
        %1024 = vmatprep.mubr.bf16.mxu0 %v985
        %1025 = vmatmul.mubr.bf16.gmra.mrb[0].mxu0 %v984
        %v1026 = vpop.f32.mrb[0].mxu0
        %v1027 = vadd.f32 0.0, %v1026
        %v1028 = vpop.f32.mrb[0].mxu0
        %v1029 = vpop.f32.mrb[0].mxu0
        %v1030 = vadd.f32 0.0, %v1029
        %v1031 = vpop.f32.mrb[0].mxu0
        %1032 = vmatprep.mubr.bf16.mxu0 %v987
        %1033 = vmatmul.mubr.bf16.gmra.mrb[0].mxu0 %v986
        %v1034 = vpop.f32.mrb[0].mxu0
        %v1035 = vadd.f32 0.0, %v1034
        %v1036 = vpop.f32.mrb[0].mxu0
        %v1037 = vpop.f32.mrb[0].mxu0
        %v1038 = vadd.f32 0.0, %v1037
        %v1039 = vpop.f32.mrb[0].mxu0
        %1040 = vmatprep.mubr.bf16.mxu0 %v989
        %1041 = vmatmul.mubr.bf16.gmra.mrb[0].mxu0 %v988
        %v1042 = vpop.f32.mrb[0].mxu0
        %v1043 = vadd.f32 0.0, %v1042
        %v1044 = vpop.f32.mrb[0].mxu0
        %v1045 = vpop.f32.mrb[0].mxu0
        %v1046 = vadd.f32 0.0, %v1045
        %v1047 = vpop.f32.mrb[0].mxu0
        %1048 = vmatprep.mubr.bf16.mxu0 %v991
        %1049 = vmatmul.mubr.bf16.gmra.mrb[0].mxu0 %v990
        %v1050 = vpop.f32.mrb[0].mxu0
        %v1051 = vadd.f32 0.0, %v1050
        %v1052 = vpop.f32.mrb[0].mxu0
        %v1053 = vpop.f32.mrb[0].mxu0
        %v1054 = vadd.f32 0.0, %v1053
        %v1055 = vpop.f32.mrb[0].mxu0
        %1056 = vdwg.mxu0
        %v1057 = vrcp.pop %v962
        %v1058 = vrcp.pop %v965
        %v1059 = vrcp.pop %v968
        %v1060 = vrcp.pop %v971
        %v1061 = vrcp.pop %v974
        %v1062 = vrcp.pop %v977
        %v1063 = vrcp.pop %v980
        %v1064 = vrcp.pop %v983
        %v1065 = vmul.f32 %v1027, %v1057
        %v1066 = vmul.f32 %v1030, %v1058
        %v1067 = vmul.f32 %v1035, %v1059
        %v1068 = vmul.f32 %v1038, %v1060
        %v1069 = vmul.f32 %v1043, %v1061
        %v1070 = vmul.f32 %v1046, %v1062
        %v1071 = vmul.f32 %v1051, %v1063
        %v1072 = vmul.f32 %v1054, %v1064
        %1081 = vrot.lane.b32.xlu0 %v1065, 16
        %v1082 = vpop.permute.xlu0 %1081
        %1083 = vrot.lane.b32.xlu0 %v1066, 16
        %v1084 = vpop.permute.xlu0 %1083
        %1085 = vrot.lane.b32.xlu0 %v1067, 16
        %v1086 = vpop.permute.xlu0 %1085
        %1087 = vrot.lane.b32.xlu0 %v1068, 16
        %v1088 = vpop.permute.xlu0 %1087
        %1089 = vrot.lane.b32.xlu0 %v1069, 16
        %v1090 = vpop.permute.xlu0 %1089
        %1091 = vrot.lane.b32.xlu0 %v1070, 16
        %v1092 = vpop.permute.xlu0 %1091
        %1093 = vrot.lane.b32.xlu0 %v1071, 16
        %v1094 = vpop.permute.xlu0 %1093
        %1095 = vrot.lane.b32.xlu0 %v1072, 16
        %v1096 = vpop.permute.xlu0 %1095
        %vm1105 = vcmask 261248
        %1106 = vst.msk [vmem:[#allocation2] sm:$0xff] %vm1105, %v1082
        %1107 = vst.msk [vmem:[#allocation2 + $0x8] sm:$0xff] %vm1105, %v1084
        %1108 = vst.msk [vmem:[#allocation2 + $0x10] sm:$0xff] %vm1105, %v1086
        %1109 = vst.msk [vmem:[#allocation2 + $0x18] sm:$0xff] %vm1105, %v1088
        %1110 = vst.msk [vmem:[#allocation2 + $0x20] sm:$0xff] %vm1105, %v1090
        %1111 = vst.msk [vmem:[#allocation2 + $0x28] sm:$0xff] %vm1105, %v1092
        %1112 = vst.msk [vmem:[#allocation2 + $0x30] sm:$0xff] %vm1105, %v1094
        %1113 = vst.msk [vmem:[#allocation2 + $0x38] sm:$0xff] %vm1105, %v1096
        %v1114 = vld [vmem:[%s277] sm:$0xf]
        %v1115 = vld [vmem:[%s277 + $0x4] sm:$0xf]
        %v1116 = vld [vmem:[%s277 + $0x8] sm:$0xf]
        %v1117 = vld [vmem:[%s277 + $0xc] sm:$0xf]
        %v1118 = vld [vmem:[%s277 + $0x10] sm:$0xf]
        %v1119 = vld [vmem:[%s277 + $0x14] sm:$0xf]
        %v1120 = vld [vmem:[%s277 + $0x18] sm:$0xf]
        %v1121 = vld [vmem:[%s277 + $0x1c] sm:$0xf]
        %v1130 = vunpack.c.l.b16 %v1114
        %v1131 = vunpack.c.l.b16 %v1115
        %v1132 = vunpack.c.l.b16 %v1116
        %v1133 = vunpack.c.l.b16 %v1117
        %v1134 = vunpack.c.l.b16 %v1118
        %v1135 = vunpack.c.l.b16 %v1119
        %v1136 = vunpack.c.l.b16 %v1120
        %v1137 = vunpack.c.l.b16 %v1121
        %v1138 = vpack.c.b16 %v1131, %v1130
        %v1139 = vpack.c.b16 %v1133, %v1132
        %v1140 = vpack.c.b16 %v1135, %v1134
        %v1141 = vpack.c.b16 %v1137, %v1136
        %1142 = vrot.lane.b32.xlu0 %v1138, 96
        %v1143 = vpop.permute.xlu0 %1142
        %1144 = vrot.lane.b32.xlu0 %v1139, 96
        %v1145 = vpop.permute.xlu0 %1144
        %1146 = vrot.lane.b32.xlu0 %v1140, 96
        %v1147 = vpop.permute.xlu0 %1146
        %1148 = vrot.lane.b32.xlu0 %v1141, 96
        %v1149 = vpop.permute.xlu0 %1148
        %v1151 = vsel %vm392, %v1143, 0
        %v1154 = vsel %vm392, %v1145, 0
        %v1157 = vsel %vm392, %v1147, 0
        %v1160 = vsel %vm392, %v1149, 0
        %1162 = vmatprep.subr.bf16.mxu0 %v389
        %1163 = vmatpush1.bf16.msra.mxu0 %v388
        %1164 = vmatprep.subr.bf16.mxu0 0
        %1165 = vmatpush1.bf16.msra.mxu0 0
        %1166 = vmatprep.subr.bf16.mxu0 0
        %1167 = vmatpush1.bf16.msra.mxu0 0
        %1168 = vmatprep.subr.bf16.mxu0 0
        %1169 = vmatpush1.bf16.msra.mxu0 0
        %1170 = vmatprep.subr.bf16.mxu0 0
        %1171 = vmatpush1.bf16.msra.mxu0 0
        %1172 = vmatprep.subr.bf16.mxu0 0
        %1173 = vmatpush1.bf16.msra.mxu0 0
        %1174 = vmatprep.subr.bf16.mxu0 0
        %1175 = vmatpush1.bf16.msra.mxu0 0
        %1176 = vmatprep.subr.bf16.mxu0 0
        %1177 = vmatpush1.bf16.msra.mxu0 0
        %1178 = vmatprep.subr.bf16.mxu0 0
        %1179 = vmatpush1.bf16.msra.mxu0 0
        %1180 = vmatprep.subr.bf16.mxu0 0
        %1181 = vmatpush1.bf16.msra.mxu0 0
        %1182 = vmatprep.subr.bf16.mxu0 0
        %1183 = vmatpush1.bf16.msra.mxu0 0
        %1184 = vmatprep.subr.bf16.mxu0 0
        %1185 = vmatpush1.bf16.msra.mxu0 0
        %1186 = vmatprep.subr.bf16.mxu0 0
        %1187 = vmatpush1.bf16.msra.mxu0 0
        %1188 = vmatprep.subr.bf16.mxu0 0
        %1189 = vmatpush1.bf16.msra.mxu0 0
        %1190 = vmatprep.subr.bf16.mxu0 0
        %1191 = vmatpush1.bf16.msra.mxu0 0
        %1192 = vmatprep.subr.bf16.mxu0 0
        %1193 = vmatpush1.bf16.msra.mxu0 0
        %1194 = vmatprep.mubr.bf16.mxu0 0
        %1195 = vmatmul.mubr.bf16.gmra.mrb[0].mxu0 %v1151
        %v1196 = vpop.f32.mrb[0].mxu0
        %v1197 = vadd.f32 0.0, %v1196
        %v1198 = vpop.f32.mrb[0].mxu0
        %v1199 = vadd.f32 0.0, %v1198
        %v1200 = vpop.f32.mrb[0].mxu0
        %v1201 = vadd.f32 0.0, %v1200
        %v1202 = vpop.f32.mrb[0].mxu0
        %v1203 = vadd.f32 0.0, %v1202
        %1204 = vmatprep.mubr.bf16.mxu0 0
        %1205 = vmatmul.mubr.bf16.gmra.mrb[0].mxu0 %v1154
        %v1206 = vpop.f32.mrb[0].mxu0
        %v1207 = vadd.f32 0.0, %v1206
        %v1208 = vpop.f32.mrb[0].mxu0
        %v1209 = vadd.f32 0.0, %v1208
        %v1210 = vpop.f32.mrb[0].mxu0
        %v1211 = vadd.f32 0.0, %v1210
        %v1212 = vpop.f32.mrb[0].mxu0
        %v1213 = vadd.f32 0.0, %v1212
        %1214 = vmatprep.mubr.bf16.mxu0 0
        %1215 = vmatmul.mubr.bf16.gmra.mrb[0].mxu0 %v1157
        %v1216 = vpop.f32.mrb[0].mxu0
        %v1217 = vadd.f32 0.0, %v1216
        %v1218 = vpop.f32.mrb[0].mxu0
        %v1219 = vadd.f32 0.0, %v1218
        %v1220 = vpop.f32.mrb[0].mxu0
        %v1221 = vadd.f32 0.0, %v1220
        %v1222 = vpop.f32.mrb[0].mxu0
        %v1223 = vadd.f32 0.0, %v1222
        %1224 = vmatprep.mubr.bf16.mxu0 0
        %1225 = vmatmul.mubr.bf16.gmra.mrb[0].mxu0 %v1160
        %v1226 = vpop.f32.mrb[0].mxu0
        %v1227 = vadd.f32 0.0, %v1226
        %v1228 = vpop.f32.mrb[0].mxu0
        %v1229 = vadd.f32 0.0, %v1228
        %v1230 = vpop.f32.mrb[0].mxu0
        %v1231 = vadd.f32 0.0, %v1230
        %v1232 = vpop.f32.mrb[0].mxu0
        %v1233 = vadd.f32 0.0, %v1232
        %1234 = vdwg.mxu0
        %v1235 = vmax.f32 %v1197, %v1199
        %1236 = vmax.xlane.f32.xlu0 %v1235
        %v1237 = vpop.xlane.xlu0 %1236
        %v1238 = vmax.f32 %v1201, %v1203
        %1239 = vmax.xlane.f32.xlu0 %v1238
        %v1240 = vpop.xlane.xlu0 %1239
        %v1241 = vmax.f32 %v1207, %v1209
        %1242 = vmax.xlane.f32.xlu0 %v1241
        %v1243 = vpop.xlane.xlu0 %1242
        %v1244 = vmax.f32 %v1211, %v1213
        %1245 = vmax.xlane.f32.xlu0 %v1244
        %v1246 = vpop.xlane.xlu0 %1245
        %v1247 = vmax.f32 %v1217, %v1219
        %1248 = vmax.xlane.f32.xlu0 %v1247
        %v1249 = vpop.xlane.xlu0 %1248
        %v1250 = vmax.f32 %v1221, %v1223
        %1251 = vmax.xlane.f32.xlu0 %v1250
        %v1252 = vpop.xlane.xlu0 %1251
        %v1253 = vmax.f32 %v1227, %v1229
        %1254 = vmax.xlane.f32.xlu0 %v1253
        %v1255 = vpop.xlane.xlu0 %1254
        %v1256 = vmax.f32 %v1231, %v1233
        %1257 = vmax.xlane.f32.xlu0 %v1256
        %v1258 = vpop.xlane.xlu0 %1257
        %v1259 = vsub.f32 %v1197, %v1237
        %v1260 = vsub.f32 %v1199, %v1237
        %v1261 = vsub.f32 %v1201, %v1240
        %v1262 = vsub.f32 %v1203, %v1240
        %v1263 = vsub.f32 %v1207, %v1243
        %v1264 = vsub.f32 %v1209, %v1243
        %v1265 = vsub.f32 %v1211, %v1246
        %v1266 = vsub.f32 %v1213, %v1246
        %v1267 = vsub.f32 %v1217, %v1249
        %v1268 = vsub.f32 %v1219, %v1249
        %v1269 = vsub.f32 %v1221, %v1252
        %v1270 = vsub.f32 %v1223, %v1252
        %v1271 = vsub.f32 %v1227, %v1255
        %v1272 = vsub.f32 %v1229, %v1255
        %v1273 = vsub.f32 %v1231, %v1258
        %v1274 = vsub.f32 %v1233, %v1258
        %v1275 = vmul.f32 %v1259, 1.442695
        %v1276 = vpow.pop %v1275
        %v1277 = vmul.f32 %v1260, 1.442695
        %v1278 = vpow.pop %v1277
        %v1279 = vmul.f32 %v1261, 1.442695
        %v1280 = vpow.pop %v1279
        %v1281 = vmul.f32 %v1262, 1.442695
        %v1282 = vpow.pop %v1281
        %v1283 = vmul.f32 %v1263, 1.442695
        %v1284 = vpow.pop %v1283
        %v1285 = vmul.f32 %v1264, 1.442695
        %v1286 = vpow.pop %v1285
        %v1287 = vmul.f32 %v1265, 1.442695
        %v1288 = vpow.pop %v1287
        %v1289 = vmul.f32 %v1266, 1.442695
        %v1290 = vpow.pop %v1289
        %v1291 = vmul.f32 %v1267, 1.442695
        %v1292 = vpow.pop %v1291
        %v1293 = vmul.f32 %v1268, 1.442695
        %v1294 = vpow.pop %v1293
        %v1295 = vmul.f32 %v1269, 1.442695
        %v1296 = vpow.pop %v1295
        %v1297 = vmul.f32 %v1270, 1.442695
        %v1298 = vpow.pop %v1297
        %v1299 = vmul.f32 %v1271, 1.442695
        %v1300 = vpow.pop %v1299
        %v1301 = vmul.f32 %v1272, 1.442695
        %v1302 = vpow.pop %v1301
        %v1303 = vmul.f32 %v1273, 1.442695
        %v1304 = vpow.pop %v1303
        %v1305 = vmul.f32 %v1274, 1.442695
        %v1306 = vpow.pop %v1305
        %v1307 = vadd.f32 %v1276, %v1278
        %1308 = vadd.xlane.f32.xlu0 %v1307
        %v1309 = vpop.xlane.xlu0 %1308
        %v1310 = vadd.f32 %v1280, %v1282
        %1311 = vadd.xlane.f32.xlu0 %v1310
        %v1312 = vpop.xlane.xlu0 %1311
        %v1313 = vadd.f32 %v1284, %v1286
        %1314 = vadd.xlane.f32.xlu0 %v1313
        %v1315 = vpop.xlane.xlu0 %1314
        %v1316 = vadd.f32 %v1288, %v1290
        %1317 = vadd.xlane.f32.xlu0 %v1316
        %v1318 = vpop.xlane.xlu0 %1317
        %v1319 = vadd.f32 %v1292, %v1294
        %1320 = vadd.xlane.f32.xlu0 %v1319
        %v1321 = vpop.xlane.xlu0 %1320
        %v1322 = vadd.f32 %v1296, %v1298
        %1323 = vadd.xlane.f32.xlu0 %v1322
        %v1324 = vpop.xlane.xlu0 %1323
        %v1325 = vadd.f32 %v1300, %v1302
        %1326 = vadd.xlane.f32.xlu0 %v1325
        %v1327 = vpop.xlane.xlu0 %1326
        %v1328 = vadd.f32 %v1304, %v1306
        %1329 = vadd.xlane.f32.xlu0 %v1328
        %v1330 = vpop.xlane.xlu0 %1329
        %v1331 = vpack.c.bf16 %v1280, %v1276
        %v1332 = vpack.c.bf16 %v1282, %v1278
        %v1333 = vpack.c.bf16 %v1288, %v1284
        %v1334 = vpack.c.bf16 %v1290, %v1286
        %v1335 = vpack.c.bf16 %v1296, %v1292
        %v1336 = vpack.c.bf16 %v1298, %v1294
        %v1337 = vpack.c.bf16 %v1304, %v1300
        %v1338 = vpack.c.bf16 %v1306, %v1302
        %1339 = vmatprep.subr.bf16.mxu0 0
        %1340 = vmatpush1.bf16.msra.mxu0 %v646
        %1341 = vmatprep.subr.bf16.mxu0 0
        %1342 = vmatpush1.bf16.msra.mxu0 %v647
        %1343 = vmatprep.subr.bf16.mxu0 0
        %1344 = vmatpush1.bf16.msra.mxu0 %v648
        %1345 = vmatprep.subr.bf16.mxu0 0
        %1346 = vmatpush1.bf16.msra.mxu0 %v649
        %1347 = vmatprep.subr.bf16.mxu0 0
        %1348 = vmatpush1.bf16.msra.mxu0 %v650
        %1349 = vmatprep.subr.bf16.mxu0 0
        %1350 = vmatpush1.bf16.msra.mxu0 %v651
        %1351 = vmatprep.subr.bf16.mxu0 0
        %1352 = vmatpush1.bf16.msra.mxu0 %v652
        %1353 = vmatprep.subr.bf16.mxu0 0
        %1354 = vmatpush1.bf16.msra.mxu0 %v653
        %1355 = vmatprep.subr.bf16.mxu0 0
        %1356 = vmatpush1.bf16.msra.mxu0 %v654
        %1357 = vmatprep.subr.bf16.mxu0 0
        %1358 = vmatpush1.bf16.msra.mxu0 %v655
        %1359 = vmatprep.subr.bf16.mxu0 0
        %1360 = vmatpush1.bf16.msra.mxu0 %v656
        %1361 = vmatprep.subr.bf16.mxu0 0
        %1362 = vmatpush1.bf16.msra.mxu0 %v657
        %1363 = vmatprep.subr.bf16.mxu0 0
        %1364 = vmatpush1.bf16.msra.mxu0 %v658
        %1365 = vmatprep.subr.bf16.mxu0 0
        %1366 = vmatpush1.bf16.msra.mxu0 %v659
        %1367 = vmatprep.subr.bf16.mxu0 0
        %1368 = vmatpush1.bf16.msra.mxu0 %v660
        %1369 = vmatprep.subr.bf16.mxu0 0
        %1370 = vmatpush1.bf16.msra.mxu0 %v661
        %1371 = vmatprep.mubr.bf16.mxu0 %v1332
        %1372 = vmatmul.mubr.bf16.gmra.mrb[0].mxu0 %v1331
        %v1373 = vpop.f32.mrb[0].mxu0
        %v1374 = vadd.f32 0.0, %v1373
        %v1375 = vpop.f32.mrb[0].mxu0
        %v1376 = vpop.f32.mrb[0].mxu0
        %v1377 = vadd.f32 0.0, %v1376
        %v1378 = vpop.f32.mrb[0].mxu0
        %1379 = vmatprep.mubr.bf16.mxu0 %v1334
        %1380 = vmatmul.mubr.bf16.gmra.mrb[0].mxu0 %v1333
        %v1381 = vpop.f32.mrb[0].mxu0
        %v1382 = vadd.f32 0.0, %v1381
        %v1383 = vpop.f32.mrb[0].mxu0
        %v1384 = vpop.f32.mrb[0].mxu0
        %v1385 = vadd.f32 0.0, %v1384
        %v1386 = vpop.f32.mrb[0].mxu0
        %1387 = vmatprep.mubr.bf16.mxu0 %v1336
        %1388 = vmatmul.mubr.bf16.gmra.mrb[0].mxu0 %v1335
        %v1389 = vpop.f32.mrb[0].mxu0
        %v1390 = vadd.f32 0.0, %v1389
        %v1391 = vpop.f32.mrb[0].mxu0
        %v1392 = vpop.f32.mrb[0].mxu0
        %v1393 = vadd.f32 0.0, %v1392
        %v1394 = vpop.f32.mrb[0].mxu0
        %1395 = vmatprep.mubr.bf16.mxu0 %v1338
        %1396 = vmatmul.mubr.bf16.gmra.mrb[0].mxu0 %v1337
        %v1397 = vpop.f32.mrb[0].mxu0
        %v1398 = vadd.f32 0.0, %v1397
        %v1399 = vpop.f32.mrb[0].mxu0
        %v1400 = vpop.f32.mrb[0].mxu0
        %v1401 = vadd.f32 0.0, %v1400
        %v1402 = vpop.f32.mrb[0].mxu0
        %1403 = vdwg.mxu0
        %v1404 = vrcp.pop %v1309
        %v1405 = vrcp.pop %v1312
        %v1406 = vrcp.pop %v1315
        %v1407 = vrcp.pop %v1318
        %v1408 = vrcp.pop %v1321
        %v1409 = vrcp.pop %v1324
        %v1410 = vrcp.pop %v1327
        %v1411 = vrcp.pop %v1330
        %v1412 = vmul.f32 %v1374, %v1404
        %v1413 = vmul.f32 %v1377, %v1405
        %v1414 = vmul.f32 %v1382, %v1406
        %v1415 = vmul.f32 %v1385, %v1407
        %v1416 = vmul.f32 %v1390, %v1408
        %v1417 = vmul.f32 %v1393, %v1409
        %v1418 = vmul.f32 %v1398, %v1410
        %v1419 = vmul.f32 %v1401, %v1411
        %1428 = vrot.lane.b32.xlu0 %v1412, 32
        %v1429 = vpop.permute.xlu0 %1428
        %1430 = vrot.lane.b32.xlu0 %v1413, 32
        %v1431 = vpop.permute.xlu0 %1430
        %1432 = vrot.lane.b32.xlu0 %v1414, 32
        %v1433 = vpop.permute.xlu0 %1432
        %1434 = vrot.lane.b32.xlu0 %v1415, 32
        %v1435 = vpop.permute.xlu0 %1434
        %1436 = vrot.lane.b32.xlu0 %v1416, 32
        %v1437 = vpop.permute.xlu0 %1436
        %1438 = vrot.lane.b32.xlu0 %v1417, 32
        %v1439 = vpop.permute.xlu0 %1438
        %1440 = vrot.lane.b32.xlu0 %v1418, 32
        %v1441 = vpop.permute.xlu0 %1440
        %1442 = vrot.lane.b32.xlu0 %v1419, 32
        %v1443 = vpop.permute.xlu0 %1442
        %vm1452 = vcmask 392448
        %1453 = vst.msk [vmem:[#allocation2] sm:$0xff] %vm1452, %v1429
        %1454 = vst.msk [vmem:[#allocation2 + $0x8] sm:$0xff] %vm1452, %v1431
        %1455 = vst.msk [vmem:[#allocation2 + $0x10] sm:$0xff] %vm1452, %v1433
        %1456 = vst.msk [vmem:[#allocation2 + $0x18] sm:$0xff] %vm1452, %v1435
        %1457 = vst.msk [vmem:[#allocation2 + $0x20] sm:$0xff] %vm1452, %v1437
        %1458 = vst.msk [vmem:[#allocation2 + $0x28] sm:$0xff] %vm1452, %v1439
        %1459 = vst.msk [vmem:[#allocation2 + $0x30] sm:$0xff] %vm1452, %v1441
        %1460 = vst.msk [vmem:[#allocation2 + $0x38] sm:$0xff] %vm1452, %v1443
        %v1461 = vld [vmem:[%s277] sm:$0xf]
        %v1462 = vld [vmem:[%s277 + $0x4] sm:$0xf]
        %v1463 = vld [vmem:[%s277 + $0x8] sm:$0xf]
        %v1464 = vld [vmem:[%s277 + $0xc] sm:$0xf]
        %v1465 = vld [vmem:[%s277 + $0x10] sm:$0xf]
        %v1466 = vld [vmem:[%s277 + $0x14] sm:$0xf]
        %v1467 = vld [vmem:[%s277 + $0x18] sm:$0xf]
        %v1468 = vld [vmem:[%s277 + $0x1c] sm:$0xf]
        %v1477 = vunpack.c.l.b16 %v1461
        %v1478 = vunpack.c.l.b16 %v1462
        %v1479 = vunpack.c.l.b16 %v1463
        %v1480 = vunpack.c.l.b16 %v1464
        %v1481 = vunpack.c.l.b16 %v1465
        %v1482 = vunpack.c.l.b16 %v1466
        %v1483 = vunpack.c.l.b16 %v1467
        %v1484 = vunpack.c.l.b16 %v1468
        %v1485 = vpack.c.b16 %v1478, %v1477
        %v1486 = vpack.c.b16 %v1480, %v1479
        %v1487 = vpack.c.b16 %v1482, %v1481
        %v1488 = vpack.c.b16 %v1484, %v1483
        %1489 = vrot.lane.b32.xlu0 %v1485, 80
        %v1490 = vpop.permute.xlu0 %1489
        %1491 = vrot.lane.b32.xlu0 %v1486, 80
        %v1492 = vpop.permute.xlu0 %1491
        %1493 = vrot.lane.b32.xlu0 %v1487, 80
        %v1494 = vpop.permute.xlu0 %1493
        %1495 = vrot.lane.b32.xlu0 %v1488, 80
        %v1496 = vpop.permute.xlu0 %1495
        %v1498 = vsel %vm392, %v1490, 0
        %v1501 = vsel %vm392, %v1492, 0
        %v1504 = vsel %vm392, %v1494, 0
        %v1507 = vsel %vm392, %v1496, 0
        %1509 = vmatprep.subr.bf16.mxu0 %v389
        %1510 = vmatpush1.bf16.msra.mxu0 %v388
        %1511 = vmatprep.subr.bf16.mxu0 0
        %1512 = vmatpush1.bf16.msra.mxu0 0
        %1513 = vmatprep.subr.bf16.mxu0 0
        %1514 = vmatpush1.bf16.msra.mxu0 0
        %1515 = vmatprep.subr.bf16.mxu0 0
        %1516 = vmatpush1.bf16.msra.mxu0 0
        %1517 = vmatprep.subr.bf16.mxu0 0
        %1518 = vmatpush1.bf16.msra.mxu0 0
        %1519 = vmatprep.subr.bf16.mxu0 0
        %1520 = vmatpush1.bf16.msra.mxu0 0
        %1521 = vmatprep.subr.bf16.mxu0 0
        %1522 = vmatpush1.bf16.msra.mxu0 0
        %1523 = vmatprep.subr.bf16.mxu0 0
        %1524 = vmatpush1.bf16.msra.mxu0 0
        %1525 = vmatprep.subr.bf16.mxu0 0
        %1526 = vmatpush1.bf16.msra.mxu0 0
        %1527 = vmatprep.subr.bf16.mxu0 0
        %1528 = vmatpush1.bf16.msra.mxu0 0
        %1529 = vmatprep.subr.bf16.mxu0 0
        %1530 = vmatpush1.bf16.msra.mxu0 0
        %1531 = vmatprep.subr.bf16.mxu0 0
        %1532 = vmatpush1.bf16.msra.mxu0 0
        %1533 = vmatprep.subr.bf16.mxu0 0
        %1534 = vmatpush1.bf16.msra.mxu0 0
        %1535 = vmatprep.subr.bf16.mxu0 0
        %1536 = vmatpush1.bf16.msra.mxu0 0
        %1537 = vmatprep.subr.bf16.mxu0 0
        %1538 = vmatpush1.bf16.msra.mxu0 0
        %1539 = vmatprep.subr.bf16.mxu0 0
        %1540 = vmatpush1.bf16.msra.mxu0 0
        %1541 = vmatprep.mubr.bf16.mxu0 0
        %1542 = vmatmul.mubr.bf16.gmra.mrb[0].mxu0 %v1498
        %v1543 = vpop.f32.mrb[0].mxu0
        %v1544 = vadd.f32 0.0, %v1543
        %v1545 = vpop.f32.mrb[0].mxu0
        %v1546 = vadd.f32 0.0, %v1545
        %v1547 = vpop.f32.mrb[0].mxu0
        %v1548 = vadd.f32 0.0, %v1547
        %v1549 = vpop.f32.mrb[0].mxu0
        %v1550 = vadd.f32 0.0, %v1549
        %1551 = vmatprep.mubr.bf16.mxu0 0
        %1552 = vmatmul.mubr.bf16.gmra.mrb[0].mxu0 %v1501
        %v1553 = vpop.f32.mrb[0].mxu0
        %v1554 = vadd.f32 0.0, %v1553
        %v1555 = vpop.f32.mrb[0].mxu0
        %v1556 = vadd.f32 0.0, %v1555
        %v1557 = vpop.f32.mrb[0].mxu0
        %v1558 = vadd.f32 0.0, %v1557
        %v1559 = vpop.f32.mrb[0].mxu0
        %v1560 = vadd.f32 0.0, %v1559
        %1561 = vmatprep.mubr.bf16.mxu0 0
        %1562 = vmatmul.mubr.bf16.gmra.mrb[0].mxu0 %v1504
        %v1563 = vpop.f32.mrb[0].mxu0
        %v1564 = vadd.f32 0.0, %v1563
        %v1565 = vpop.f32.mrb[0].mxu0
        %v1566 = vadd.f32 0.0, %v1565
        %v1567 = vpop.f32.mrb[0].mxu0
        %v1568 = vadd.f32 0.0, %v1567
        %v1569 = vpop.f32.mrb[0].mxu0
        %v1570 = vadd.f32 0.0, %v1569
        %1571 = vmatprep.mubr.bf16.mxu0 0
        %1572 = vmatmul.mubr.bf16.gmra.mrb[0].mxu0 %v1507
        %v1573 = vpop.f32.mrb[0].mxu0
        %v1574 = vadd.f32 0.0, %v1573
        %v1575 = vpop.f32.mrb[0].mxu0
        %v1576 = vadd.f32 0.0, %v1575
        %v1577 = vpop.f32.mrb[0].mxu0
        %v1578 = vadd.f32 0.0, %v1577
        %v1579 = vpop.f32.mrb[0].mxu0
        %v1580 = vadd.f32 0.0, %v1579
        %1581 = vdwg.mxu0
        %v1582 = vmax.f32 %v1544, %v1546
        %1583 = vmax.xlane.f32.xlu0 %v1582
        %v1584 = vpop.xlane.xlu0 %1583
        %v1585 = vmax.f32 %v1548, %v1550
        %1586 = vmax.xlane.f32.xlu0 %v1585
        %v1587 = vpop.xlane.xlu0 %1586
        %v1588 = vmax.f32 %v1554, %v1556
        %1589 = vmax.xlane.f32.xlu0 %v1588
        %v1590 = vpop.xlane.xlu0 %1589
        %v1591 = vmax.f32 %v1558, %v1560
        %1592 = vmax.xlane.f32.xlu0 %v1591
        %v1593 = vpop.xlane.xlu0 %1592
        %v1594 = vmax.f32 %v1564, %v1566
        %1595 = vmax.xlane.f32.xlu0 %v1594
        %v1596 = vpop.xlane.xlu0 %1595
        %v1597 = vmax.f32 %v1568, %v1570
        %1598 = vmax.xlane.f32.xlu0 %v1597
        %v1599 = vpop.xlane.xlu0 %1598
        %v1600 = vmax.f32 %v1574, %v1576
        %1601 = vmax.xlane.f32.xlu0 %v1600
        %v1602 = vpop.xlane.xlu0 %1601
        %v1603 = vmax.f32 %v1578, %v1580
        %1604 = vmax.xlane.f32.xlu0 %v1603
        %v1605 = vpop.xlane.xlu0 %1604
        %v1606 = vsub.f32 %v1544, %v1584
        %v1607 = vsub.f32 %v1546, %v1584
        %v1608 = vsub.f32 %v1548, %v1587
        %v1609 = vsub.f32 %v1550, %v1587
        %v1610 = vsub.f32 %v1554, %v1590
        %v1611 = vsub.f32 %v1556, %v1590
        %v1612 = vsub.f32 %v1558, %v1593
        %v1613 = vsub.f32 %v1560, %v1593
        %v1614 = vsub.f32 %v1564, %v1596
        %v1615 = vsub.f32 %v1566, %v1596
        %v1616 = vsub.f32 %v1568, %v1599
        %v1617 = vsub.f32 %v1570, %v1599
        %v1618 = vsub.f32 %v1574, %v1602
        %v1619 = vsub.f32 %v1576, %v1602
        %v1620 = vsub.f32 %v1578, %v1605
        %v1621 = vsub.f32 %v1580, %v1605
        %v1622 = vmul.f32 %v1606, 1.442695
        %v1623 = vpow.pop %v1622
        %v1624 = vmul.f32 %v1607, 1.442695
        %v1625 = vpow.pop %v1624
        %v1626 = vmul.f32 %v1608, 1.442695
        %v1627 = vpow.pop %v1626
        %v1628 = vmul.f32 %v1609, 1.442695
        %v1629 = vpow.pop %v1628
        %v1630 = vmul.f32 %v1610, 1.442695
        %v1631 = vpow.pop %v1630
        %v1632 = vmul.f32 %v1611, 1.442695
        %v1633 = vpow.pop %v1632
        %v1634 = vmul.f32 %v1612, 1.442695
        %v1635 = vpow.pop %v1634
        %v1636 = vmul.f32 %v1613, 1.442695
        %v1637 = vpow.pop %v1636
        %v1638 = vmul.f32 %v1614, 1.442695
        %v1639 = vpow.pop %v1638
        %v1640 = vmul.f32 %v1615, 1.442695
        %v1641 = vpow.pop %v1640
        %v1642 = vmul.f32 %v1616, 1.442695
        %v1643 = vpow.pop %v1642
        %v1644 = vmul.f32 %v1617, 1.442695
        %v1645 = vpow.pop %v1644
        %v1646 = vmul.f32 %v1618, 1.442695
        %v1647 = vpow.pop %v1646
        %v1648 = vmul.f32 %v1619, 1.442695
        %v1649 = vpow.pop %v1648
        %v1650 = vmul.f32 %v1620, 1.442695
        %v1651 = vpow.pop %v1650
        %v1652 = vmul.f32 %v1621, 1.442695
        %v1653 = vpow.pop %v1652
        %v1654 = vadd.f32 %v1623, %v1625
        %1655 = vadd.xlane.f32.xlu0 %v1654
        %v1656 = vpop.xlane.xlu0 %1655
        %v1657 = vadd.f32 %v1627, %v1629
        %1658 = vadd.xlane.f32.xlu0 %v1657
        %v1659 = vpop.xlane.xlu0 %1658
        %v1660 = vadd.f32 %v1631, %v1633
        %1661 = vadd.xlane.f32.xlu0 %v1660
        %v1662 = vpop.xlane.xlu0 %1661
        %v1663 = vadd.f32 %v1635, %v1637
        %1664 = vadd.xlane.f32.xlu0 %v1663
        %v1665 = vpop.xlane.xlu0 %1664
        %v1666 = vadd.f32 %v1639, %v1641
        %1667 = vadd.xlane.f32.xlu0 %v1666
        %v1668 = vpop.xlane.xlu0 %1667
        %v1669 = vadd.f32 %v1643, %v1645
        %1670 = vadd.xlane.f32.xlu0 %v1669
        %v1671 = vpop.xlane.xlu0 %1670
        %v1672 = vadd.f32 %v1647, %v1649
        %1673 = vadd.xlane.f32.xlu0 %v1672
        %v1674 = vpop.xlane.xlu0 %1673
        %v1675 = vadd.f32 %v1651, %v1653
        %1676 = vadd.xlane.f32.xlu0 %v1675
        %v1677 = vpop.xlane.xlu0 %1676
        %v1678 = vpack.c.bf16 %v1627, %v1623
        %v1679 = vpack.c.bf16 %v1629, %v1625
        %v1680 = vpack.c.bf16 %v1635, %v1631
        %v1681 = vpack.c.bf16 %v1637, %v1633
        %v1682 = vpack.c.bf16 %v1643, %v1639
        %v1683 = vpack.c.bf16 %v1645, %v1641
        %v1684 = vpack.c.bf16 %v1651, %v1647
        %v1685 = vpack.c.bf16 %v1653, %v1649
        %1686 = vmatprep.subr.bf16.mxu0 0
        %1687 = vmatpush1.bf16.msra.mxu0 %v646
        %1688 = vmatprep.subr.bf16.mxu0 0
        %1689 = vmatpush1.bf16.msra.mxu0 %v647
        %1690 = vmatprep.subr.bf16.mxu0 0
        %1691 = vmatpush1.bf16.msra.mxu0 %v648
        %1692 = vmatprep.subr.bf16.mxu0 0
        %1693 = vmatpush1.bf16.msra.mxu0 %v649
        %1694 = vmatprep.subr.bf16.mxu0 0
        %1695 = vmatpush1.bf16.msra.mxu0 %v650
        %1696 = vmatprep.subr.bf16.mxu0 0
        %1697 = vmatpush1.bf16.msra.mxu0 %v651
        %1698 = vmatprep.subr.bf16.mxu0 0
        %1699 = vmatpush1.bf16.msra.mxu0 %v652
        %1700 = vmatprep.subr.bf16.mxu0 0
        %1701 = vmatpush1.bf16.msra.mxu0 %v653
        %1702 = vmatprep.subr.bf16.mxu0 0
        %1703 = vmatpush1.bf16.msra.mxu0 %v654
        %1704 = vmatprep.subr.bf16.mxu0 0
        %1705 = vmatpush1.bf16.msra.mxu0 %v655
        %1706 = vmatprep.subr.bf16.mxu0 0
        %1707 = vmatpush1.bf16.msra.mxu0 %v656
        %1708 = vmatprep.subr.bf16.mxu0 0
        %1709 = vmatpush1.bf16.msra.mxu0 %v657
        %1710 = vmatprep.subr.bf16.mxu0 0
        %1711 = vmatpush1.bf16.msra.mxu0 %v658
        %1712 = vmatprep.subr.bf16.mxu0 0
        %1713 = vmatpush1.bf16.msra.mxu0 %v659
        %1714 = vmatprep.subr.bf16.mxu0 0
        %1715 = vmatpush1.bf16.msra.mxu0 %v660
        %1716 = vmatprep.subr.bf16.mxu0 0
        %1717 = vmatpush1.bf16.msra.mxu0 %v661
        %1718 = vmatprep.mubr.bf16.mxu0 %v1679
        %1719 = vmatmul.mubr.bf16.gmra.mrb[0].mxu0 %v1678
        %v1720 = vpop.f32.mrb[0].mxu0
        %v1721 = vadd.f32 0.0, %v1720
        %v1722 = vpop.f32.mrb[0].mxu0
        %v1723 = vpop.f32.mrb[0].mxu0
        %v1724 = vadd.f32 0.0, %v1723
        %v1725 = vpop.f32.mrb[0].mxu0
        %1726 = vmatprep.mubr.bf16.mxu0 %v1681
        %1727 = vmatmul.mubr.bf16.gmra.mrb[0].mxu0 %v1680
        %v1728 = vpop.f32.mrb[0].mxu0
        %v1729 = vadd.f32 0.0, %v1728
        %v1730 = vpop.f32.mrb[0].mxu0
        %v1731 = vpop.f32.mrb[0].mxu0
        %v1732 = vadd.f32 0.0, %v1731
        %v1733 = vpop.f32.mrb[0].mxu0
        %1734 = vmatprep.mubr.bf16.mxu0 %v1683
        %1735 = vmatmul.mubr.bf16.gmra.mrb[0].mxu0 %v1682
        %v1736 = vpop.f32.mrb[0].mxu0
        %v1737 = vadd.f32 0.0, %v1736
        %v1738 = vpop.f32.mrb[0].mxu0
        %v1739 = vpop.f32.mrb[0].mxu0
        %v1740 = vadd.f32 0.0, %v1739
        %v1741 = vpop.f32.mrb[0].mxu0
        %1742 = vmatprep.mubr.bf16.mxu0 %v1685
        %1743 = vmatmul.mubr.bf16.gmra.mrb[0].mxu0 %v1684
        %v1744 = vpop.f32.mrb[0].mxu0
        %v1745 = vadd.f32 0.0, %v1744
        %v1746 = vpop.f32.mrb[0].mxu0
        %v1747 = vpop.f32.mrb[0].mxu0
        %v1748 = vadd.f32 0.0, %v1747
        %v1749 = vpop.f32.mrb[0].mxu0
        %1750 = vdwg.mxu0
        %v1751 = vrcp.pop %v1656
        %v1752 = vrcp.pop %v1659
        %v1753 = vrcp.pop %v1662
        %v1754 = vrcp.pop %v1665
        %v1755 = vrcp.pop %v1668
        %v1756 = vrcp.pop %v1671
        %v1757 = vrcp.pop %v1674
        %v1758 = vrcp.pop %v1677
        %v1759 = vmul.f32 %v1721, %v1751
        %v1760 = vmul.f32 %v1724, %v1752
        %v1761 = vmul.f32 %v1729, %v1753
        %v1762 = vmul.f32 %v1732, %v1754
        %v1763 = vmul.f32 %v1737, %v1755
        %v1764 = vmul.f32 %v1740, %v1756
        %v1765 = vmul.f32 %v1745, %v1757
        %v1766 = vmul.f32 %v1748, %v1758
        %1775 = vrot.lane.b32.xlu0 %v1759, 48
        %v1776 = vpop.permute.xlu0 %1775
        %1777 = vrot.lane.b32.xlu0 %v1760, 48
        %v1778 = vpop.permute.xlu0 %1777
        %1779 = vrot.lane.b32.xlu0 %v1761, 48
        %v1780 = vpop.permute.xlu0 %1779
        %1781 = vrot.lane.b32.xlu0 %v1762, 48
        %v1782 = vpop.permute.xlu0 %1781
        %1783 = vrot.lane.b32.xlu0 %v1763, 48
        %v1784 = vpop.permute.xlu0 %1783
        %1785 = vrot.lane.b32.xlu0 %v1764, 48
        %v1786 = vpop.permute.xlu0 %1785
        %1787 = vrot.lane.b32.xlu0 %v1765, 48
        %v1788 = vpop.permute.xlu0 %1787
        %1789 = vrot.lane.b32.xlu0 %v1766, 48
        %v1790 = vpop.permute.xlu0 %1789
        %vm1799 = vcmask 523648
        %1800 = vst.msk [vmem:[#allocation2] sm:$0xff] %vm1799, %v1776
        %1801 = vst.msk [vmem:[#allocation2 + $0x8] sm:$0xff] %vm1799, %v1778
        %1802 = vst.msk [vmem:[#allocation2 + $0x10] sm:$0xff] %vm1799, %v1780
        %1803 = vst.msk [vmem:[#allocation2 + $0x18] sm:$0xff] %vm1799, %v1782
        %1804 = vst.msk [vmem:[#allocation2 + $0x20] sm:$0xff] %vm1799, %v1784
        %1805 = vst.msk [vmem:[#allocation2 + $0x28] sm:$0xff] %vm1799, %v1786
        %1806 = vst.msk [vmem:[#allocation2 + $0x30] sm:$0xff] %vm1799, %v1788
        %1807 = vst.msk [vmem:[#allocation2 + $0x38] sm:$0xff] %vm1799, %v1790
        %v1808 = vld [vmem:[%s277] sm:$0xf]
        %v1809 = vld [vmem:[%s277 + $0x4] sm:$0xf]
        %v1810 = vld [vmem:[%s277 + $0x8] sm:$0xf]
        %v1811 = vld [vmem:[%s277 + $0xc] sm:$0xf]
        %v1812 = vld [vmem:[%s277 + $0x10] sm:$0xf]
        %v1813 = vld [vmem:[%s277 + $0x14] sm:$0xf]
        %v1814 = vld [vmem:[%s277 + $0x18] sm:$0xf]
        %v1815 = vld [vmem:[%s277 + $0x1c] sm:$0xf]
        %v1824 = vunpack.c.l.b16 %v1808
        %v1825 = vunpack.c.l.b16 %v1809
        %v1826 = vunpack.c.l.b16 %v1810
        %v1827 = vunpack.c.l.b16 %v1811
        %v1828 = vunpack.c.l.b16 %v1812
        %v1829 = vunpack.c.l.b16 %v1813
        %v1830 = vunpack.c.l.b16 %v1814
        %v1831 = vunpack.c.l.b16 %v1815
        %v1832 = vpack.c.b16 %v1825, %v1824
        %v1833 = vpack.c.b16 %v1827, %v1826
        %v1834 = vpack.c.b16 %v1829, %v1828
        %v1835 = vpack.c.b16 %v1831, %v1830
        %1836 = vrot.lane.b32.xlu0 %v1832, 64
        %v1837 = vpop.permute.xlu0 %1836
        %1838 = vrot.lane.b32.xlu0 %v1833, 64
        %v1839 = vpop.permute.xlu0 %1838
        %1840 = vrot.lane.b32.xlu0 %v1834, 64
        %v1841 = vpop.permute.xlu0 %1840
        %1842 = vrot.lane.b32.xlu0 %v1835, 64
        %v1843 = vpop.permute.xlu0 %1842
        %v1845 = vsel %vm392, %v1837, 0
        %v1848 = vsel %vm392, %v1839, 0
        %v1851 = vsel %vm392, %v1841, 0
        %v1854 = vsel %vm392, %v1843, 0
        %1856 = vmatprep.subr.bf16.mxu0 %v389
        %1857 = vmatpush1.bf16.msra.mxu0 %v388
        %1858 = vmatprep.subr.bf16.mxu0 0
        %1859 = vmatpush1.bf16.msra.mxu0 0
        %1860 = vmatprep.subr.bf16.mxu0 0
        %1861 = vmatpush1.bf16.msra.mxu0 0
        %1862 = vmatprep.subr.bf16.mxu0 0
        %1863 = vmatpush1.bf16.msra.mxu0 0
        %1864 = vmatprep.subr.bf16.mxu0 0
        %1865 = vmatpush1.bf16.msra.mxu0 0
        %1866 = vmatprep.subr.bf16.mxu0 0
        %1867 = vmatpush1.bf16.msra.mxu0 0
        %1868 = vmatprep.subr.bf16.mxu0 0
        %1869 = vmatpush1.bf16.msra.mxu0 0
        %1870 = vmatprep.subr.bf16.mxu0 0
        %1871 = vmatpush1.bf16.msra.mxu0 0
        %1872 = vmatprep.subr.bf16.mxu0 0
        %1873 = vmatpush1.bf16.msra.mxu0 0
        %1874 = vmatprep.subr.bf16.mxu0 0
        %1875 = vmatpush1.bf16.msra.mxu0 0
        %1876 = vmatprep.subr.bf16.mxu0 0
        %1877 = vmatpush1.bf16.msra.mxu0 0
        %1878 = vmatprep.subr.bf16.mxu0 0
        %1879 = vmatpush1.bf16.msra.mxu0 0
        %1880 = vmatprep.subr.bf16.mxu0 0
        %1881 = vmatpush1.bf16.msra.mxu0 0
        %1882 = vmatprep.subr.bf16.mxu0 0
        %1883 = vmatpush1.bf16.msra.mxu0 0
        %1884 = vmatprep.subr.bf16.mxu0 0
        %1885 = vmatpush1.bf16.msra.mxu0 0
        %1886 = vmatprep.subr.bf16.mxu0 0
        %1887 = vmatpush1.bf16.msra.mxu0 0
        %1888 = vmatprep.mubr.bf16.mxu0 0
        %1889 = vmatmul.mubr.bf16.gmra.mrb[0].mxu0 %v1845
        %v1890 = vpop.f32.mrb[0].mxu0
        %v1891 = vadd.f32 0.0, %v1890
        %v1892 = vpop.f32.mrb[0].mxu0
        %v1893 = vadd.f32 0.0, %v1892
        %v1894 = vpop.f32.mrb[0].mxu0
        %v1895 = vadd.f32 0.0, %v1894
        %v1896 = vpop.f32.mrb[0].mxu0
        %v1897 = vadd.f32 0.0, %v1896
        %1898 = vmatprep.mubr.bf16.mxu0 0
        %1899 = vmatmul.mubr.bf16.gmra.mrb[0].mxu0 %v1848
        %v1900 = vpop.f32.mrb[0].mxu0
        %v1901 = vadd.f32 0.0, %v1900
        %v1902 = vpop.f32.mrb[0].mxu0
        %v1903 = vadd.f32 0.0, %v1902
        %v1904 = vpop.f32.mrb[0].mxu0
        %v1905 = vadd.f32 0.0, %v1904
        %v1906 = vpop.f32.mrb[0].mxu0
        %v1907 = vadd.f32 0.0, %v1906
        %1908 = vmatprep.mubr.bf16.mxu0 0
        %1909 = vmatmul.mubr.bf16.gmra.mrb[0].mxu0 %v1851
        %v1910 = vpop.f32.mrb[0].mxu0
        %v1911 = vadd.f32 0.0, %v1910
        %v1912 = vpop.f32.mrb[0].mxu0
        %v1913 = vadd.f32 0.0, %v1912
        %v1914 = vpop.f32.mrb[0].mxu0
        %v1915 = vadd.f32 0.0, %v1914
        %v1916 = vpop.f32.mrb[0].mxu0
        %v1917 = vadd.f32 0.0, %v1916
        %1918 = vmatprep.mubr.bf16.mxu0 0
        %1919 = vmatmul.mubr.bf16.gmra.mrb[0].mxu0 %v1854
        %v1920 = vpop.f32.mrb[0].mxu0
        %v1921 = vadd.f32 0.0, %v1920
        %v1922 = vpop.f32.mrb[0].mxu0
        %v1923 = vadd.f32 0.0, %v1922
        %v1924 = vpop.f32.mrb[0].mxu0
        %v1925 = vadd.f32 0.0, %v1924
        %v1926 = vpop.f32.mrb[0].mxu0
        %v1927 = vadd.f32 0.0, %v1926
        %1928 = vdwg.mxu0
        %v1929 = vmax.f32 %v1891, %v1893
        %1930 = vmax.xlane.f32.xlu0 %v1929
        %v1931 = vpop.xlane.xlu0 %1930
        %v1932 = vmax.f32 %v1895, %v1897
        %1933 = vmax.xlane.f32.xlu0 %v1932
        %v1934 = vpop.xlane.xlu0 %1933
        %v1935 = vmax.f32 %v1901, %v1903
        %1936 = vmax.xlane.f32.xlu0 %v1935
        %v1937 = vpop.xlane.xlu0 %1936
        %v1938 = vmax.f32 %v1905, %v1907
        %1939 = vmax.xlane.f32.xlu0 %v1938
        %v1940 = vpop.xlane.xlu0 %1939
        %v1941 = vmax.f32 %v1911, %v1913
        %1942 = vmax.xlane.f32.xlu0 %v1941
        %v1943 = vpop.xlane.xlu0 %1942
        %v1944 = vmax.f32 %v1915, %v1917
        %1945 = vmax.xlane.f32.xlu0 %v1944
        %v1946 = vpop.xlane.xlu0 %1945
        %v1947 = vmax.f32 %v1921, %v1923
        %1948 = vmax.xlane.f32.xlu0 %v1947
        %v1949 = vpop.xlane.xlu0 %1948
        %v1950 = vmax.f32 %v1925, %v1927
        %1951 = vmax.xlane.f32.xlu0 %v1950
        %v1952 = vpop.xlane.xlu0 %1951
        %v1953 = vsub.f32 %v1891, %v1931
        %v1954 = vsub.f32 %v1893, %v1931
        %v1955 = vsub.f32 %v1895, %v1934
        %v1956 = vsub.f32 %v1897, %v1934
        %v1957 = vsub.f32 %v1901, %v1937
        %v1958 = vsub.f32 %v1903, %v1937
        %v1959 = vsub.f32 %v1905, %v1940
        %v1960 = vsub.f32 %v1907, %v1940
        %v1961 = vsub.f32 %v1911, %v1943
        %v1962 = vsub.f32 %v1913, %v1943
        %v1963 = vsub.f32 %v1915, %v1946
        %v1964 = vsub.f32 %v1917, %v1946
        %v1965 = vsub.f32 %v1921, %v1949
        %v1966 = vsub.f32 %v1923, %v1949
        %v1967 = vsub.f32 %v1925, %v1952
        %v1968 = vsub.f32 %v1927, %v1952
        %v1969 = vmul.f32 %v1953, 1.442695
        %v1970 = vpow.pop %v1969
        %v1971 = vmul.f32 %v1954, 1.442695
        %v1972 = vpow.pop %v1971
        %v1973 = vmul.f32 %v1955, 1.442695
        %v1974 = vpow.pop %v1973
        %v1975 = vmul.f32 %v1956, 1.442695
        %v1976 = vpow.pop %v1975
        %v1977 = vmul.f32 %v1957, 1.442695
        %v1978 = vpow.pop %v1977
        %v1979 = vmul.f32 %v1958, 1.442695
        %v1980 = vpow.pop %v1979
        %v1981 = vmul.f32 %v1959, 1.442695
        %v1982 = vpow.pop %v1981
        %v1983 = vmul.f32 %v1960, 1.442695
        %v1984 = vpow.pop %v1983
        %v1985 = vmul.f32 %v1961, 1.442695
        %v1986 = vpow.pop %v1985
        %v1987 = vmul.f32 %v1962, 1.442695
        %v1988 = vpow.pop %v1987
        %v1989 = vmul.f32 %v1963, 1.442695
        %v1990 = vpow.pop %v1989
        %v1991 = vmul.f32 %v1964, 1.442695
        %v1992 = vpow.pop %v1991
        %v1993 = vmul.f32 %v1965, 1.442695
        %v1994 = vpow.pop %v1993
        %v1995 = vmul.f32 %v1966, 1.442695
        %v1996 = vpow.pop %v1995
        %v1997 = vmul.f32 %v1967, 1.442695
        %v1998 = vpow.pop %v1997
        %v1999 = vmul.f32 %v1968, 1.442695
        %v2000 = vpow.pop %v1999
        %v2001 = vadd.f32 %v1970, %v1972
        %2002 = vadd.xlane.f32.xlu0 %v2001
        %v2003 = vpop.xlane.xlu0 %2002
        %v2004 = vadd.f32 %v1974, %v1976
        %2005 = vadd.xlane.f32.xlu0 %v2004
        %v2006 = vpop.xlane.xlu0 %2005
        %v2007 = vadd.f32 %v1978, %v1980
        %2008 = vadd.xlane.f32.xlu0 %v2007
        %v2009 = vpop.xlane.xlu0 %2008
        %v2010 = vadd.f32 %v1982, %v1984
        %2011 = vadd.xlane.f32.xlu0 %v2010
        %v2012 = vpop.xlane.xlu0 %2011
        %v2013 = vadd.f32 %v1986, %v1988
        %2014 = vadd.xlane.f32.xlu0 %v2013
        %v2015 = vpop.xlane.xlu0 %2014
        %v2016 = vadd.f32 %v1990, %v1992
        %2017 = vadd.xlane.f32.xlu0 %v2016
        %v2018 = vpop.xlane.xlu0 %2017
        %v2019 = vadd.f32 %v1994, %v1996
        %2020 = vadd.xlane.f32.xlu0 %v2019
        %v2021 = vpop.xlane.xlu0 %2020
        %v2022 = vadd.f32 %v1998, %v2000
        %2023 = vadd.xlane.f32.xlu0 %v2022
        %v2024 = vpop.xlane.xlu0 %2023
        %v2025 = vpack.c.bf16 %v1974, %v1970
        %v2026 = vpack.c.bf16 %v1976, %v1972
        %v2027 = vpack.c.bf16 %v1982, %v1978
        %v2028 = vpack.c.bf16 %v1984, %v1980
        %v2029 = vpack.c.bf16 %v1990, %v1986
        %v2030 = vpack.c.bf16 %v1992, %v1988
        %v2031 = vpack.c.bf16 %v1998, %v1994
        %v2032 = vpack.c.bf16 %v2000, %v1996
        %2033 = vmatprep.subr.bf16.mxu0 0
        %2034 = vmatpush1.bf16.msra.mxu0 %v646
        %2035 = vmatprep.subr.bf16.mxu0 0
        %2036 = vmatpush1.bf16.msra.mxu0 %v647
        %2037 = vmatprep.subr.bf16.mxu0 0
        %2038 = vmatpush1.bf16.msra.mxu0 %v648
        %2039 = vmatprep.subr.bf16.mxu0 0
        %2040 = vmatpush1.bf16.msra.mxu0 %v649
        %2041 = vmatprep.subr.bf16.mxu0 0
        %2042 = vmatpush1.bf16.msra.mxu0 %v650
        %2043 = vmatprep.subr.bf16.mxu0 0
        %2044 = vmatpush1.bf16.msra.mxu0 %v651
        %2045 = vmatprep.subr.bf16.mxu0 0
        %2046 = vmatpush1.bf16.msra.mxu0 %v652
        %2047 = vmatprep.subr.bf16.mxu0 0
        %2048 = vmatpush1.bf16.msra.mxu0 %v653
        %2049 = vmatprep.subr.bf16.mxu0 0
        %2050 = vmatpush1.bf16.msra.mxu0 %v654
        %2051 = vmatprep.subr.bf16.mxu0 0
        %2052 = vmatpush1.bf16.msra.mxu0 %v655
        %2053 = vmatprep.subr.bf16.mxu0 0
        %2054 = vmatpush1.bf16.msra.mxu0 %v656
        %2055 = vmatprep.subr.bf16.mxu0 0
        %2056 = vmatpush1.bf16.msra.mxu0 %v657
        %2057 = vmatprep.subr.bf16.mxu0 0
        %2058 = vmatpush1.bf16.msra.mxu0 %v658
        %2059 = vmatprep.subr.bf16.mxu0 0
        %2060 = vmatpush1.bf16.msra.mxu0 %v659
        %2061 = vmatprep.subr.bf16.mxu0 0
        %2062 = vmatpush1.bf16.msra.mxu0 %v660
        %2063 = vmatprep.subr.bf16.mxu0 0
        %2064 = vmatpush1.bf16.msra.mxu0 %v661
        %2065 = vmatprep.mubr.bf16.mxu0 %v2026
        %2066 = vmatmul.mubr.bf16.gmra.mrb[0].mxu0 %v2025
        %v2067 = vpop.f32.mrb[0].mxu0
        %v2068 = vadd.f32 0.0, %v2067
        %v2069 = vpop.f32.mrb[0].mxu0
        %v2070 = vpop.f32.mrb[0].mxu0
        %v2071 = vadd.f32 0.0, %v2070
        %v2072 = vpop.f32.mrb[0].mxu0
        %2073 = vmatprep.mubr.bf16.mxu0 %v2028
        %2074 = vmatmul.mubr.bf16.gmra.mrb[0].mxu0 %v2027
        %v2075 = vpop.f32.mrb[0].mxu0
        %v2076 = vadd.f32 0.0, %v2075
        %v2077 = vpop.f32.mrb[0].mxu0
        %v2078 = vpop.f32.mrb[0].mxu0
        %v2079 = vadd.f32 0.0, %v2078
        %v2080 = vpop.f32.mrb[0].mxu0
        %2081 = vmatprep.mubr.bf16.mxu0 %v2030
        %2082 = vmatmul.mubr.bf16.gmra.mrb[0].mxu0 %v2029
        %v2083 = vpop.f32.mrb[0].mxu0
        %v2084 = vadd.f32 0.0, %v2083
        %v2085 = vpop.f32.mrb[0].mxu0
        %v2086 = vpop.f32.mrb[0].mxu0
        %v2087 = vadd.f32 0.0, %v2086
        %v2088 = vpop.f32.mrb[0].mxu0
        %2089 = vmatprep.mubr.bf16.mxu0 %v2032
        %2090 = vmatmul.mubr.bf16.gmra.mrb[0].mxu0 %v2031
        %v2091 = vpop.f32.mrb[0].mxu0
        %v2092 = vadd.f32 0.0, %v2091
        %v2093 = vpop.f32.mrb[0].mxu0
        %v2094 = vpop.f32.mrb[0].mxu0
        %v2095 = vadd.f32 0.0, %v2094
        %v2096 = vpop.f32.mrb[0].mxu0
        %2097 = vdwg.mxu0
        %v2098 = vrcp.pop %v2003
        %v2099 = vrcp.pop %v2006
        %v2100 = vrcp.pop %v2009
        %v2101 = vrcp.pop %v2012
        %v2102 = vrcp.pop %v2015
        %v2103 = vrcp.pop %v2018
        %v2104 = vrcp.pop %v2021
        %v2105 = vrcp.pop %v2024
        %v2106 = vmul.f32 %v2068, %v2098
        %v2107 = vmul.f32 %v2071, %v2099
        %v2108 = vmul.f32 %v2076, %v2100
        %v2109 = vmul.f32 %v2079, %v2101
        %v2110 = vmul.f32 %v2084, %v2102
        %v2111 = vmul.f32 %v2087, %v2103
        %v2112 = vmul.f32 %v2092, %v2104
        %v2113 = vmul.f32 %v2095, %v2105
        %2122 = vrot.lane.b32.xlu0 %v2106, 64
        %v2123 = vpop.permute.xlu0 %2122
        %2124 = vrot.lane.b32.xlu0 %v2107, 64
        %v2125 = vpop.permute.xlu0 %2124
        %2126 = vrot.lane.b32.xlu0 %v2108, 64
        %v2127 = vpop.permute.xlu0 %2126
        %2128 = vrot.lane.b32.xlu0 %v2109, 64
        %v2129 = vpop.permute.xlu0 %2128
        %2130 = vrot.lane.b32.xlu0 %v2110, 64
        %v2131 = vpop.permute.xlu0 %2130
        %2132 = vrot.lane.b32.xlu0 %v2111, 64
        %v2133 = vpop.permute.xlu0 %2132
        %2134 = vrot.lane.b32.xlu0 %v2112, 64
        %v2135 = vpop.permute.xlu0 %2134
        %2136 = vrot.lane.b32.xlu0 %v2113, 64
        %v2137 = vpop.permute.xlu0 %2136
        %vm2146 = vcmask 654848
        %2147 = vst.msk [vmem:[#allocation2] sm:$0xff] %vm2146, %v2123
        %2148 = vst.msk [vmem:[#allocation2 + $0x8] sm:$0xff] %vm2146, %v2125
        %2149 = vst.msk [vmem:[#allocation2 + $0x10] sm:$0xff] %vm2146, %v2127
        %2150 = vst.msk [vmem:[#allocation2 + $0x18] sm:$0xff] %vm2146, %v2129
        %2151 = vst.msk [vmem:[#allocation2 + $0x20] sm:$0xff] %vm2146, %v2131
        %2152 = vst.msk [vmem:[#allocation2 + $0x28] sm:$0xff] %vm2146, %v2133
        %2153 = vst.msk [vmem:[#allocation2 + $0x30] sm:$0xff] %vm2146, %v2135
        %2154 = vst.msk [vmem:[#allocation2 + $0x38] sm:$0xff] %vm2146, %v2137
        %v2155 = vld [vmem:[%s277] sm:$0xf]
        %v2156 = vld [vmem:[%s277 + $0x4] sm:$0xf]
        %v2157 = vld [vmem:[%s277 + $0x8] sm:$0xf]
        %v2158 = vld [vmem:[%s277 + $0xc] sm:$0xf]
        %v2159 = vld [vmem:[%s277 + $0x10] sm:$0xf]
        %v2160 = vld [vmem:[%s277 + $0x14] sm:$0xf]
        %v2161 = vld [vmem:[%s277 + $0x18] sm:$0xf]
        %v2162 = vld [vmem:[%s277 + $0x1c] sm:$0xf]
        %v2171 = vunpack.c.l.b16 %v2155
        %v2172 = vunpack.c.l.b16 %v2156
        %v2173 = vunpack.c.l.b16 %v2157
        %v2174 = vunpack.c.l.b16 %v2158
        %v2175 = vunpack.c.l.b16 %v2159
        %v2176 = vunpack.c.l.b16 %v2160
        %v2177 = vunpack.c.l.b16 %v2161
        %v2178 = vunpack.c.l.b16 %v2162
        %v2179 = vpack.c.b16 %v2172, %v2171
        %v2180 = vpack.c.b16 %v2174, %v2173
        %v2181 = vpack.c.b16 %v2176, %v2175
        %v2182 = vpack.c.b16 %v2178, %v2177
        %2183 = vrot.lane.b32.xlu0 %v2179, 48
        %v2184 = vpop.permute.xlu0 %2183
        %2185 = vrot.lane.b32.xlu0 %v2180, 48
        %v2186 = vpop.permute.xlu0 %2185
        %2187 = vrot.lane.b32.xlu0 %v2181, 48
        %v2188 = vpop.permute.xlu0 %2187
        %2189 = vrot.lane.b32.xlu0 %v2182, 48
        %v2190 = vpop.permute.xlu0 %2189
        %v2192 = vsel %vm392, %v2184, 0
        %v2195 = vsel %vm392, %v2186, 0
        %v2198 = vsel %vm392, %v2188, 0
        %v2201 = vsel %vm392, %v2190, 0
        %2203 = vmatprep.subr.bf16.mxu0 %v389
        %2204 = vmatpush1.bf16.msra.mxu0 %v388
        %2205 = vmatprep.subr.bf16.mxu0 0
        %2206 = vmatpush1.bf16.msra.mxu0 0
        %2207 = vmatprep.subr.bf16.mxu0 0
        %2208 = vmatpush1.bf16.msra.mxu0 0
        %2209 = vmatprep.subr.bf16.mxu0 0
        %2210 = vmatpush1.bf16.msra.mxu0 0
        %2211 = vmatprep.subr.bf16.mxu0 0
        %2212 = vmatpush1.bf16.msra.mxu0 0
        %2213 = vmatprep.subr.bf16.mxu0 0
        %2214 = vmatpush1.bf16.msra.mxu0 0
        %2215 = vmatprep.subr.bf16.mxu0 0
        %2216 = vmatpush1.bf16.msra.mxu0 0
        %2217 = vmatprep.subr.bf16.mxu0 0
        %2218 = vmatpush1.bf16.msra.mxu0 0
        %2219 = vmatprep.subr.bf16.mxu0 0
        %2220 = vmatpush1.bf16.msra.mxu0 0
        %2221 = vmatprep.subr.bf16.mxu0 0
        %2222 = vmatpush1.bf16.msra.mxu0 0
        %2223 = vmatprep.subr.bf16.mxu0 0
        %2224 = vmatpush1.bf16.msra.mxu0 0
        %2225 = vmatprep.subr.bf16.mxu0 0
        %2226 = vmatpush1.bf16.msra.mxu0 0
        %2227 = vmatprep.subr.bf16.mxu0 0
        %2228 = vmatpush1.bf16.msra.mxu0 0
        %2229 = vmatprep.subr.bf16.mxu0 0
        %2230 = vmatpush1.bf16.msra.mxu0 0
        %2231 = vmatprep.subr.bf16.mxu0 0
        %2232 = vmatpush1.bf16.msra.mxu0 0
        %2233 = vmatprep.subr.bf16.mxu0 0
        %2234 = vmatpush1.bf16.msra.mxu0 0
        %2235 = vmatprep.mubr.bf16.mxu0 0
        %2236 = vmatmul.mubr.bf16.gmra.mrb[0].mxu0 %v2192
        %v2237 = vpop.f32.mrb[0].mxu0
        %v2238 = vadd.f32 0.0, %v2237
        %v2239 = vpop.f32.mrb[0].mxu0
        %v2240 = vadd.f32 0.0, %v2239
        %v2241 = vpop.f32.mrb[0].mxu0
        %v2242 = vadd.f32 0.0, %v2241
        %v2243 = vpop.f32.mrb[0].mxu0
        %v2244 = vadd.f32 0.0, %v2243
        %2245 = vmatprep.mubr.bf16.mxu0 0
        %2246 = vmatmul.mubr.bf16.gmra.mrb[0].mxu0 %v2195
        %v2247 = vpop.f32.mrb[0].mxu0
        %v2248 = vadd.f32 0.0, %v2247
        %v2249 = vpop.f32.mrb[0].mxu0
        %v2250 = vadd.f32 0.0, %v2249
        %v2251 = vpop.f32.mrb[0].mxu0
        %v2252 = vadd.f32 0.0, %v2251
        %v2253 = vpop.f32.mrb[0].mxu0
        %v2254 = vadd.f32 0.0, %v2253
        %2255 = vmatprep.mubr.bf16.mxu0 0
        %2256 = vmatmul.mubr.bf16.gmra.mrb[0].mxu0 %v2198
        %v2257 = vpop.f32.mrb[0].mxu0
        %v2258 = vadd.f32 0.0, %v2257
        %v2259 = vpop.f32.mrb[0].mxu0
        %v2260 = vadd.f32 0.0, %v2259
        %v2261 = vpop.f32.mrb[0].mxu0
        %v2262 = vadd.f32 0.0, %v2261
        %v2263 = vpop.f32.mrb[0].mxu0
        %v2264 = vadd.f32 0.0, %v2263
        %2265 = vmatprep.mubr.bf16.mxu0 0
        %2266 = vmatmul.mubr.bf16.gmra.mrb[0].mxu0 %v2201
        %v2267 = vpop.f32.mrb[0].mxu0
        %v2268 = vadd.f32 0.0, %v2267
        %v2269 = vpop.f32.mrb[0].mxu0
        %v2270 = vadd.f32 0.0, %v2269
        %v2271 = vpop.f32.mrb[0].mxu0
        %v2272 = vadd.f32 0.0, %v2271
        %v2273 = vpop.f32.mrb[0].mxu0
        %v2274 = vadd.f32 0.0, %v2273
        %2275 = vdwg.mxu0
        %v2276 = vmax.f32 %v2238, %v2240
        %2277 = vmax.xlane.f32.xlu0 %v2276
        %v2278 = vpop.xlane.xlu0 %2277
        %v2279 = vmax.f32 %v2242, %v2244
        %2280 = vmax.xlane.f32.xlu0 %v2279
        %v2281 = vpop.xlane.xlu0 %2280
        %v2282 = vmax.f32 %v2248, %v2250
        %2283 = vmax.xlane.f32.xlu0 %v2282
        %v2284 = vpop.xlane.xlu0 %2283
        %v2285 = vmax.f32 %v2252, %v2254
        %2286 = vmax.xlane.f32.xlu0 %v2285
        %v2287 = vpop.xlane.xlu0 %2286
        %v2288 = vmax.f32 %v2258, %v2260
        %2289 = vmax.xlane.f32.xlu0 %v2288
        %v2290 = vpop.xlane.xlu0 %2289
        %v2291 = vmax.f32 %v2262, %v2264
        %2292 = vmax.xlane.f32.xlu0 %v2291
        %v2293 = vpop.xlane.xlu0 %2292
        %v2294 = vmax.f32 %v2268, %v2270
        %2295 = vmax.xlane.f32.xlu0 %v2294
        %v2296 = vpop.xlane.xlu0 %2295
        %v2297 = vmax.f32 %v2272, %v2274
        %2298 = vmax.xlane.f32.xlu0 %v2297
        %v2299 = vpop.xlane.xlu0 %2298
        %v2300 = vsub.f32 %v2238, %v2278
        %v2301 = vsub.f32 %v2240, %v2278
        %v2302 = vsub.f32 %v2242, %v2281
        %v2303 = vsub.f32 %v2244, %v2281
        %v2304 = vsub.f32 %v2248, %v2284
        %v2305 = vsub.f32 %v2250, %v2284
        %v2306 = vsub.f32 %v2252, %v2287
        %v2307 = vsub.f32 %v2254, %v2287
        %v2308 = vsub.f32 %v2258, %v2290
        %v2309 = vsub.f32 %v2260, %v2290
        %v2310 = vsub.f32 %v2262, %v2293
        %v2311 = vsub.f32 %v2264, %v2293
        %v2312 = vsub.f32 %v2268, %v2296
        %v2313 = vsub.f32 %v2270, %v2296
        %v2314 = vsub.f32 %v2272, %v2299
        %v2315 = vsub.f32 %v2274, %v2299
        %v2316 = vmul.f32 %v2300, 1.442695
        %v2317 = vpow.pop %v2316
        %v2318 = vmul.f32 %v2301, 1.442695
        %v2319 = vpow.pop %v2318
        %v2320 = vmul.f32 %v2302, 1.442695
        %v2321 = vpow.pop %v2320
        %v2322 = vmul.f32 %v2303, 1.442695
        %v2323 = vpow.pop %v2322
        %v2324 = vmul.f32 %v2304, 1.442695
        %v2325 = vpow.pop %v2324
        %v2326 = vmul.f32 %v2305, 1.442695
        %v2327 = vpow.pop %v2326
        %v2328 = vmul.f32 %v2306, 1.442695
        %v2329 = vpow.pop %v2328
        %v2330 = vmul.f32 %v2307, 1.442695
        %v2331 = vpow.pop %v2330
        %v2332 = vmul.f32 %v2308, 1.442695
        %v2333 = vpow.pop %v2332
        %v2334 = vmul.f32 %v2309, 1.442695
        %v2335 = vpow.pop %v2334
        %v2336 = vmul.f32 %v2310, 1.442695
        %v2337 = vpow.pop %v2336
        %v2338 = vmul.f32 %v2311, 1.442695
        %v2339 = vpow.pop %v2338
        %v2340 = vmul.f32 %v2312, 1.442695
        %v2341 = vpow.pop %v2340
        %v2342 = vmul.f32 %v2313, 1.442695
        %v2343 = vpow.pop %v2342
        %v2344 = vmul.f32 %v2314, 1.442695
        %v2345 = vpow.pop %v2344
        %v2346 = vmul.f32 %v2315, 1.442695
        %v2347 = vpow.pop %v2346
        %v2348 = vadd.f32 %v2317, %v2319
        %2349 = vadd.xlane.f32.xlu0 %v2348
        %v2350 = vpop.xlane.xlu0 %2349
        %v2351 = vadd.f32 %v2321, %v2323
        %2352 = vadd.xlane.f32.xlu0 %v2351
        %v2353 = vpop.xlane.xlu0 %2352
        %v2354 = vadd.f32 %v2325, %v2327
        %2355 = vadd.xlane.f32.xlu0 %v2354
        %v2356 = vpop.xlane.xlu0 %2355
        %v2357 = vadd.f32 %v2329, %v2331
        %2358 = vadd.xlane.f32.xlu0 %v2357
        %v2359 = vpop.xlane.xlu0 %2358
        %v2360 = vadd.f32 %v2333, %v2335
        %2361 = vadd.xlane.f32.xlu0 %v2360
        %v2362 = vpop.xlane.xlu0 %2361
        %v2363 = vadd.f32 %v2337, %v2339
        %2364 = vadd.xlane.f32.xlu0 %v2363
        %v2365 = vpop.xlane.xlu0 %2364
        %v2366 = vadd.f32 %v2341, %v2343
        %2367 = vadd.xlane.f32.xlu0 %v2366
        %v2368 = vpop.xlane.xlu0 %2367
        %v2369 = vadd.f32 %v2345, %v2347
        %2370 = vadd.xlane.f32.xlu0 %v2369
        %v2371 = vpop.xlane.xlu0 %2370
        %v2372 = vpack.c.bf16 %v2321, %v2317
        %v2373 = vpack.c.bf16 %v2323, %v2319
        %v2374 = vpack.c.bf16 %v2329, %v2325
        %v2375 = vpack.c.bf16 %v2331, %v2327
        %v2376 = vpack.c.bf16 %v2337, %v2333
        %v2377 = vpack.c.bf16 %v2339, %v2335
        %v2378 = vpack.c.bf16 %v2345, %v2341
        %v2379 = vpack.c.bf16 %v2347, %v2343
        %2380 = vmatprep.subr.bf16.mxu0 0
        %2381 = vmatpush1.bf16.msra.mxu0 %v646
        %2382 = vmatprep.subr.bf16.mxu0 0
        %2383 = vmatpush1.bf16.msra.mxu0 %v647
        %2384 = vmatprep.subr.bf16.mxu0 0
        %2385 = vmatpush1.bf16.msra.mxu0 %v648
        %2386 = vmatprep.subr.bf16.mxu0 0
        %2387 = vmatpush1.bf16.msra.mxu0 %v649
        %2388 = vmatprep.subr.bf16.mxu0 0
        %2389 = vmatpush1.bf16.msra.mxu0 %v650
        %2390 = vmatprep.subr.bf16.mxu0 0
        %2391 = vmatpush1.bf16.msra.mxu0 %v651
        %2392 = vmatprep.subr.bf16.mxu0 0
        %2393 = vmatpush1.bf16.msra.mxu0 %v652
        %2394 = vmatprep.subr.bf16.mxu0 0
        %2395 = vmatpush1.bf16.msra.mxu0 %v653
        %2396 = vmatprep.subr.bf16.mxu0 0
        %2397 = vmatpush1.bf16.msra.mxu0 %v654
        %2398 = vmatprep.subr.bf16.mxu0 0
        %2399 = vmatpush1.bf16.msra.mxu0 %v655
        %2400 = vmatprep.subr.bf16.mxu0 0
        %2401 = vmatpush1.bf16.msra.mxu0 %v656
        %2402 = vmatprep.subr.bf16.mxu0 0
        %2403 = vmatpush1.bf16.msra.mxu0 %v657
        %2404 = vmatprep.subr.bf16.mxu0 0
        %2405 = vmatpush1.bf16.msra.mxu0 %v658
        %2406 = vmatprep.subr.bf16.mxu0 0
        %2407 = vmatpush1.bf16.msra.mxu0 %v659
        %2408 = vmatprep.subr.bf16.mxu0 0
        %2409 = vmatpush1.bf16.msra.mxu0 %v660
        %2410 = vmatprep.subr.bf16.mxu0 0
        %2411 = vmatpush1.bf16.msra.mxu0 %v661
        %2412 = vmatprep.mubr.bf16.mxu0 %v2373
        %2413 = vmatmul.mubr.bf16.gmra.mrb[0].mxu0 %v2372
        %v2414 = vpop.f32.mrb[0].mxu0
        %v2415 = vadd.f32 0.0, %v2414
        %v2416 = vpop.f32.mrb[0].mxu0
        %v2417 = vpop.f32.mrb[0].mxu0
        %v2418 = vadd.f32 0.0, %v2417
        %v2419 = vpop.f32.mrb[0].mxu0
        %2420 = vmatprep.mubr.bf16.mxu0 %v2375
        %2421 = vmatmul.mubr.bf16.gmra.mrb[0].mxu0 %v2374
        %v2422 = vpop.f32.mrb[0].mxu0
        %v2423 = vadd.f32 0.0, %v2422
        %v2424 = vpop.f32.mrb[0].mxu0
        %v2425 = vpop.f32.mrb[0].mxu0
        %v2426 = vadd.f32 0.0, %v2425
        %v2427 = vpop.f32.mrb[0].mxu0
        %2428 = vmatprep.mubr.bf16.mxu0 %v2377
        %2429 = vmatmul.mubr.bf16.gmra.mrb[0].mxu0 %v2376
        %v2430 = vpop.f32.mrb[0].mxu0
        %v2431 = vadd.f32 0.0, %v2430
        %v2432 = vpop.f32.mrb[0].mxu0
        %v2433 = vpop.f32.mrb[0].mxu0
        %v2434 = vadd.f32 0.0, %v2433
        %v2435 = vpop.f32.mrb[0].mxu0
        %2436 = vmatprep.mubr.bf16.mxu0 %v2379
        %2437 = vmatmul.mubr.bf16.gmra.mrb[0].mxu0 %v2378
        %v2438 = vpop.f32.mrb[0].mxu0
        %v2439 = vadd.f32 0.0, %v2438
        %v2440 = vpop.f32.mrb[0].mxu0
        %v2441 = vpop.f32.mrb[0].mxu0
        %v2442 = vadd.f32 0.0, %v2441
        %v2443 = vpop.f32.mrb[0].mxu0
        %2444 = vdwg.mxu0
        %v2445 = vrcp.pop %v2350
        %v2446 = vrcp.pop %v2353
        %v2447 = vrcp.pop %v2356
        %v2448 = vrcp.pop %v2359
        %v2449 = vrcp.pop %v2362
        %v2450 = vrcp.pop %v2365
        %v2451 = vrcp.pop %v2368
        %v2452 = vrcp.pop %v2371
        %v2453 = vmul.f32 %v2415, %v2445
        %v2454 = vmul.f32 %v2418, %v2446
        %v2455 = vmul.f32 %v2423, %v2447
        %v2456 = vmul.f32 %v2426, %v2448
        %v2457 = vmul.f32 %v2431, %v2449
        %v2458 = vmul.f32 %v2434, %v2450
        %v2459 = vmul.f32 %v2439, %v2451
        %v2460 = vmul.f32 %v2442, %v2452
        %2469 = vrot.lane.b32.xlu0 %v2453, 80
        %v2470 = vpop.permute.xlu0 %2469
        %2471 = vrot.lane.b32.xlu0 %v2454, 80
        %v2472 = vpop.permute.xlu0 %2471
        %2473 = vrot.lane.b32.xlu0 %v2455, 80
        %v2474 = vpop.permute.xlu0 %2473
        %2475 = vrot.lane.b32.xlu0 %v2456, 80
        %v2476 = vpop.permute.xlu0 %2475
        %2477 = vrot.lane.b32.xlu0 %v2457, 80
        %v2478 = vpop.permute.xlu0 %2477
        %2479 = vrot.lane.b32.xlu0 %v2458, 80
        %v2480 = vpop.permute.xlu0 %2479
        %2481 = vrot.lane.b32.xlu0 %v2459, 80
        %v2482 = vpop.permute.xlu0 %2481
        %2483 = vrot.lane.b32.xlu0 %v2460, 80
        %v2484 = vpop.permute.xlu0 %2483
        %vm2493 = vcmask 786048
        %2494 = vst.msk [vmem:[#allocation2] sm:$0xff] %vm2493, %v2470
        %2495 = vst.msk [vmem:[#allocation2 + $0x8] sm:$0xff] %vm2493, %v2472
        %2496 = vst.msk [vmem:[#allocation2 + $0x10] sm:$0xff] %vm2493, %v2474
        %2497 = vst.msk [vmem:[#allocation2 + $0x18] sm:$0xff] %vm2493, %v2476
        %2498 = vst.msk [vmem:[#allocation2 + $0x20] sm:$0xff] %vm2493, %v2478
        %2499 = vst.msk [vmem:[#allocation2 + $0x28] sm:$0xff] %vm2493, %v2480
        %2500 = vst.msk [vmem:[#allocation2 + $0x30] sm:$0xff] %vm2493, %v2482
        %2501 = vst.msk [vmem:[#allocation2 + $0x38] sm:$0xff] %vm2493, %v2484
        %v2502 = vld [vmem:[%s277] sm:$0xf]
        %v2503 = vld [vmem:[%s277 + $0x4] sm:$0xf]
        %v2504 = vld [vmem:[%s277 + $0x8] sm:$0xf]
        %v2505 = vld [vmem:[%s277 + $0xc] sm:$0xf]
        %v2506 = vld [vmem:[%s277 + $0x10] sm:$0xf]
        %v2507 = vld [vmem:[%s277 + $0x14] sm:$0xf]
        %v2508 = vld [vmem:[%s277 + $0x18] sm:$0xf]
        %v2509 = vld [vmem:[%s277 + $0x1c] sm:$0xf]
        %v2518 = vunpack.c.l.b16 %v2502
        %v2519 = vunpack.c.l.b16 %v2503
        %v2520 = vunpack.c.l.b16 %v2504
        %v2521 = vunpack.c.l.b16 %v2505
        %v2522 = vunpack.c.l.b16 %v2506
        %v2523 = vunpack.c.l.b16 %v2507
        %v2524 = vunpack.c.l.b16 %v2508
        %v2525 = vunpack.c.l.b16 %v2509
        %v2526 = vpack.c.b16 %v2519, %v2518
        %v2527 = vpack.c.b16 %v2521, %v2520
        %v2528 = vpack.c.b16 %v2523, %v2522
        %v2529 = vpack.c.b16 %v2525, %v2524
        %2530 = vrot.lane.b32.xlu0 %v2526, 32
        %v2531 = vpop.permute.xlu0 %2530
        %2532 = vrot.lane.b32.xlu0 %v2527, 32
        %v2533 = vpop.permute.xlu0 %2532
        %2534 = vrot.lane.b32.xlu0 %v2528, 32
        %v2535 = vpop.permute.xlu0 %2534
        %2536 = vrot.lane.b32.xlu0 %v2529, 32
        %v2537 = vpop.permute.xlu0 %2536
        %v2539 = vsel %vm392, %v2531, 0
        %v2542 = vsel %vm392, %v2533, 0
        %v2545 = vsel %vm392, %v2535, 0
        %v2548 = vsel %vm392, %v2537, 0
        %2550 = vmatprep.subr.bf16.mxu0 %v389
        %2551 = vmatpush1.bf16.msra.mxu0 %v388
        %2552 = vmatprep.subr.bf16.mxu0 0
        %2553 = vmatpush1.bf16.msra.mxu0 0
        %2554 = vmatprep.subr.bf16.mxu0 0
        %2555 = vmatpush1.bf16.msra.mxu0 0
        %2556 = vmatprep.subr.bf16.mxu0 0
        %2557 = vmatpush1.bf16.msra.mxu0 0
        %2558 = vmatprep.subr.bf16.mxu0 0
        %2559 = vmatpush1.bf16.msra.mxu0 0
        %2560 = vmatprep.subr.bf16.mxu0 0
        %2561 = vmatpush1.bf16.msra.mxu0 0
        %2562 = vmatprep.subr.bf16.mxu0 0
        %2563 = vmatpush1.bf16.msra.mxu0 0
        %2564 = vmatprep.subr.bf16.mxu0 0
        %2565 = vmatpush1.bf16.msra.mxu0 0
        %2566 = vmatprep.subr.bf16.mxu0 0
        %2567 = vmatpush1.bf16.msra.mxu0 0
        %2568 = vmatprep.subr.bf16.mxu0 0
        %2569 = vmatpush1.bf16.msra.mxu0 0
        %2570 = vmatprep.subr.bf16.mxu0 0
        %2571 = vmatpush1.bf16.msra.mxu0 0
        %2572 = vmatprep.subr.bf16.mxu0 0
        %2573 = vmatpush1.bf16.msra.mxu0 0
        %2574 = vmatprep.subr.bf16.mxu0 0
        %2575 = vmatpush1.bf16.msra.mxu0 0
        %2576 = vmatprep.subr.bf16.mxu0 0
        %2577 = vmatpush1.bf16.msra.mxu0 0
        %2578 = vmatprep.subr.bf16.mxu0 0
        %2579 = vmatpush1.bf16.msra.mxu0 0
        %2580 = vmatprep.subr.bf16.mxu0 0
        %2581 = vmatpush1.bf16.msra.mxu0 0
        %2582 = vmatprep.mubr.bf16.mxu0 0
        %2583 = vmatmul.mubr.bf16.gmra.mrb[0].mxu0 %v2539
        %v2584 = vpop.f32.mrb[0].mxu0
        %v2585 = vadd.f32 0.0, %v2584
        %v2586 = vpop.f32.mrb[0].mxu0
        %v2587 = vadd.f32 0.0, %v2586
        %v2588 = vpop.f32.mrb[0].mxu0
        %v2589 = vadd.f32 0.0, %v2588
        %v2590 = vpop.f32.mrb[0].mxu0
        %v2591 = vadd.f32 0.0, %v2590
        %2592 = vmatprep.mubr.bf16.mxu0 0
        %2593 = vmatmul.mubr.bf16.gmra.mrb[0].mxu0 %v2542
        %v2594 = vpop.f32.mrb[0].mxu0
        %v2595 = vadd.f32 0.0, %v2594
        %v2596 = vpop.f32.mrb[0].mxu0
        %v2597 = vadd.f32 0.0, %v2596
        %v2598 = vpop.f32.mrb[0].mxu0
        %v2599 = vadd.f32 0.0, %v2598
        %v2600 = vpop.f32.mrb[0].mxu0
        %v2601 = vadd.f32 0.0, %v2600
        %2602 = vmatprep.mubr.bf16.mxu0 0
        %2603 = vmatmul.mubr.bf16.gmra.mrb[0].mxu0 %v2545
        %v2604 = vpop.f32.mrb[0].mxu0
        %v2605 = vadd.f32 0.0, %v2604
        %v2606 = vpop.f32.mrb[0].mxu0
        %v2607 = vadd.f32 0.0, %v2606
        %v2608 = vpop.f32.mrb[0].mxu0
        %v2609 = vadd.f32 0.0, %v2608
        %v2610 = vpop.f32.mrb[0].mxu0
        %v2611 = vadd.f32 0.0, %v2610
        %2612 = vmatprep.mubr.bf16.mxu0 0
        %2613 = vmatmul.mubr.bf16.gmra.mrb[0].mxu0 %v2548
        %v2614 = vpop.f32.mrb[0].mxu0
        %v2615 = vadd.f32 0.0, %v2614
        %v2616 = vpop.f32.mrb[0].mxu0
        %v2617 = vadd.f32 0.0, %v2616
        %v2618 = vpop.f32.mrb[0].mxu0
        %v2619 = vadd.f32 0.0, %v2618
        %v2620 = vpop.f32.mrb[0].mxu0
        %v2621 = vadd.f32 0.0, %v2620
        %2622 = vdwg.mxu0
        %v2623 = vmax.f32 %v2585, %v2587
        %2624 = vmax.xlane.f32.xlu0 %v2623
        %v2625 = vpop.xlane.xlu0 %2624
        %v2626 = vmax.f32 %v2589, %v2591
        %2627 = vmax.xlane.f32.xlu0 %v2626
        %v2628 = vpop.xlane.xlu0 %2627
        %v2629 = vmax.f32 %v2595, %v2597
        %2630 = vmax.xlane.f32.xlu0 %v2629
        %v2631 = vpop.xlane.xlu0 %2630
        %v2632 = vmax.f32 %v2599, %v2601
        %2633 = vmax.xlane.f32.xlu0 %v2632
        %v2634 = vpop.xlane.xlu0 %2633
        %v2635 = vmax.f32 %v2605, %v2607
        %2636 = vmax.xlane.f32.xlu0 %v2635
        %v2637 = vpop.xlane.xlu0 %2636
        %v2638 = vmax.f32 %v2609, %v2611
        %2639 = vmax.xlane.f32.xlu0 %v2638
        %v2640 = vpop.xlane.xlu0 %2639
        %v2641 = vmax.f32 %v2615, %v2617
        %2642 = vmax.xlane.f32.xlu0 %v2641
        %v2643 = vpop.xlane.xlu0 %2642
        %v2644 = vmax.f32 %v2619, %v2621
        %2645 = vmax.xlane.f32.xlu0 %v2644
        %v2646 = vpop.xlane.xlu0 %2645
        %v2647 = vsub.f32 %v2585, %v2625
        %v2648 = vsub.f32 %v2587, %v2625
        %v2649 = vsub.f32 %v2589, %v2628
        %v2650 = vsub.f32 %v2591, %v2628
        %v2651 = vsub.f32 %v2595, %v2631
        %v2652 = vsub.f32 %v2597, %v2631
        %v2653 = vsub.f32 %v2599, %v2634
        %v2654 = vsub.f32 %v2601, %v2634
        %v2655 = vsub.f32 %v2605, %v2637
        %v2656 = vsub.f32 %v2607, %v2637
        %v2657 = vsub.f32 %v2609, %v2640
        %v2658 = vsub.f32 %v2611, %v2640
        %v2659 = vsub.f32 %v2615, %v2643
        %v2660 = vsub.f32 %v2617, %v2643
        %v2661 = vsub.f32 %v2619, %v2646
        %v2662 = vsub.f32 %v2621, %v2646
        %v2663 = vmul.f32 %v2647, 1.442695
        %v2664 = vpow.pop %v2663
        %v2665 = vmul.f32 %v2648, 1.442695
        %v2666 = vpow.pop %v2665
        %v2667 = vmul.f32 %v2649, 1.442695
        %v2668 = vpow.pop %v2667
        %v2669 = vmul.f32 %v2650, 1.442695
        %v2670 = vpow.pop %v2669
        %v2671 = vmul.f32 %v2651, 1.442695
        %v2672 = vpow.pop %v2671
        %v2673 = vmul.f32 %v2652, 1.442695
        %v2674 = vpow.pop %v2673
        %v2675 = vmul.f32 %v2653, 1.442695
        %v2676 = vpow.pop %v2675
        %v2677 = vmul.f32 %v2654, 1.442695
        %v2678 = vpow.pop %v2677
        %v2679 = vmul.f32 %v2655, 1.442695
        %v2680 = vpow.pop %v2679
        %v2681 = vmul.f32 %v2656, 1.442695
        %v2682 = vpow.pop %v2681
        %v2683 = vmul.f32 %v2657, 1.442695
        %v2684 = vpow.pop %v2683
        %v2685 = vmul.f32 %v2658, 1.442695
        %v2686 = vpow.pop %v2685
        %v2687 = vmul.f32 %v2659, 1.442695
        %v2688 = vpow.pop %v2687
        %v2689 = vmul.f32 %v2660, 1.442695
        %v2690 = vpow.pop %v2689
        %v2691 = vmul.f32 %v2661, 1.442695
        %v2692 = vpow.pop %v2691
        %v2693 = vmul.f32 %v2662, 1.442695
        %v2694 = vpow.pop %v2693
        %v2695 = vadd.f32 %v2664, %v2666
        %2696 = vadd.xlane.f32.xlu0 %v2695
        %v2697 = vpop.xlane.xlu0 %2696
        %v2698 = vadd.f32 %v2668, %v2670
        %2699 = vadd.xlane.f32.xlu0 %v2698
        %v2700 = vpop.xlane.xlu0 %2699
        %v2701 = vadd.f32 %v2672, %v2674
        %2702 = vadd.xlane.f32.xlu0 %v2701
        %v2703 = vpop.xlane.xlu0 %2702
        %v2704 = vadd.f32 %v2676, %v2678
        %2705 = vadd.xlane.f32.xlu0 %v2704
        %v2706 = vpop.xlane.xlu0 %2705
        %v2707 = vadd.f32 %v2680, %v2682
        %2708 = vadd.xlane.f32.xlu0 %v2707
        %v2709 = vpop.xlane.xlu0 %2708
        %v2710 = vadd.f32 %v2684, %v2686
        %2711 = vadd.xlane.f32.xlu0 %v2710
        %v2712 = vpop.xlane.xlu0 %2711
        %v2713 = vadd.f32 %v2688, %v2690
        %2714 = vadd.xlane.f32.xlu0 %v2713
        %v2715 = vpop.xlane.xlu0 %2714
        %v2716 = vadd.f32 %v2692, %v2694
        %2717 = vadd.xlane.f32.xlu0 %v2716
        %v2718 = vpop.xlane.xlu0 %2717
        %v2719 = vpack.c.bf16 %v2668, %v2664
        %v2720 = vpack.c.bf16 %v2670, %v2666
        %v2721 = vpack.c.bf16 %v2676, %v2672
        %v2722 = vpack.c.bf16 %v2678, %v2674
        %v2723 = vpack.c.bf16 %v2684, %v2680
        %v2724 = vpack.c.bf16 %v2686, %v2682
        %v2725 = vpack.c.bf16 %v2692, %v2688
        %v2726 = vpack.c.bf16 %v2694, %v2690
        %2727 = vmatprep.subr.bf16.mxu0 0
        %2728 = vmatpush1.bf16.msra.mxu0 %v646
        %2729 = vmatprep.subr.bf16.mxu0 0
        %2730 = vmatpush1.bf16.msra.mxu0 %v647
        %2731 = vmatprep.subr.bf16.mxu0 0
        %2732 = vmatpush1.bf16.msra.mxu0 %v648
        %2733 = vmatprep.subr.bf16.mxu0 0
        %2734 = vmatpush1.bf16.msra.mxu0 %v649
        %2735 = vmatprep.subr.bf16.mxu0 0
        %2736 = vmatpush1.bf16.msra.mxu0 %v650
        %2737 = vmatprep.subr.bf16.mxu0 0
        %2738 = vmatpush1.bf16.msra.mxu0 %v651
        %2739 = vmatprep.subr.bf16.mxu0 0
        %2740 = vmatpush1.bf16.msra.mxu0 %v652
        %2741 = vmatprep.subr.bf16.mxu0 0
        %2742 = vmatpush1.bf16.msra.mxu0 %v653
        %2743 = vmatprep.subr.bf16.mxu0 0
        %2744 = vmatpush1.bf16.msra.mxu0 %v654
        %2745 = vmatprep.subr.bf16.mxu0 0
        %2746 = vmatpush1.bf16.msra.mxu0 %v655
        %2747 = vmatprep.subr.bf16.mxu0 0
        %2748 = vmatpush1.bf16.msra.mxu0 %v656
        %2749 = vmatprep.subr.bf16.mxu0 0
        %2750 = vmatpush1.bf16.msra.mxu0 %v657
        %2751 = vmatprep.subr.bf16.mxu0 0
        %2752 = vmatpush1.bf16.msra.mxu0 %v658
        %2753 = vmatprep.subr.bf16.mxu0 0
        %2754 = vmatpush1.bf16.msra.mxu0 %v659
        %2755 = vmatprep.subr.bf16.mxu0 0
        %2756 = vmatpush1.bf16.msra.mxu0 %v660
        %2757 = vmatprep.subr.bf16.mxu0 0
        %2758 = vmatpush1.bf16.msra.mxu0 %v661
        %2759 = vmatprep.mubr.bf16.mxu0 %v2720
        %2760 = vmatmul.mubr.bf16.gmra.mrb[0].mxu0 %v2719
        %v2761 = vpop.f32.mrb[0].mxu0
        %v2762 = vadd.f32 0.0, %v2761
        %v2763 = vpop.f32.mrb[0].mxu0
        %v2764 = vpop.f32.mrb[0].mxu0
        %v2765 = vadd.f32 0.0, %v2764
        %v2766 = vpop.f32.mrb[0].mxu0
        %2767 = vmatprep.mubr.bf16.mxu0 %v2722
        %2768 = vmatmul.mubr.bf16.gmra.mrb[0].mxu0 %v2721
        %v2769 = vpop.f32.mrb[0].mxu0
        %v2770 = vadd.f32 0.0, %v2769
        %v2771 = vpop.f32.mrb[0].mxu0
        %v2772 = vpop.f32.mrb[0].mxu0
        %v2773 = vadd.f32 0.0, %v2772
        %v2774 = vpop.f32.mrb[0].mxu0
        %2775 = vmatprep.mubr.bf16.mxu0 %v2724
        %2776 = vmatmul.mubr.bf16.gmra.mrb[0].mxu0 %v2723
        %v2777 = vpop.f32.mrb[0].mxu0
        %v2778 = vadd.f32 0.0, %v2777
        %v2779 = vpop.f32.mrb[0].mxu0
        %v2780 = vpop.f32.mrb[0].mxu0
        %v2781 = vadd.f32 0.0, %v2780
        %v2782 = vpop.f32.mrb[0].mxu0
        %2783 = vmatprep.mubr.bf16.mxu0 %v2726
        %2784 = vmatmul.mubr.bf16.gmra.mrb[0].mxu0 %v2725
        %v2785 = vpop.f32.mrb[0].mxu0
        %v2786 = vadd.f32 0.0, %v2785
        %v2787 = vpop.f32.mrb[0].mxu0
        %v2788 = vpop.f32.mrb[0].mxu0
        %v2789 = vadd.f32 0.0, %v2788
        %v2790 = vpop.f32.mrb[0].mxu0
        %2791 = vdwg.mxu0
        %v2792 = vrcp.pop %v2697
        %v2793 = vrcp.pop %v2700
        %v2794 = vrcp.pop %v2703
        %v2795 = vrcp.pop %v2706
        %v2796 = vrcp.pop %v2709
        %v2797 = vrcp.pop %v2712
        %v2798 = vrcp.pop %v2715
        %v2799 = vrcp.pop %v2718
        %v2800 = vmul.f32 %v2762, %v2792
        %v2801 = vmul.f32 %v2765, %v2793
        %v2802 = vmul.f32 %v2770, %v2794
        %v2803 = vmul.f32 %v2773, %v2795
        %v2804 = vmul.f32 %v2778, %v2796
        %v2805 = vmul.f32 %v2781, %v2797
        %v2806 = vmul.f32 %v2786, %v2798
        %v2807 = vmul.f32 %v2789, %v2799
        %2816 = vrot.lane.b32.xlu0 %v2800, 96
        %v2817 = vpop.permute.xlu0 %2816
        %2818 = vrot.lane.b32.xlu0 %v2801, 96
        %v2819 = vpop.permute.xlu0 %2818
        %2820 = vrot.lane.b32.xlu0 %v2802, 96
        %v2821 = vpop.permute.xlu0 %2820
        %2822 = vrot.lane.b32.xlu0 %v2803, 96
        %v2823 = vpop.permute.xlu0 %2822
        %2824 = vrot.lane.b32.xlu0 %v2804, 96
        %v2825 = vpop.permute.xlu0 %2824
        %2826 = vrot.lane.b32.xlu0 %v2805, 96
        %v2827 = vpop.permute.xlu0 %2826
        %2828 = vrot.lane.b32.xlu0 %v2806, 96
        %v2829 = vpop.permute.xlu0 %2828
        %2830 = vrot.lane.b32.xlu0 %v2807, 96
        %v2831 = vpop.permute.xlu0 %2830
        %vm2840 = vcmask 917248
        %2841 = vst.msk [vmem:[#allocation2] sm:$0xff] %vm2840, %v2817
        %2842 = vst.msk [vmem:[#allocation2 + $0x8] sm:$0xff] %vm2840, %v2819
        %2843 = vst.msk [vmem:[#allocation2 + $0x10] sm:$0xff] %vm2840, %v2821
        %2844 = vst.msk [vmem:[#allocation2 + $0x18] sm:$0xff] %vm2840, %v2823
        %2845 = vst.msk [vmem:[#allocation2 + $0x20] sm:$0xff] %vm2840, %v2825
        %2846 = vst.msk [vmem:[#allocation2 + $0x28] sm:$0xff] %vm2840, %v2827
        %2847 = vst.msk [vmem:[#allocation2 + $0x30] sm:$0xff] %vm2840, %v2829
        %2848 = vst.msk [vmem:[#allocation2 + $0x38] sm:$0xff] %vm2840, %v2831
        %v2849 = vld [vmem:[%s277] sm:$0xf]
        %v2850 = vld [vmem:[%s277 + $0x4] sm:$0xf]
        %v2851 = vld [vmem:[%s277 + $0x8] sm:$0xf]
        %v2852 = vld [vmem:[%s277 + $0xc] sm:$0xf]
        %v2853 = vld [vmem:[%s277 + $0x10] sm:$0xf]
        %v2854 = vld [vmem:[%s277 + $0x14] sm:$0xf]
        %v2855 = vld [vmem:[%s277 + $0x18] sm:$0xf]
        %v2856 = vld [vmem:[%s277 + $0x1c] sm:$0xf]
        %v2865 = vunpack.c.l.b16 %v2849
        %v2866 = vunpack.c.l.b16 %v2850
        %v2867 = vunpack.c.l.b16 %v2851
        %v2868 = vunpack.c.l.b16 %v2852
        %v2869 = vunpack.c.l.b16 %v2853
        %v2870 = vunpack.c.l.b16 %v2854
        %v2871 = vunpack.c.l.b16 %v2855
        %v2872 = vunpack.c.l.b16 %v2856
        %v2873 = vpack.c.b16 %v2866, %v2865
        %v2874 = vpack.c.b16 %v2868, %v2867
        %v2875 = vpack.c.b16 %v2870, %v2869
        %v2876 = vpack.c.b16 %v2872, %v2871
        %2877 = vrot.lane.b32.xlu0 %v2873, 16
        %v2878 = vpop.permute.xlu0 %2877
        %2879 = vrot.lane.b32.xlu0 %v2874, 16
        %v2880 = vpop.permute.xlu0 %2879
        %2881 = vrot.lane.b32.xlu0 %v2875, 16
        %v2882 = vpop.permute.xlu0 %2881
        %2883 = vrot.lane.b32.xlu0 %v2876, 16
        %v2884 = vpop.permute.xlu0 %2883
        %v2886 = vsel %vm392, %v2878, 0
        %v2889 = vsel %vm392, %v2880, 0
        %v2892 = vsel %vm392, %v2882, 0
        %v2895 = vsel %vm392, %v2884, 0
        %2897 = vmatprep.subr.bf16.mxu0 %v389
        %2898 = vmatpush1.bf16.msra.mxu0 %v388
        %2899 = vmatprep.subr.bf16.mxu0 0
        %2900 = vmatpush1.bf16.msra.mxu0 0
        %2901 = vmatprep.subr.bf16.mxu0 0
        %2902 = vmatpush1.bf16.msra.mxu0 0
        %2903 = vmatprep.subr.bf16.mxu0 0
        %2904 = vmatpush1.bf16.msra.mxu0 0
        %2905 = vmatprep.subr.bf16.mxu0 0
        %2906 = vmatpush1.bf16.msra.mxu0 0
        %2907 = vmatprep.subr.bf16.mxu0 0
        %2908 = vmatpush1.bf16.msra.mxu0 0
        %2909 = vmatprep.subr.bf16.mxu0 0
        %2910 = vmatpush1.bf16.msra.mxu0 0
        %2911 = vmatprep.subr.bf16.mxu0 0
        %2912 = vmatpush1.bf16.msra.mxu0 0
        %2913 = vmatprep.subr.bf16.mxu0 0
        %2914 = vmatpush1.bf16.msra.mxu0 0
        %2915 = vmatprep.subr.bf16.mxu0 0
        %2916 = vmatpush1.bf16.msra.mxu0 0
        %2917 = vmatprep.subr.bf16.mxu0 0
        %2918 = vmatpush1.bf16.msra.mxu0 0
        %2919 = vmatprep.subr.bf16.mxu0 0
        %2920 = vmatpush1.bf16.msra.mxu0 0
        %2921 = vmatprep.subr.bf16.mxu0 0
        %2922 = vmatpush1.bf16.msra.mxu0 0
        %2923 = vmatprep.subr.bf16.mxu0 0
        %2924 = vmatpush1.bf16.msra.mxu0 0
        %2925 = vmatprep.subr.bf16.mxu0 0
        %2926 = vmatpush1.bf16.msra.mxu0 0
        %2927 = vmatprep.subr.bf16.mxu0 0
        %2928 = vmatpush1.bf16.msra.mxu0 0
        %2929 = vmatprep.mubr.bf16.mxu0 0
        %2930 = vmatmul.mubr.bf16.gmra.mrb[0].mxu0 %v2886
        %v2931 = vpop.f32.mrb[0].mxu0
        %v2932 = vadd.f32 0.0, %v2931
        %v2933 = vpop.f32.mrb[0].mxu0
        %v2934 = vadd.f32 0.0, %v2933
        %v2935 = vpop.f32.mrb[0].mxu0
        %v2936 = vadd.f32 0.0, %v2935
        %v2937 = vpop.f32.mrb[0].mxu0
        %v2938 = vadd.f32 0.0, %v2937
        %2939 = vmatprep.mubr.bf16.mxu0 0
        %2940 = vmatmul.mubr.bf16.gmra.mrb[0].mxu0 %v2889
        %v2941 = vpop.f32.mrb[0].mxu0
        %v2942 = vadd.f32 0.0, %v2941
        %v2943 = vpop.f32.mrb[0].mxu0
        %v2944 = vadd.f32 0.0, %v2943
        %v2945 = vpop.f32.mrb[0].mxu0
        %v2946 = vadd.f32 0.0, %v2945
        %v2947 = vpop.f32.mrb[0].mxu0
        %v2948 = vadd.f32 0.0, %v2947
        %2949 = vmatprep.mubr.bf16.mxu0 0
        %2950 = vmatmul.mubr.bf16.gmra.mrb[0].mxu0 %v2892
        %v2951 = vpop.f32.mrb[0].mxu0
        %v2952 = vadd.f32 0.0, %v2951
        %v2953 = vpop.f32.mrb[0].mxu0
        %v2954 = vadd.f32 0.0, %v2953
        %v2955 = vpop.f32.mrb[0].mxu0
        %v2956 = vadd.f32 0.0, %v2955
        %v2957 = vpop.f32.mrb[0].mxu0
        %v2958 = vadd.f32 0.0, %v2957
        %2959 = vmatprep.mubr.bf16.mxu0 0
        %2960 = vmatmul.mubr.bf16.gmra.mrb[0].mxu0 %v2895
        %v2961 = vpop.f32.mrb[0].mxu0
        %v2962 = vadd.f32 0.0, %v2961
        %v2963 = vpop.f32.mrb[0].mxu0
        %v2964 = vadd.f32 0.0, %v2963
        %v2965 = vpop.f32.mrb[0].mxu0
        %v2966 = vadd.f32 0.0, %v2965
        %v2967 = vpop.f32.mrb[0].mxu0
        %v2968 = vadd.f32 0.0, %v2967
        %2969 = vdwg.mxu0
        %v2970 = vmax.f32 %v2932, %v2934
        %2971 = vmax.xlane.f32.xlu0 %v2970
        %v2972 = vpop.xlane.xlu0 %2971
        %v2973 = vmax.f32 %v2936, %v2938
        %2974 = vmax.xlane.f32.xlu0 %v2973
        %v2975 = vpop.xlane.xlu0 %2974
        %v2976 = vmax.f32 %v2942, %v2944
        %2977 = vmax.xlane.f32.xlu0 %v2976
        %v2978 = vpop.xlane.xlu0 %2977
        %v2979 = vmax.f32 %v2946, %v2948
        %2980 = vmax.xlane.f32.xlu0 %v2979
        %v2981 = vpop.xlane.xlu0 %2980
        %v2982 = vmax.f32 %v2952, %v2954
        %2983 = vmax.xlane.f32.xlu0 %v2982
        %v2984 = vpop.xlane.xlu0 %2983
        %v2985 = vmax.f32 %v2956, %v2958
        %2986 = vmax.xlane.f32.xlu0 %v2985
        %v2987 = vpop.xlane.xlu0 %2986
        %v2988 = vmax.f32 %v2962, %v2964
        %2989 = vmax.xlane.f32.xlu0 %v2988
        %v2990 = vpop.xlane.xlu0 %2989
        %v2991 = vmax.f32 %v2966, %v2968
        %2992 = vmax.xlane.f32.xlu0 %v2991
        %v2993 = vpop.xlane.xlu0 %2992
        %v2994 = vsub.f32 %v2932, %v2972
        %v2995 = vsub.f32 %v2934, %v2972
        %v2996 = vsub.f32 %v2936, %v2975
        %v2997 = vsub.f32 %v2938, %v2975
        %v2998 = vsub.f32 %v2942, %v2978
        %v2999 = vsub.f32 %v2944, %v2978
        %v3000 = vsub.f32 %v2946, %v2981
        %v3001 = vsub.f32 %v2948, %v2981
        %v3002 = vsub.f32 %v2952, %v2984
        %v3003 = vsub.f32 %v2954, %v2984
        %v3004 = vsub.f32 %v2956, %v2987
        %v3005 = vsub.f32 %v2958, %v2987
        %v3006 = vsub.f32 %v2962, %v2990
        %v3007 = vsub.f32 %v2964, %v2990
        %v3008 = vsub.f32 %v2966, %v2993
        %v3009 = vsub.f32 %v2968, %v2993
        %v3010 = vmul.f32 %v2994, 1.442695
        %v3011 = vpow.pop %v3010
        %v3012 = vmul.f32 %v2995, 1.442695
        %v3013 = vpow.pop %v3012
        %v3014 = vmul.f32 %v2996, 1.442695
        %v3015 = vpow.pop %v3014
        %v3016 = vmul.f32 %v2997, 1.442695
        %v3017 = vpow.pop %v3016
        %v3018 = vmul.f32 %v2998, 1.442695
        %v3019 = vpow.pop %v3018
        %v3020 = vmul.f32 %v2999, 1.442695
        %v3021 = vpow.pop %v3020
        %v3022 = vmul.f32 %v3000, 1.442695
        %v3023 = vpow.pop %v3022
        %v3024 = vmul.f32 %v3001, 1.442695
        %v3025 = vpow.pop %v3024
        %v3026 = vmul.f32 %v3002, 1.442695
        %v3027 = vpow.pop %v3026
        %v3028 = vmul.f32 %v3003, 1.442695
        %v3029 = vpow.pop %v3028
        %v3030 = vmul.f32 %v3004, 1.442695
        %v3031 = vpow.pop %v3030
        %v3032 = vmul.f32 %v3005, 1.442695
        %v3033 = vpow.pop %v3032
        %v3034 = vmul.f32 %v3006, 1.442695
        %v3035 = vpow.pop %v3034
        %v3036 = vmul.f32 %v3007, 1.442695
        %v3037 = vpow.pop %v3036
        %v3038 = vmul.f32 %v3008, 1.442695
        %v3039 = vpow.pop %v3038
        %v3040 = vmul.f32 %v3009, 1.442695
        %v3041 = vpow.pop %v3040
        %v3042 = vadd.f32 %v3011, %v3013
        %3043 = vadd.xlane.f32.xlu0 %v3042
        %v3044 = vpop.xlane.xlu0 %3043
        %v3045 = vadd.f32 %v3015, %v3017
        %3046 = vadd.xlane.f32.xlu0 %v3045
        %v3047 = vpop.xlane.xlu0 %3046
        %v3048 = vadd.f32 %v3019, %v3021
        %3049 = vadd.xlane.f32.xlu0 %v3048
        %v3050 = vpop.xlane.xlu0 %3049
        %v3051 = vadd.f32 %v3023, %v3025
        %3052 = vadd.xlane.f32.xlu0 %v3051
        %v3053 = vpop.xlane.xlu0 %3052
        %v3054 = vadd.f32 %v3027, %v3029
        %3055 = vadd.xlane.f32.xlu0 %v3054
        %v3056 = vpop.xlane.xlu0 %3055
        %v3057 = vadd.f32 %v3031, %v3033
        %3058 = vadd.xlane.f32.xlu0 %v3057
        %v3059 = vpop.xlane.xlu0 %3058
        %v3060 = vadd.f32 %v3035, %v3037
        %3061 = vadd.xlane.f32.xlu0 %v3060
        %v3062 = vpop.xlane.xlu0 %3061
        %v3063 = vadd.f32 %v3039, %v3041
        %3064 = vadd.xlane.f32.xlu0 %v3063
        %v3065 = vpop.xlane.xlu0 %3064
        %v3066 = vpack.c.bf16 %v3015, %v3011
        %v3067 = vpack.c.bf16 %v3017, %v3013
        %v3068 = vpack.c.bf16 %v3023, %v3019
        %v3069 = vpack.c.bf16 %v3025, %v3021
        %v3070 = vpack.c.bf16 %v3031, %v3027
        %v3071 = vpack.c.bf16 %v3033, %v3029
        %v3072 = vpack.c.bf16 %v3039, %v3035
        %v3073 = vpack.c.bf16 %v3041, %v3037
        %3074 = vmatprep.subr.bf16.mxu0 0
        %3075 = vmatpush1.bf16.msra.mxu0 %v646
        %3076 = vmatprep.subr.bf16.mxu0 0
        %3077 = vmatpush1.bf16.msra.mxu0 %v647
        %3078 = vmatprep.subr.bf16.mxu0 0
        %3079 = vmatpush1.bf16.msra.mxu0 %v648
        %3080 = vmatprep.subr.bf16.mxu0 0
        %3081 = vmatpush1.bf16.msra.mxu0 %v649
        %3082 = vmatprep.subr.bf16.mxu0 0
        %3083 = vmatpush1.bf16.msra.mxu0 %v650
        %3084 = vmatprep.subr.bf16.mxu0 0
        %3085 = vmatpush1.bf16.msra.mxu0 %v651
        %3086 = vmatprep.subr.bf16.mxu0 0
        %3087 = vmatpush1.bf16.msra.mxu0 %v652
        %3088 = vmatprep.subr.bf16.mxu0 0
        %3089 = vmatpush1.bf16.msra.mxu0 %v653
        %3090 = vmatprep.subr.bf16.mxu0 0
        %3091 = vmatpush1.bf16.msra.mxu0 %v654
        %3092 = vmatprep.subr.bf16.mxu0 0
        %3093 = vmatpush1.bf16.msra.mxu0 %v655
        %3094 = vmatprep.subr.bf16.mxu0 0
        %3095 = vmatpush1.bf16.msra.mxu0 %v656
        %3096 = vmatprep.subr.bf16.mxu0 0
        %3097 = vmatpush1.bf16.msra.mxu0 %v657
        %3098 = vmatprep.subr.bf16.mxu0 0
        %3099 = vmatpush1.bf16.msra.mxu0 %v658
        %3100 = vmatprep.subr.bf16.mxu0 0
        %3101 = vmatpush1.bf16.msra.mxu0 %v659
        %3102 = vmatprep.subr.bf16.mxu0 0
        %3103 = vmatpush1.bf16.msra.mxu0 %v660
        %3104 = vmatprep.subr.bf16.mxu0 0
        %3105 = vmatpush1.bf16.msra.mxu0 %v661
        %3106 = vmatprep.mubr.bf16.mxu0 %v3067
        %3107 = vmatmul.mubr.bf16.gmra.mrb[0].mxu0 %v3066
        %v3108 = vpop.f32.mrb[0].mxu0
        %v3109 = vadd.f32 0.0, %v3108
        %v3110 = vpop.f32.mrb[0].mxu0
        %v3111 = vpop.f32.mrb[0].mxu0
        %v3112 = vadd.f32 0.0, %v3111
        %v3113 = vpop.f32.mrb[0].mxu0
        %3114 = vmatprep.mubr.bf16.mxu0 %v3069
        %3115 = vmatmul.mubr.bf16.gmra.mrb[0].mxu0 %v3068
        %v3116 = vpop.f32.mrb[0].mxu0
        %v3117 = vadd.f32 0.0, %v3116
        %v3118 = vpop.f32.mrb[0].mxu0
        %v3119 = vpop.f32.mrb[0].mxu0
        %v3120 = vadd.f32 0.0, %v3119
        %v3121 = vpop.f32.mrb[0].mxu0
        %3122 = vmatprep.mubr.bf16.mxu0 %v3071
        %3123 = vmatmul.mubr.bf16.gmra.mrb[0].mxu0 %v3070
        %v3124 = vpop.f32.mrb[0].mxu0
        %v3125 = vadd.f32 0.0, %v3124
        %v3126 = vpop.f32.mrb[0].mxu0
        %v3127 = vpop.f32.mrb[0].mxu0
        %v3128 = vadd.f32 0.0, %v3127
        %v3129 = vpop.f32.mrb[0].mxu0
        %3130 = vmatprep.mubr.bf16.mxu0 %v3073
        %3131 = vmatmul.mubr.bf16.gmra.mrb[0].mxu0 %v3072
        %v3132 = vpop.f32.mrb[0].mxu0
        %v3133 = vadd.f32 0.0, %v3132
        %v3134 = vpop.f32.mrb[0].mxu0
        %v3135 = vpop.f32.mrb[0].mxu0
        %v3136 = vadd.f32 0.0, %v3135
        %v3137 = vpop.f32.mrb[0].mxu0
        %3138 = vdwg.mxu0
        %v3139 = vrcp.pop %v3044
        %v3140 = vrcp.pop %v3047
        %v3141 = vrcp.pop %v3050
        %v3142 = vrcp.pop %v3053
        %v3143 = vrcp.pop %v3056
        %v3144 = vrcp.pop %v3059
        %v3145 = vrcp.pop %v3062
        %v3146 = vrcp.pop %v3065
        %v3147 = vmul.f32 %v3109, %v3139
        %v3148 = vmul.f32 %v3112, %v3140
        %v3149 = vmul.f32 %v3117, %v3141
        %v3150 = vmul.f32 %v3120, %v3142
        %v3151 = vmul.f32 %v3125, %v3143
        %v3152 = vmul.f32 %v3128, %v3144
        %v3153 = vmul.f32 %v3133, %v3145
        %v3154 = vmul.f32 %v3136, %v3146
        %3163 = vrot.lane.b32.xlu0 %v3147, 112
        %v3164 = vpop.permute.xlu0 %3163
        %3165 = vrot.lane.b32.xlu0 %v3148, 112
        %v3166 = vpop.permute.xlu0 %3165
        %3167 = vrot.lane.b32.xlu0 %v3149, 112
        %v3168 = vpop.permute.xlu0 %3167
        %3169 = vrot.lane.b32.xlu0 %v3150, 112
        %v3170 = vpop.permute.xlu0 %3169
        %3171 = vrot.lane.b32.xlu0 %v3151, 112
        %v3172 = vpop.permute.xlu0 %3171
        %3173 = vrot.lane.b32.xlu0 %v3152, 112
        %v3174 = vpop.permute.xlu0 %3173
        %3175 = vrot.lane.b32.xlu0 %v3153, 112
        %v3176 = vpop.permute.xlu0 %3175
        %3177 = vrot.lane.b32.xlu0 %v3154, 112
        %v3178 = vpop.permute.xlu0 %3177
        %vm3187 = vcmask 1048448
        %3188 = vst.msk [vmem:[#allocation2] sm:$0xff] %vm3187, %v3164
        %3189 = vst.msk [vmem:[#allocation2 + $0x8] sm:$0xff] %vm3187, %v3166
        %3190 = vst.msk [vmem:[#allocation2 + $0x10] sm:$0xff] %vm3187, %v3168
        %3191 = vst.msk [vmem:[#allocation2 + $0x18] sm:$0xff] %vm3187, %v3170
        %3192 = vst.msk [vmem:[#allocation2 + $0x20] sm:$0xff] %vm3187, %v3172
        %3193 = vst.msk [vmem:[#allocation2 + $0x28] sm:$0xff] %vm3187, %v3174
        %3194 = vst.msk [vmem:[#allocation2 + $0x30] sm:$0xff] %vm3187, %v3176
        %3195 = vst.msk [vmem:[#allocation2 + $0x38] sm:$0xff] %vm3187, %v3178
        %v3196 = vld [vmem:[#allocation2] sm:$0xff]
        %v3197 = vld [vmem:[#allocation2 + $0x8] sm:$0xff]
        %v3198 = vld [vmem:[#allocation2 + $0x10] sm:$0xff]
        %v3199 = vld [vmem:[#allocation2 + $0x18] sm:$0xff]
        %v3200 = vld [vmem:[#allocation2 + $0x20] sm:$0xff]
        %v3201 = vld [vmem:[#allocation2 + $0x28] sm:$0xff]
        %v3202 = vld [vmem:[#allocation2 + $0x30] sm:$0xff]
        %v3203 = vld [vmem:[#allocation2 + $0x38] sm:$0xff]
        %v3204 = vpack.c.bf16 %v3197, %v3196
        %v3205 = vpack.c.bf16 %v3199, %v3198
        %v3206 = vpack.c.bf16 %v3201, %v3200
        %v3207 = vpack.c.bf16 %v3203, %v3202
        %v3208 = vld [vmem:[%s3] sm:$0xf]
        %v3209 = vld [vmem:[%s3 + $0x4] sm:$0xf]
        %v3212 = vunpack.c.l.b16 %v3208
        %v3213 = vunpack.c.l.b16 %v3209
        %v3214 = vpack.c.b16 %v3213, %v3212
        %vm3215 = vcmask 523264
        %v3217 = vsel %vm3215, %v3214, 0
        %3219 = vmatprep.subr.bf16.mxu0 0
        %3220 = vmatpush1.bf16.msra.mxu0 %v3204
        %3221 = vmatprep.subr.bf16.mxu0 0
        %3222 = vmatpush1.bf16.msra.mxu0 %v3205
        %3223 = vmatprep.subr.bf16.mxu0 0
        %3224 = vmatpush1.bf16.msra.mxu0 %v3206
        %3225 = vmatprep.subr.bf16.mxu0 0
        %3226 = vmatpush1.bf16.msra.mxu0 %v3207
        %3227 = vmatprep.subr.bf16.mxu0 0
        %3228 = vmatpush1.bf16.msra.mxu0 0
        %3229 = vmatprep.subr.bf16.mxu0 0
        %3230 = vmatpush1.bf16.msra.mxu0 0
        %3231 = vmatprep.subr.bf16.mxu0 0
        %3232 = vmatpush1.bf16.msra.mxu0 0
        %3233 = vmatprep.subr.bf16.mxu0 0
        %3234 = vmatpush1.bf16.msra.mxu0 0
        %3235 = vmatprep.subr.bf16.mxu0 0
        %3236 = vmatpush1.bf16.msra.mxu0 0
        %3237 = vmatprep.subr.bf16.mxu0 0
        %3238 = vmatpush1.bf16.msra.mxu0 0
        %3239 = vmatprep.subr.bf16.mxu0 0
        %3240 = vmatpush1.bf16.msra.mxu0 0
        %3241 = vmatprep.subr.bf16.mxu0 0
        %3242 = vmatpush1.bf16.msra.mxu0 0
        %3243 = vmatprep.subr.bf16.mxu0 0
        %3244 = vmatpush1.bf16.msra.mxu0 0
        %3245 = vmatprep.subr.bf16.mxu0 0
        %3246 = vmatpush1.bf16.msra.mxu0 0
        %3247 = vmatprep.subr.bf16.mxu0 0
        %3248 = vmatpush1.bf16.msra.mxu0 0
        %3249 = vmatprep.subr.bf16.mxu0 0
        %3250 = vmatpush1.bf16.msra.mxu0 0
        %3251 = vmatprep.mubr.bf16.mxu0 0
        %3252 = vmatmul.mubr.bf16.gmra.mrb[0].mxu0 %v3217
        %v3253 = vpop.f32.mrb[0].mxu0
        %v3254 = vadd.f32 0.0, %v3253
        %v3255 = vpop.f32.mrb[0].mxu0
        %v3256 = vpop.f32.mrb[0].mxu0
        %v3257 = vadd.f32 0.0, %v3256
        %v3258 = vpop.f32.mrb[0].mxu0
        %3259 = vdwg.mxu0
        %3260 = vst [vmem:[%s308] sm:$0xff] %v3254
        %3261 = vst [vmem:[%s308 + $0x8] sm:$0xff] %v3257
        %s3262 = sand.u32 %s138, 1
        %s3263 = sand.u32 %s138, 1
        %s3264 = smul.addr %s3263, 16
        %s3265 = scalar_lea.vmem [#allocation4], %s3264
        // Predicated region
        $region78: #{_lambda_.3} parent=72 // pred_check
          %p3266 = pneg %p148
        $region79: #{_lambda_.3} parent=72 // pred_check_branch
          %3268 = sbr.rel (%p3266) target = $region81
        $region80: #{_lambda_.3} parent=72 // pred_region
          %s3269 = smul.addr %s19, 4
          %s3270 = sadd.s32 %s20, %s3269
          %s3271 = smul.addr %s3270, 8
          %s3272 = scalar_lea.vmem %s4, %s3271
          // Predicated region
          $region82: #{_lambda_.3} parent=80 // pred_check
            _
          $region83: #{_lambda_.3} parent=80 // pred_check_branch
            %3274 = sbr.rel (0) target = $region85
          $region84: #{_lambda_.3} parent=80 // pred_region
            // Predicated region
            $region86: #{_lambda_.3} parent=84 // pred_check
              _
            $region87: #{_lambda_.3} parent=84 // pred_check_branch
              %3276 = sbr.rel (0) target = $region89
            $region88: #{_lambda_.3} parent=84 // pred_region
              // Predicated region
              $region101: #{_lambda_.3} parent=88 // pred_check
                _
              $region102: #{_lambda_.3} parent=88 // pred_check_branch
                %3293 = sbr.rel (0) target = $region104
              $region103: #{_lambda_.3} parent=88 // pred_region
                loop: start=0, step=1, limit=1
                $region105: #{_lambda_.3} parent=103 // loop_pre_header
                  _
                $region106: #{_lambda_.3} parent=103 // loop_header
                  %s3295 = sphi 0, %s3299
                  %p3296 = scmp.ge.s32.totalorder %s3295, 1
                  %s3300 = sphi %s3265, %s3265
                  %s3301 = sphi %s3272, %s3272
                $region107: #{_lambda_.3} parent=103 // loop_header_branch
                  %3298 = sbr.rel (%p3296) target = $region111
                $region108: #{_lambda_.3} parent=103 // loop_body
                  %v3302 = vld [vmem:[%s3300] sm:$0xff]
                  %3303 = vst [vmem:[%s3301] sm:$0xff] %v3302
                  %v3304 = vld [vmem:[%s3300 + $0x8] sm:$0xff]
                  %3305 = vst [vmem:[%s3301 + $0x10] sm:$0xff] %v3304
                $region109: #{_lambda_.3} parent=103 // loop_footer
                  %s3299 = sadd.s32 1, %s3295
                $region110: #{_lambda_.3} parent=103 // loop_footer_branch
                  %3294 = sbr.rel target = $region106
                $region111: #{_lambda_.3} parent=103 // loop_exit
                  _
              $region104: #{_lambda_.3} parent=88 // pred_fallthru
                _
              // Predicated region
              $region112: #{_lambda_.3} parent=88 // pred_check
                _
              $region113: #{_lambda_.3} parent=88 // pred_check_branch
                %3307 = sbr.rel target = $region115
              $region114: #{_lambda_.3} parent=88 // pred_region
                _
              $region115: #{_lambda_.3} parent=88 // pred_fallthru
                _
            $region89: #{_lambda_.3} parent=84 // pred_fallthru
              _
            // Predicated region
            $region90: #{_lambda_.3} parent=84 // pred_check
              _
            $region91: #{_lambda_.3} parent=84 // pred_check_branch
              %3278 = sbr.rel target = $region93
            $region92: #{_lambda_.3} parent=84 // pred_region
              loop: start=0, step=1, limit=1
              $region94: #{_lambda_.3} parent=92 // loop_pre_header
                _
              $region95: #{_lambda_.3} parent=92 // loop_header
                %s3281 = sphi 0, %s3285
                %p3282 = scmp.ge.s32.totalorder %s3281, 1
                %s3286 = sphi %s3265, %s3265
                %s3287 = sphi %s3272, %s3272
              $region96: #{_lambda_.3} parent=92 // loop_header_branch
                %3284 = sbr.rel (%p3282) target = $region100
              $region97: #{_lambda_.3} parent=92 // loop_body
                %v3288 = vld [vmem:[%s3286] sm:$0xff]
                %3289 = vst [vmem:[%s3287] sm:$0xff] %v3288
                %v3290 = vld [vmem:[%s3286 + $0x8] sm:$0xff]
                %3291 = vst [vmem:[%s3287 + $0x10] sm:$0xff] %v3290
              $region98: #{_lambda_.3} parent=92 // loop_footer
                %s3285 = sadd.s32 1, %s3281
              $region99: #{_lambda_.3} parent=92 // loop_footer_branch
                %3280 = sbr.rel target = $region95
              $region100: #{_lambda_.3} parent=92 // loop_exit
                _
            $region93: #{_lambda_.3} parent=84 // pred_fallthru
              _
          $region85: #{_lambda_.3} parent=80 // pred_fallthru
            _
          %3308 = vnop
        $region81: #{_lambda_.3} parent=72 // pred_fallthru
          _
      $region73: #{_lambda_.3} parent=5 // pred_fallthru
        _
      %p3309 = scmp.le.s32.totalorder 2, %s10
      // Predicated region
      $region116: #{_lambda_.3} parent=5 // pred_check
        %p3310 = pneg %p3309
      $region117: #{_lambda_.3} parent=5 // pred_check_branch
        %3312 = sbr.rel (%p3310) target = $region119
      $region118: #{_lambda_.3} parent=5 // pred_region
        %s3313 = ssub.s32 %s10, 2
        // Predicated region
        $region120: #{_lambda_.3} parent=118 // pred_check
          %p3314 = pneg %p154
        $region121: #{_lambda_.3} parent=118 // pred_check_branch
          %3316 = sbr.rel (%p3314) target = $region123
        $region122: #{_lambda_.3} parent=118 // pred_region
          %s3317 = sand.u32 %s139, 1
          %s3318 = sand.u32 %s139, 1
          %s3319 = smul.addr %s3318, 16
          %s3320 = scalar_lea.vmem [#allocation4], %s3319
        $region123: #{_lambda_.3} parent=118 // pred_fallthru
          _
      $region119: #{_lambda_.3} parent=5 // pred_fallthru
        _
    $region6: #{_lambda_.3} parent=1 // loop_footer
      %s14 = sadd.s32 1, %s10
    $region7: #{_lambda_.3} parent=1 // loop_footer_branch
      %9 = sbr.rel target = $region3
    $region8: #{_lambda_.3} parent=1 // loop_exit
      _

</llo_original>
